<compile_context>
chip_gen: v6e
topology: v6e:2x2x1
jax: 0.10.0
libtpu: 0.0.40
codegen_flags: <defaults>
</compile_context>

<pallas_src>
import jax
import jax.numpy as jnp
from jax.experimental import pallas as pl
from jax.experimental.pallas import tpu as pltpu


# ----------------------------------------------------------------------------
# Fused kernel: GRU layer 1 -> GRU layer 2 -> (dropout = identity) -> Linear
# ----------------------------------------------------------------------------
def _sigmoid(v):
    return 1.0 / (1.0 + jnp.exp(-v))


def _gru_cell(x_t, h_prev, w_ih, w_hh, b_ih, b_hh, H):
    # PyTorch nn.GRU cell; gate order (r, z, n) along the 3H axis.
    gx = jnp.dot(x_t, w_ih, preferred_element_type=jnp.float32) + b_ih
    gh = jnp.dot(h_prev, w_hh, preferred_element_type=jnp.float32) + b_hh
    r = _sigmoid(gx[:, 0:H] + gh[:, 0:H])
    z = _sigmoid(gx[:, H:2 * H] + gh[:, H:2 * H])
    n = jnp.tanh(gx[:, 2 * H:3 * H] + r * gh[:, 2 * H:3 * H])
    return (1.0 - z) * n + z * h_prev


def _regression_gru_kernel(x_ref,
                           wih1_ref, whh1_ref, bih1_ref, bhh1_ref,
                           wih2_ref, whh2_ref, bih2_ref, bhh2_ref,
                           wc_ref, bc_ref,
                           o_ref):
    # x_ref: (T, Bb, I) time-major block of input sequences
    # o_ref: (T, Bb, 1) per-timestep regression output
    T, Bb, _ = x_ref.shape
    H1 = whh1_ref.shape[0]
    H2 = whh2_ref.shape[0]

    # Hoist all weights once per grid step (they are tiny and VMEM-resident).
    wih1 = wih1_ref[...]; whh1 = whh1_ref[...]
    bih1 = bih1_ref[...]; bhh1 = bhh1_ref[...]
    wih2 = wih2_ref[...]; whh2 = whh2_ref[...]
    bih2 = bih2_ref[...]; bhh2 = bhh2_ref[...]
    wc = wc_ref[...]; bc = bc_ref[...]

    def body(t, carry):
        h1, h2 = carry
        x_t = x_ref[t]                                           # (Bb, I)
        h1 = _gru_cell(x_t, h1, wih1, whh1, bih1, bhh1, H1)      # (Bb, H1)
        h2 = _gru_cell(h1, h2, wih2, whh2, bih2, bhh2, H2)       # (Bb, H2)
        # TODO(synk): nn.Dropout is identity in eval mode; training-mode masking not implemented.
        y = jnp.dot(h2, wc, preferred_element_type=jnp.float32) + bc   # (Bb, 1)
        o_ref[t] = y.astype(o_ref.dtype)
        return (h1, h2)

    h1_0 = jnp.zeros((Bb, H1), jnp.float32)   # PyTorch default h0 = 0
    h2_0 = jnp.zeros((Bb, H2), jnp.float32)
    jax.lax.fori_loop(0, T, body, (h1_0, h2_0), unroll=True)


# ----------------------------------------------------------------------------
# Wrapper: single pallas_call for the whole forward
# ----------------------------------------------------------------------------
@jax.jit
def regression_gru_forward(params, x):
    # x: (B, T, input_size), batch-first like the PyTorch module.
    B, T, I = x.shape
    H1 = params["w_hh1"].shape[0]
    H2 = params["w_hh2"].shape[0]

    # Batch blocking: one step for small B; 8-row blocks (sublane-aligned) for
    # large B so v7x can shard the parallel grid axis across its 2 TensorCores.
    block_b = B if (B < 8 or B % 8 != 0) else 8
    grid = (B // block_b,)

    x_tm = jnp.transpose(x, (1, 0, 2))   # (T, B, I) time-major (tiny, one-time)

    def wspec(shape):
        return pl.BlockSpec(shape, lambda b: tuple(0 for _ in shape))

    out_tm = pl.pallas_call(
        _regression_gru_kernel,
        out_shape=jax.ShapeDtypeStruct((T, B, 1), x.dtype),
        grid=grid,
        in_specs=[
            pl.BlockSpec((T, block_b, I), lambda b: (0, b, 0)),
            wspec((I, 3 * H1)), wspec((H1, 3 * H1)),
            wspec((1, 3 * H1)), wspec((1, 3 * H1)),
            wspec((H1, 3 * H2)), wspec((H2, 3 * H2)),
            wspec((1, 3 * H2)), wspec((1, 3 * H2)),
            wspec((H2, 1)), wspec((1, 1)),
        ],
        out_specs=pl.BlockSpec((T, block_b, 1), lambda b: (0, b, 0)),
        compiler_params=pltpu.CompilerParams(
            dimension_semantics=("parallel",)),
    )(
        x_tm,
        params["w_ih1"], params["w_hh1"],
        params["b_ih1"].reshape(1, -1), params["b_hh1"].reshape(1, -1),
        params["w_ih2"], params["w_hh2"],
        params["b_ih2"].reshape(1, -1), params["b_hh2"].reshape(1, -1),
        params["w_cls"], params["b_cls"].reshape(1, -1),
    )
    # PyTorch: out.contiguous().view(-1, H2) flattens batch-major -> (B*T, 1).
    return jnp.transpose(out_tm, (1, 0, 2)).reshape(B * T, 1)


# ----------------------------------------------------------------------------
# Deterministic synthetic parameters + pure-JAX reference
# ----------------------------------------------------------------------------
def init_params(key, input_size, h1, h2):
    ks = jax.random.split(key, 10)
    s = 0.1

    def rnd(k, shape):
        return s * jax.random.normal(k, shape, jnp.float32)

    return {
        # weights stored pre-transposed for the kernel: (in, 3H), gate order (r,z,n)
        "w_ih1": rnd(ks[0], (input_size, 3 * h1)),
        "w_hh1": rnd(ks[1], (h1, 3 * h1)),
        "b_ih1": rnd(ks[2], (3 * h1,)),
        "b_hh1": rnd(ks[3], (3 * h1,)),
        "w_ih2": rnd(ks[4], (h1, 3 * h2)),
        "w_hh2": rnd(ks[5], (h2, 3 * h2)),
        "b_ih2": rnd(ks[6], (3 * h2,)),
        "b_hh2": rnd(ks[7], (3 * h2,)),
        "w_cls": rnd(ks[8], (h2, 1)),
        "b_cls": rnd(ks[9], (1,)),
    }


def _gru_layer_ref(x, w_ih, w_hh, b_ih, b_hh):
    B, T, _ = x.shape
    H = w_hh.shape[0]

    def step(h, x_t):
        gx = x_t @ w_ih + b_ih
        gh = h @ w_hh + b_hh
        r = jax.nn.sigmoid(gx[:, :H] + gh[:, :H])
        z = jax.nn.sigmoid(gx[:, H:2 * H] + gh[:, H:2 * H])
        n = jnp.tanh(gx[:, 2 * H:] + r * gh[:, 2 * H:])
        h_new = (1.0 - z) * n + z * h
        return h_new, h_new

    h0 = jnp.zeros((B, H), x.dtype)
    _, hs = jax.lax.scan(step, h0, jnp.transpose(x, (1, 0, 2)))
    return jnp.transpose(hs, (1, 0, 2))   # (B, T, H)


def reference_forward(params, x):
    h = _gru_layer_ref(x, params["w_ih1"], params["w_hh1"],
                       params["b_ih1"], params["b_hh1"])
    h = _gru_layer_ref(h, params["w_ih2"], params["w_hh2"],
                       params["b_ih2"], params["b_hh2"])
    h = h.reshape(-1, h.shape[-1])                     # (B*T, H2), batch-major
    return h @ params["w_cls"] + params["b_cls"]       # (B*T, 1)


if __name__ == "__main__":
    B = 2
    seq_len = 8
    input_size = 4
    hidden_size_1 = 32
    hidden_size_2 = 32

    key = jax.random.PRNGKey(0)
    pkey, xkey = jax.random.split(key)
    params = init_params(pkey, input_size, hidden_size_1, hidden_size_2)
    x = jax.random.normal(xkey, (B, seq_len, input_size), jnp.float32)

    out = regression_gru_forward(params, x)
    out = jax.block_until_ready(out)

    ref = reference_forward(params, x)
    assert out.shape == (B * seq_len, 1), out.shape
    assert jnp.allclose(out, ref, rtol=1e-2, atol=1e-2), "mismatch vs reference"

    print("KERNEL_OK")
</pallas_src>

<mosaic_0001>
module attributes {stable_mosaic.version = 11 : i64} {
  func.func @_regression_gru_kernel(%arg0: i32, %arg1: memref<8x2x4xf32, #tpu.memory_space<vmem>>, %arg2: memref<4x96xf32, #tpu.memory_space<vmem>>, %arg3: memref<32x96xf32, #tpu.memory_space<vmem>>, %arg4: memref<1x96xf32, #tpu.memory_space<vmem>>, %arg5: memref<1x96xf32, #tpu.memory_space<vmem>>, %arg6: memref<32x96xf32, #tpu.memory_space<vmem>>, %arg7: memref<32x96xf32, #tpu.memory_space<vmem>>, %arg8: memref<1x96xf32, #tpu.memory_space<vmem>>, %arg9: memref<1x96xf32, #tpu.memory_space<vmem>>, %arg10: memref<32x1xf32, #tpu.memory_space<vmem>>, %arg11: memref<1x1xf32, #tpu.memory_space<vmem>>, %arg12: memref<8x2x1xf32, #tpu.memory_space<vmem>>) attributes {dimension_semantics = [#tpu.dimension_semantics<parallel>], iteration_bounds = array<i64: 1>, scalar_prefetch = 0 : i64, scratch_operands = 0 : i64, tpu.core_type = #tpu.core_type<tc>, window_params = [{transform_indices = @transform_0, window_bounds = array<i64: 8, 2, 4>}, {pipeline_mode = #tpu.pipeline_mode<synchronous>, transform_indices = @transform_1, window_bounds = array<i64: 4, 96>}, {pipeline_mode = #tpu.pipeline_mode<synchronous>, transform_indices = @transform_2, window_bounds = array<i64: 32, 96>}, {pipeline_mode = #tpu.pipeline_mode<synchronous>, transform_indices = @transform_3, window_bounds = array<i64: 1, 96>}, {pipeline_mode = #tpu.pipeline_mode<synchronous>, transform_indices = @transform_4, window_bounds = array<i64: 1, 96>}, {pipeline_mode = #tpu.pipeline_mode<synchronous>, transform_indices = @transform_5, window_bounds = array<i64: 32, 96>}, {pipeline_mode = #tpu.pipeline_mode<synchronous>, transform_indices = @transform_6, window_bounds = array<i64: 32, 96>}, {pipeline_mode = #tpu.pipeline_mode<synchronous>, transform_indices = @transform_7, window_bounds = array<i64: 1, 96>}, {pipeline_mode = #tpu.pipeline_mode<synchronous>, transform_indices = @transform_8, window_bounds = array<i64: 1, 96>}, {pipeline_mode = #tpu.pipeline_mode<synchronous>, transform_indices = @transform_9, window_bounds = array<i64: 32, 1>}, {pipeline_mode = #tpu.pipeline_mode<synchronous>, transform_indices = @transform_10, window_bounds = array<i64: 1, 1>}, {transform_indices = @transform_11, window_bounds = array<i64: 8, 2, 1>}]} {
    %c0 = arith.constant 0 : index
    %c0_0 = arith.constant 0 : index
    %0 = vector.load %arg2[%c0, %c0_0] : memref<4x96xf32, #tpu.memory_space<vmem>>, vector<4x96xf32>
    %c0_1 = arith.constant 0 : index
    %c0_2 = arith.constant 0 : index
    %1 = vector.load %arg3[%c0_1, %c0_2] : memref<32x96xf32, #tpu.memory_space<vmem>>, vector<32x96xf32>
    %c0_3 = arith.constant 0 : index
    %c0_4 = arith.constant 0 : index
    %2 = vector.load %arg4[%c0_3, %c0_4] : memref<1x96xf32, #tpu.memory_space<vmem>>, vector<1x96xf32>
    %c0_5 = arith.constant 0 : index
    %c0_6 = arith.constant 0 : index
    %3 = vector.load %arg5[%c0_5, %c0_6] : memref<1x96xf32, #tpu.memory_space<vmem>>, vector<1x96xf32>
    %c0_7 = arith.constant 0 : index
    %c0_8 = arith.constant 0 : index
    %4 = vector.load %arg6[%c0_7, %c0_8] : memref<32x96xf32, #tpu.memory_space<vmem>>, vector<32x96xf32>
    %c0_9 = arith.constant 0 : index
    %c0_10 = arith.constant 0 : index
    %5 = vector.load %arg7[%c0_9, %c0_10] : memref<32x96xf32, #tpu.memory_space<vmem>>, vector<32x96xf32>
    %c0_11 = arith.constant 0 : index
    %c0_12 = arith.constant 0 : index
    %6 = vector.load %arg8[%c0_11, %c0_12] : memref<1x96xf32, #tpu.memory_space<vmem>>, vector<1x96xf32>
    %c0_13 = arith.constant 0 : index
    %c0_14 = arith.constant 0 : index
    %7 = vector.load %arg9[%c0_13, %c0_14] : memref<1x96xf32, #tpu.memory_space<vmem>>, vector<1x96xf32>
    %c0_15 = arith.constant 0 : index
    %c0_16 = arith.constant 0 : index
    %8 = vector.load %arg10[%c0_15, %c0_16] : memref<32x1xf32, #tpu.memory_space<vmem>>, vector<32x1xf32>
    %c0_17 = arith.constant 0 : index
    %c0_18 = arith.constant 0 : index
    %9 = vector.load %arg11[%c0_17, %c0_18] : memref<1x1xf32, #tpu.memory_space<vmem>>, vector<1x1xf32>
    %cst = arith.constant 0.000000e+00 : f32
    %10 = vector.broadcast %cst : f32 to vector<2x32xf32>
    %cst_19 = arith.constant 0.000000e+00 : f32
    %11 = vector.broadcast %cst_19 : f32 to vector<2x32xf32>
    %c0_i32 = arith.constant 0 : i32
    %12 = arith.index_cast %c0_i32 : i32 to index
    %c0_20 = arith.constant 0 : index
    %c0_21 = arith.constant 0 : index
    %13 = vector.load %arg1[%12, %c0_20, %c0_21] : memref<8x2x4xf32, #tpu.memory_space<vmem>>, vector<1x2x4xf32>
    %14 = vector.shape_cast %13 : vector<1x2x4xf32> to vector<2x4xf32>
    %cst_22 = arith.constant dense<0.000000e+00> : vector<2x96xf32>
    %15 = tpu.matmul %14, %0, %cst_22 {dimension_numbers = #tpu.dot_dimension_numbers<[1], [0], [0], [1], [0, 0, 1, 1], [], []>} : vector<2x4xf32>, vector<4x96xf32>, vector<2x96xf32> -> vector<2x96xf32>
    %16 = vector.broadcast %2 : vector<1x96xf32> to vector<2x96xf32>
    %17 = arith.addf %15, %16 : vector<2x96xf32>
    %cst_23 = arith.constant dense<0.000000e+00> : vector<2x96xf32>
    %18 = tpu.matmul %10, %1, %cst_23 {dimension_numbers = #tpu.dot_dimension_numbers<[1], [0], [0], [1], [0, 0, 1, 1], [], []>} : vector<2x32xf32>, vector<32x96xf32>, vector<2x96xf32> -> vector<2x96xf32>
    %19 = vector.broadcast %3 : vector<1x96xf32> to vector<2x96xf32>
    %20 = arith.addf %18, %19 : vector<2x96xf32>
    %21 = vector.extract_strided_slice %17 {offsets = [0, 0], sizes = [2, 32], strides = [1, 1]} : vector<2x96xf32> to vector<2x32xf32>
    %22 = vector.extract_strided_slice %20 {offsets = [0, 0], sizes = [2, 32], strides = [1, 1]} : vector<2x96xf32> to vector<2x32xf32>
    %23 = arith.addf %21, %22 : vector<2x32xf32>
    %cst_24 = arith.constant 0.000000e+00 : f32
    %24 = vector.broadcast %cst_24 : f32 to vector<2x32xf32>
    %25 = arith.subf %24, %23 : vector<2x32xf32>
    %26 = math.exp %25 : vector<2x32xf32>
    %cst_25 = arith.constant 1.000000e+00 : f32
    %27 = vector.broadcast %cst_25 : f32 to vector<2x32xf32>
    %28 = arith.addf %27, %26 : vector<2x32xf32>
    %cst_26 = arith.constant 1.000000e+00 : f32
    %29 = vector.broadcast %cst_26 : f32 to vector<2x32xf32>
    %30 = arith.divf %29, %28 : vector<2x32xf32>
    %31 = vector.extract_strided_slice %17 {offsets = [0, 32], sizes = [2, 32], strides = [1, 1]} : vector<2x96xf32> to vector<2x32xf32>
    %32 = vector.extract_strided_slice %20 {offsets = [0, 32], sizes = [2, 32], strides = [1, 1]} : vector<2x96xf32> to vector<2x32xf32>
    %33 = arith.addf %31, %32 : vector<2x32xf32>
    %cst_27 = arith.constant 0.000000e+00 : f32
    %34 = vector.broadcast %cst_27 : f32 to vector<2x32xf32>
    %35 = arith.subf %34, %33 : vector<2x32xf32>
    %36 = math.exp %35 : vector<2x32xf32>
    %cst_28 = arith.constant 1.000000e+00 : f32
    %37 = vector.broadcast %cst_28 : f32 to vector<2x32xf32>
    %38 = arith.addf %37, %36 : vector<2x32xf32>
    %cst_29 = arith.constant 1.000000e+00 : f32
    %39 = vector.broadcast %cst_29 : f32 to vector<2x32xf32>
    %40 = arith.divf %39, %38 : vector<2x32xf32>
    %41 = vector.extract_strided_slice %17 {offsets = [0, 64], sizes = [2, 32], strides = [1, 1]} : vector<2x96xf32> to vector<2x32xf32>
    %42 = vector.extract_strided_slice %20 {offsets = [0, 64], sizes = [2, 32], strides = [1, 1]} : vector<2x96xf32> to vector<2x32xf32>
    %43 = arith.mulf %30, %42 : vector<2x32xf32>
    %44 = arith.addf %41, %43 : vector<2x32xf32>
    %45 = math.tanh %44 : vector<2x32xf32>
    %cst_30 = arith.constant 1.000000e+00 : f32
    %46 = vector.broadcast %cst_30 : f32 to vector<2x32xf32>
    %47 = arith.subf %46, %40 : vector<2x32xf32>
    %48 = arith.mulf %47, %45 : vector<2x32xf32>
    %49 = arith.mulf %40, %10 : vector<2x32xf32>
    %50 = arith.addf %48, %49 : vector<2x32xf32>
    %cst_31 = arith.constant dense<0.000000e+00> : vector<2x96xf32>
    %51 = tpu.matmul %50, %4, %cst_31 {dimension_numbers = #tpu.dot_dimension_numbers<[1], [0], [0], [1], [0, 0, 1, 1], [], []>} : vector<2x32xf32>, vector<32x96xf32>, vector<2x96xf32> -> vector<2x96xf32>
    %52 = vector.broadcast %6 : vector<1x96xf32> to vector<2x96xf32>
    %53 = arith.addf %51, %52 : vector<2x96xf32>
    %cst_32 = arith.constant dense<0.000000e+00> : vector<2x96xf32>
    %54 = tpu.matmul %11, %5, %cst_32 {dimension_numbers = #tpu.dot_dimension_numbers<[1], [0], [0], [1], [0, 0, 1, 1], [], []>} : vector<2x32xf32>, vector<32x96xf32>, vector<2x96xf32> -> vector<2x96xf32>
    %55 = vector.broadcast %7 : vector<1x96xf32> to vector<2x96xf32>
    %56 = arith.addf %54, %55 : vector<2x96xf32>
    %57 = vector.extract_strided_slice %53 {offsets = [0, 0], sizes = [2, 32], strides = [1, 1]} : vector<2x96xf32> to vector<2x32xf32>
    %58 = vector.extract_strided_slice %56 {offsets = [0, 0], sizes = [2, 32], strides = [1, 1]} : vector<2x96xf32> to vector<2x32xf32>
    %59 = arith.addf %57, %58 : vector<2x32xf32>
    %cst_33 = arith.constant 0.000000e+00 : f32
    %60 = vector.broadcast %cst_33 : f32 to vector<2x32xf32>
    %61 = arith.subf %60, %59 : vector<2x32xf32>
    %62 = math.exp %61 : vector<2x32xf32>
    %cst_34 = arith.constant 1.000000e+00 : f32
    %63 = vector.broadcast %cst_34 : f32 to vector<2x32xf32>
    %64 = arith.addf %63, %62 : vector<2x32xf32>
    %cst_35 = arith.constant 1.000000e+00 : f32
    %65 = vector.broadcast %cst_35 : f32 to vector<2x32xf32>
    %66 = arith.divf %65, %64 : vector<2x32xf32>
    %67 = vector.extract_strided_slice %53 {offsets = [0, 32], sizes = [2, 32], strides = [1, 1]} : vector<2x96xf32> to vector<2x32xf32>
    %68 = vector.extract_strided_slice %56 {offsets = [0, 32], sizes = [2, 32], strides = [1, 1]} : vector<2x96xf32> to vector<2x32xf32>
    %69 = arith.addf %67, %68 : vector<2x32xf32>
    %cst_36 = arith.constant 0.000000e+00 : f32
    %70 = vector.broadcast %cst_36 : f32 to vector<2x32xf32>
    %71 = arith.subf %70, %69 : vector<2x32xf32>
    %72 = math.exp %71 : vector<2x32xf32>
    %cst_37 = arith.constant 1.000000e+00 : f32
    %73 = vector.broadcast %cst_37 : f32 to vector<2x32xf32>
    %74 = arith.addf %73, %72 : vector<2x32xf32>
    %cst_38 = arith.constant 1.000000e+00 : f32
    %75 = vector.broadcast %cst_38 : f32 to vector<2x32xf32>
    %76 = arith.divf %75, %74 : vector<2x32xf32>
    %77 = vector.extract_strided_slice %53 {offsets = [0, 64], sizes = [2, 32], strides = [1, 1]} : vector<2x96xf32> to vector<2x32xf32>
    %78 = vector.extract_strided_slice %56 {offsets = [0, 64], sizes = [2, 32], strides = [1, 1]} : vector<2x96xf32> to vector<2x32xf32>
    %79 = arith.mulf %66, %78 : vector<2x32xf32>
    %80 = arith.addf %77, %79 : vector<2x32xf32>
    %81 = math.tanh %80 : vector<2x32xf32>
    %cst_39 = arith.constant 1.000000e+00 : f32
    %82 = vector.broadcast %cst_39 : f32 to vector<2x32xf32>
    %83 = arith.subf %82, %76 : vector<2x32xf32>
    %84 = arith.mulf %83, %81 : vector<2x32xf32>
    %85 = arith.mulf %76, %11 : vector<2x32xf32>
    %86 = arith.addf %84, %85 : vector<2x32xf32>
    %cst_40 = arith.constant dense<0.000000e+00> : vector<2x1xf32>
    %87 = tpu.matmul %86, %8, %cst_40 {dimension_numbers = #tpu.dot_dimension_numbers<[1], [0], [0], [1], [0, 0, 1, 1], [], []>} : vector<2x32xf32>, vector<32x1xf32>, vector<2x1xf32> -> vector<2x1xf32>
    %88 = vector.broadcast %9 : vector<1x1xf32> to vector<2x1xf32>
    %89 = arith.addf %87, %88 : vector<2x1xf32>
    %90 = arith.index_cast %c0_i32 : i32 to index
    %c0_41 = arith.constant 0 : index
    %c0_42 = arith.constant 0 : index
    %91 = vector.load %arg12[%90, %c0_41, %c0_42] : memref<8x2x1xf32, #tpu.memory_space<vmem>>, vector<1x2x1xf32>
    %92 = vector.shape_cast %91 : vector<1x2x1xf32> to vector<2x1xf32>
    %93 = vector.shape_cast %89 : vector<2x1xf32> to vector<1x2x1xf32>
    tpu.vector_store %arg12[%90, %c0_41, %c0_42], %93 {strides = array<i32>} : memref<8x2x1xf32, #tpu.memory_space<vmem>>, vector<1x2x1xf32>,
    %c1_i32 = arith.constant 1 : i32
    %94 = arith.index_cast %c1_i32 : i32 to index
    %c0_43 = arith.constant 0 : index
    %c0_44 = arith.constant 0 : index
    %95 = vector.load %arg1[%94, %c0_43, %c0_44] : memref<8x2x4xf32, #tpu.memory_space<vmem>>, vector<1x2x4xf32>
    %96 = vector.shape_cast %95 : vector<1x2x4xf32> to vector<2x4xf32>
    %cst_45 = arith.constant dense<0.000000e+00> : vector<2x96xf32>
    %97 = tpu.matmul %96, %0, %cst_45 {dimension_numbers = #tpu.dot_dimension_numbers<[1], [0], [0], [1], [0, 0, 1, 1], [], []>} : vector<2x4xf32>, vector<4x96xf32>, vector<2x96xf32> -> vector<2x96xf32>
    %98 = vector.broadcast %2 : vector<1x96xf32> to vector<2x96xf32>
    %99 = arith.addf %97, %98 : vector<2x96xf32>
    %cst_46 = arith.constant dense<0.000000e+00> : vector<2x96xf32>
    %100 = tpu.matmul %50, %1, %cst_46 {dimension_numbers = #tpu.dot_dimension_numbers<[1], [0], [0], [1], [0, 0, 1, 1], [], []>} : vector<2x32xf32>, vector<32x96xf32>, vector<2x96xf32> -> vector<2x96xf32>
    %101 = vector.broadcast %3 : vector<1x96xf32> to vector<2x96xf32>
    %102 = arith.addf %100, %101 : vector<2x96xf32>
    %103 = vector.extract_strided_slice %99 {offsets = [0, 0], sizes = [2, 32], strides = [1, 1]} : vector<2x96xf32> to vector<2x32xf32>
    %104 = vector.extract_strided_slice %102 {offsets = [0, 0], sizes = [2, 32], strides = [1, 1]} : vector<2x96xf32> to vector<2x32xf32>
    %105 = arith.addf %103, %104 : vector<2x32xf32>
    %cst_47 = arith.constant 0.000000e+00 : f32
    %106 = vector.broadcast %cst_47 : f32 to vector<2x32xf32>
    %107 = arith.subf %106, %105 : vector<2x32xf32>
    %108 = math.exp %107 : vector<2x32xf32>
    %cst_48 = arith.constant 1.000000e+00 : f32
    %109 = vector.broadcast %cst_48 : f32 to vector<2x32xf32>
    %110 = arith.addf %109, %108 : vector<2x32xf32>
    %cst_49 = arith.constant 1.000000e+00 : f32
    %111 = vector.broadcast %cst_49 : f32 to vector<2x32xf32>
    %112 = arith.divf %111, %110 : vector<2x32xf32>
    %113 = vector.extract_strided_slice %99 {offsets = [0, 32], sizes = [2, 32], strides = [1, 1]} : vector<2x96xf32> to vector<2x32xf32>
    %114 = vector.extract_strided_slice %102 {offsets = [0, 32], sizes = [2, 32], strides = [1, 1]} : vector<2x96xf32> to vector<2x32xf32>
    %115 = arith.addf %113, %114 : vector<2x32xf32>
    %cst_50 = arith.constant 0.000000e+00 : f32
    %116 = vector.broadcast %cst_50 : f32 to vector<2x32xf32>
    %117 = arith.subf %116, %115 : vector<2x32xf32>
    %118 = math.exp %117 : vector<2x32xf32>
    %cst_51 = arith.constant 1.000000e+00 : f32
    %119 = vector.broadcast %cst_51 : f32 to vector<2x32xf32>
    %120 = arith.addf %119, %118 : vector<2x32xf32>
    %cst_52 = arith.constant 1.000000e+00 : f32
    %121 = vector.broadcast %cst_52 : f32 to vector<2x32xf32>
    %122 = arith.divf %121, %120 : vector<2x32xf32>
    %123 = vector.extract_strided_slice %99 {offsets = [0, 64], sizes = [2, 32], strides = [1, 1]} : vector<2x96xf32> to vector<2x32xf32>
    %124 = vector.extract_strided_slice %102 {offsets = [0, 64], sizes = [2, 32], strides = [1, 1]} : vector<2x96xf32> to vector<2x32xf32>
    %125 = arith.mulf %112, %124 : vector<2x32xf32>
    %126 = arith.addf %123, %125 : vector<2x32xf32>
    %127 = math.tanh %126 : vector<2x32xf32>
    %cst_53 = arith.constant 1.000000e+00 : f32
    %128 = vector.broadcast %cst_53 : f32 to vector<2x32xf32>
    %129 = arith.subf %128, %122 : vector<2x32xf32>
    %130 = arith.mulf %129, %127 : vector<2x32xf32>
    %131 = arith.mulf %122, %50 : vector<2x32xf32>
    %132 = arith.addf %130, %131 : vector<2x32xf32>
    %cst_54 = arith.constant dense<0.000000e+00> : vector<2x96xf32>
    %133 = tpu.matmul %132, %4, %cst_54 {dimension_numbers = #tpu.dot_dimension_numbers<[1], [0], [0], [1], [0, 0, 1, 1], [], []>} : vector<2x32xf32>, vector<32x96xf32>, vector<2x96xf32> -> vector<2x96xf32>
    %134 = vector.broadcast %6 : vector<1x96xf32> to vector<2x96xf32>
    %135 = arith.addf %133, %134 : vector<2x96xf32>
    %cst_55 = arith.constant dense<0.000000e+00> : vector<2x96xf32>
    %136 = tpu.matmul %86, %5, %cst_55 {dimension_numbers = #tpu.dot_dimension_numbers<[1], [0], [0], [1], [0, 0, 1, 1], [], []>} : vector<2x32xf32>, vector<32x96xf32>, vector<2x96xf32> -> vector<2x96xf32>
    %137 = vector.broadcast %7 : vector<1x96xf32> to vector<2x96xf32>
    %138 = arith.addf %136, %137 : vector<2x96xf32>
    %139 = vector.extract_strided_slice %135 {offsets = [0, 0], sizes = [2, 32], strides = [1, 1]} : vector<2x96xf32> to vector<2x32xf32>
    %140 = vector.extract_strided_slice %138 {offsets = [0, 0], sizes = [2, 32], strides = [1, 1]} : vector<2x96xf32> to vector<2x32xf32>
    %141 = arith.addf %139, %140 : vector<2x32xf32>
    %cst_56 = arith.constant 0.000000e+00 : f32
    %142 = vector.broadcast %cst_56 : f32 to vector<2x32xf32>
    %143 = arith.subf %142, %141 : vector<2x32xf32>
    %144 = math.exp %143 : vector<2x32xf32>
    %cst_57 = arith.constant 1.000000e+00 : f32
    %145 = vector.broadcast %cst_57 : f32 to vector<2x32xf32>
    %146 = arith.addf %145, %144 : vector<2x32xf32>
    %cst_58 = arith.constant 1.000000e+00 : f32
    %147 = vector.broadcast %cst_58 : f32 to vector<2x32xf32>
    %148 = arith.divf %147, %146 : vector<2x32xf32>
    %149 = vector.extract_strided_slice %135 {offsets = [0, 32], sizes = [2, 32], strides = [1, 1]} : vector<2x96xf32> to vector<2x32xf32>
    %150 = vector.extract_strided_slice %138 {offsets = [0, 32], sizes = [2, 32], strides = [1, 1]} : vector<2x96xf32> to vector<2x32xf32>
    %151 = arith.addf %149, %150 : vector<2x32xf32>
    %cst_59 = arith.constant 0.000000e+00 : f32
    %152 = vector.broadcast %cst_59 : f32 to vector<2x32xf32>
    %153 = arith.subf %152, %151 : vector<2x32xf32>
    %154 = math.exp %153 : vector<2x32xf32>
    %cst_60 = arith.constant 1.000000e+00 : f32
    %155 = vector.broadcast %cst_60 : f32 to vector<2x32xf32>
    %156 = arith.addf %155, %154 : vector<2x32xf32>
    %cst_61 = arith.constant 1.000000e+00 : f32
    %157 = vector.broadcast %cst_61 : f32 to vector<2x32xf32>
    %158 = arith.divf %157, %156 : vector<2x32xf32>
    %159 = vector.extract_strided_slice %135 {offsets = [0, 64], sizes = [2, 32], strides = [1, 1]} : vector<2x96xf32> to vector<2x32xf32>
    %160 = vector.extract_strided_slice %138 {offsets = [0, 64], sizes = [2, 32], strides = [1, 1]} : vector<2x96xf32> to vector<2x32xf32>
    %161 = arith.mulf %148, %160 : vector<2x32xf32>
    %162 = arith.addf %159, %161 : vector<2x32xf32>
    %163 = math.tanh %162 : vector<2x32xf32>
    %cst_62 = arith.constant 1.000000e+00 : f32
    %164 = vector.broadcast %cst_62 : f32 to vector<2x32xf32>
    %165 = arith.subf %164, %158 : vector<2x32xf32>
    %166 = arith.mulf %165, %163 : vector<2x32xf32>
    %167 = arith.mulf %158, %86 : vector<2x32xf32>
    %168 = arith.addf %166, %167 : vector<2x32xf32>
    %cst_63 = arith.constant dense<0.000000e+00> : vector<2x1xf32>
    %169 = tpu.matmul %168, %8, %cst_63 {dimension_numbers = #tpu.dot_dimension_numbers<[1], [0], [0], [1], [0, 0, 1, 1], [], []>} : vector<2x32xf32>, vector<32x1xf32>, vector<2x1xf32> -> vector<2x1xf32>
    %170 = vector.broadcast %9 : vector<1x1xf32> to vector<2x1xf32>
    %171 = arith.addf %169, %170 : vector<2x1xf32>
    %172 = arith.index_cast %c1_i32 : i32 to index
    %c0_64 = arith.constant 0 : index
    %c0_65 = arith.constant 0 : index
    %173 = vector.load %arg12[%172, %c0_64, %c0_65] : memref<8x2x1xf32, #tpu.memory_space<vmem>>, vector<1x2x1xf32>
    %174 = vector.shape_cast %173 : vector<1x2x1xf32> to vector<2x1xf32>
    %175 = vector.shape_cast %171 : vector<2x1xf32> to vector<1x2x1xf32>
    tpu.vector_store %arg12[%172, %c0_64, %c0_65], %175 {strides = array<i32>} : memref<8x2x1xf32, #tpu.memory_space<vmem>>, vector<1x2x1xf32>,
    %c2_i32 = arith.constant 2 : i32
    %176 = arith.index_cast %c2_i32 : i32 to index
    %c0_66 = arith.constant 0 : index
    %c0_67 = arith.constant 0 : index
    %177 = vector.load %arg1[%176, %c0_66, %c0_67] : memref<8x2x4xf32, #tpu.memory_space<vmem>>, vector<1x2x4xf32>
    %178 = vector.shape_cast %177 : vector<1x2x4xf32> to vector<2x4xf32>
    %cst_68 = arith.constant dense<0.000000e+00> : vector<2x96xf32>
    %179 = tpu.matmul %178, %0, %cst_68 {dimension_numbers = #tpu.dot_dimension_numbers<[1], [0], [0], [1], [0, 0, 1, 1], [], []>} : vector<2x4xf32>, vector<4x96xf32>, vector<2x96xf32> -> vector<2x96xf32>
    %180 = vector.broadcast %2 : vector<1x96xf32> to vector<2x96xf32>
    %181 = arith.addf %179, %180 : vector<2x96xf32>
    %cst_69 = arith.constant dense<0.000000e+00> : vector<2x96xf32>
    %182 = tpu.matmul %132, %1, %cst_69 {dimension_numbers = #tpu.dot_dimension_numbers<[1], [0], [0], [1], [0, 0, 1, 1], [], []>} : vector<2x32xf32>, vector<32x96xf32>, vector<2x96xf32> -> vector<2x96xf32>
    %183 = vector.broadcast %3 : vector<1x96xf32> to vector<2x96xf32>
    %184 = arith.addf %182, %183 : vector<2x96xf32>
    %185 = vector.extract_strided_slice %181 {offsets = [0, 0], sizes = [2, 32], strides = [1, 1]} : vector<2x96xf32> to vector<2x32xf32>
    %186 = vector.extract_strided_slice %184 {offsets = [0, 0], sizes = [2, 32], strides = [1, 1]} : vector<2x96xf32> to vector<2x32xf32>
    %187 = arith.addf %185, %186 : vector<2x32xf32>
    %cst_70 = arith.constant 0.000000e+00 : f32
    %188 = vector.broadcast %cst_70 : f32 to vector<2x32xf32>
    %189 = arith.subf %188, %187 : vector<2x32xf32>
    %190 = math.exp %189 : vector<2x32xf32>
    %cst_71 = arith.constant 1.000000e+00 : f32
    %191 = vector.broadcast %cst_71 : f32 to vector<2x32xf32>
    %192 = arith.addf %191, %190 : vector<2x32xf32>
    %cst_72 = arith.constant 1.000000e+00 : f32
    %193 = vector.broadcast %cst_72 : f32 to vector<2x32xf32>
    %194 = arith.divf %193, %192 : vector<2x32xf32>
    %195 = vector.extract_strided_slice %181 {offsets = [0, 32], sizes = [2, 32], strides = [1, 1]} : vector<2x96xf32> to vector<2x32xf32>
    %196 = vector.extract_strided_slice %184 {offsets = [0, 32], sizes = [2, 32], strides = [1, 1]} : vector<2x96xf32> to vector<2x32xf32>
    %197 = arith.addf %195, %196 : vector<2x32xf32>
    %cst_73 = arith.constant 0.000000e+00 : f32
    %198 = vector.broadcast %cst_73 : f32 to vector<2x32xf32>
    %199 = arith.subf %198, %197 : vector<2x32xf32>
    %200 = math.exp %199 : vector<2x32xf32>
    %cst_74 = arith.constant 1.000000e+00 : f32
    %201 = vector.broadcast %cst_74 : f32 to vector<2x32xf32>
    %202 = arith.addf %201, %200 : vector<2x32xf32>
    %cst_75 = arith.constant 1.000000e+00 : f32
    %203 = vector.broadcast %cst_75 : f32 to vector<2x32xf32>
    %204 = arith.divf %203, %202 : vector<2x32xf32>
    %205 = vector.extract_strided_slice %181 {offsets = [0, 64], sizes = [2, 32], strides = [1, 1]} : vector<2x96xf32> to vector<2x32xf32>
    %206 = vector.extract_strided_slice %184 {offsets = [0, 64], sizes = [2, 32], strides = [1, 1]} : vector<2x96xf32> to vector<2x32xf32>
    %207 = arith.mulf %194, %206 : vector<2x32xf32>
    %208 = arith.addf %205, %207 : vector<2x32xf32>
    %209 = math.tanh %208 : vector<2x32xf32>
    %cst_76 = arith.constant 1.000000e+00 : f32
    %210 = vector.broadcast %cst_76 : f32 to vector<2x32xf32>
    %211 = arith.subf %210, %204 : vector<2x32xf32>
    %212 = arith.mulf %211, %209 : vector<2x32xf32>
    %213 = arith.mulf %204, %132 : vector<2x32xf32>
    %214 = arith.addf %212, %213 : vector<2x32xf32>
    %cst_77 = arith.constant dense<0.000000e+00> : vector<2x96xf32>
    %215 = tpu.matmul %214, %4, %cst_77 {dimension_numbers = #tpu.dot_dimension_numbers<[1], [0], [0], [1], [0, 0, 1, 1], [], []>} : vector<2x32xf32>, vector<32x96xf32>, vector<2x96xf32> -> vector<2x96xf32>
    %216 = vector.broadcast %6 : vector<1x96xf32> to vector<2x96xf32>
    %217 = arith.addf %215, %216 : vector<2x96xf32>
    %cst_78 = arith.constant dense<0.000000e+00> : vector<2x96xf32>
    %218 = tpu.matmul %168, %5, %cst_78 {dimension_numbers = #tpu.dot_dimension_numbers<[1], [0], [0], [1], [0, 0, 1, 1], [], []>} : vector<2x32xf32>, vector<32x96xf32>, vector<2x96xf32> -> vector<2x96xf32>
    %219 = vector.broadcast %7 : vector<1x96xf32> to vector<2x96xf32>
    %220 = arith.addf %218, %219 : vector<2x96xf32>
    %221 = vector.extract_strided_slice %217 {offsets = [0, 0], sizes = [2, 32], strides = [1, 1]} : vector<2x96xf32> to vector<2x32xf32>
    %222 = vector.extract_strided_slice %220 {offsets = [0, 0], sizes = [2, 32], strides = [1, 1]} : vector<2x96xf32> to vector<2x32xf32>
    %223 = arith.addf %221, %222 : vector<2x32xf32>
    %cst_79 = arith.constant 0.000000e+00 : f32
    %224 = vector.broadcast %cst_79 : f32 to vector<2x32xf32>
    %225 = arith.subf %224, %223 : vector<2x32xf32>
    %226 = math.exp %225 : vector<2x32xf32>
    %cst_80 = arith.constant 1.000000e+00 : f32
    %227 = vector.broadcast %cst_80 : f32 to vector<2x32xf32>
    %228 = arith.addf %227, %226 : vector<2x32xf32>
    %cst_81 = arith.constant 1.000000e+00 : f32
    %229 = vector.broadcast %cst_81 : f32 to vector<2x32xf32>
    %230 = arith.divf %229, %228 : vector<2x32xf32>
    %231 = vector.extract_strided_slice %217 {offsets = [0, 32], sizes = [2, 32], strides = [1, 1]} : vector<2x96xf32> to vector<2x32xf32>
    %232 = vector.extract_strided_slice %220 {offsets = [0, 32], sizes = [2, 32], strides = [1, 1]} : vector<2x96xf32> to vector<2x32xf32>
    %233 = arith.addf %231, %232 : vector<2x32xf32>
    %cst_82 = arith.constant 0.000000e+00 : f32
    %234 = vector.broadcast %cst_82 : f32 to vector<2x32xf32>
    %235 = arith.subf %234, %233 : vector<2x32xf32>
    %236 = math.exp %235 : vector<2x32xf32>
    %cst_83 = arith.constant 1.000000e+00 : f32
    %237 = vector.broadcast %cst_83 : f32 to vector<2x32xf32>
    %238 = arith.addf %237, %236 : vector<2x32xf32>
    %cst_84 = arith.constant 1.000000e+00 : f32
    %239 = vector.broadcast %cst_84 : f32 to vector<2x32xf32>
    %240 = arith.divf %239, %238 : vector<2x32xf32>
    %241 = vector.extract_strided_slice %217 {offsets = [0, 64], sizes = [2, 32], strides = [1, 1]} : vector<2x96xf32> to vector<2x32xf32>
    %242 = vector.extract_strided_slice %220 {offsets = [0, 64], sizes = [2, 32], strides = [1, 1]} : vector<2x96xf32> to vector<2x32xf32>
    %243 = arith.mulf %230, %242 : vector<2x32xf32>
    %244 = arith.addf %241, %243 : vector<2x32xf32>
    %245 = math.tanh %244 : vector<2x32xf32>
    %cst_85 = arith.constant 1.000000e+00 : f32
    %246 = vector.broadcast %cst_85 : f32 to vector<2x32xf32>
    %247 = arith.subf %246, %240 : vector<2x32xf32>
    %248 = arith.mulf %247, %245 : vector<2x32xf32>
    %249 = arith.mulf %240, %168 : vector<2x32xf32>
    %250 = arith.addf %248, %249 : vector<2x32xf32>
    %cst_86 = arith.constant dense<0.000000e+00> : vector<2x1xf32>
    %251 = tpu.matmul %250, %8, %cst_86 {dimension_numbers = #tpu.dot_dimension_numbers<[1], [0], [0], [1], [0, 0, 1, 1], [], []>} : vector<2x32xf32>, vector<32x1xf32>, vector<2x1xf32> -> vector<2x1xf32>
    %252 = vector.broadcast %9 : vector<1x1xf32> to vector<2x1xf32>
    %253 = arith.addf %251, %252 : vector<2x1xf32>
    %254 = arith.index_cast %c2_i32 : i32 to index
    %c0_87 = arith.constant 0 : index
    %c0_88 = arith.constant 0 : index
    %255 = vector.load %arg12[%254, %c0_87, %c0_88] : memref<8x2x1xf32, #tpu.memory_space<vmem>>, vector<1x2x1xf32>
    %256 = vector.shape_cast %255 : vector<1x2x1xf32> to vector<2x1xf32>
    %257 = vector.shape_cast %253 : vector<2x1xf32> to vector<1x2x1xf32>
    tpu.vector_store %arg12[%254, %c0_87, %c0_88], %257 {strides = array<i32>} : memref<8x2x1xf32, #tpu.memory_space<vmem>>, vector<1x2x1xf32>,
    %c3_i32 = arith.constant 3 : i32
    %258 = arith.index_cast %c3_i32 : i32 to index
    %c0_89 = arith.constant 0 : index
    %c0_90 = arith.constant 0 : index
    %259 = vector.load %arg1[%258, %c0_89, %c0_90] : memref<8x2x4xf32, #tpu.memory_space<vmem>>, vector<1x2x4xf32>
    %260 = vector.shape_cast %259 : vector<1x2x4xf32> to vector<2x4xf32>
    %cst_91 = arith.constant dense<0.000000e+00> : vector<2x96xf32>
    %261 = tpu.matmul %260, %0, %cst_91 {dimension_numbers = #tpu.dot_dimension_numbers<[1], [0], [0], [1], [0, 0, 1, 1], [], []>} : vector<2x4xf32>, vector<4x96xf32>, vector<2x96xf32> -> vector<2x96xf32>
    %262 = vector.broadcast %2 : vector<1x96xf32> to vector<2x96xf32>
    %263 = arith.addf %261, %262 : vector<2x96xf32>
    %cst_92 = arith.constant dense<0.000000e+00> : vector<2x96xf32>
    %264 = tpu.matmul %214, %1, %cst_92 {dimension_numbers = #tpu.dot_dimension_numbers<[1], [0], [0], [1], [0, 0, 1, 1], [], []>} : vector<2x32xf32>, vector<32x96xf32>, vector<2x96xf32> -> vector<2x96xf32>
    %265 = vector.broadcast %3 : vector<1x96xf32> to vector<2x96xf32>
    %266 = arith.addf %264, %265 : vector<2x96xf32>
    %267 = vector.extract_strided_slice %263 {offsets = [0, 0], sizes = [2, 32], strides = [1, 1]} : vector<2x96xf32> to vector<2x32xf32>
    %268 = vector.extract_strided_slice %266 {offsets = [0, 0], sizes = [2, 32], strides = [1, 1]} : vector<2x96xf32> to vector<2x32xf32>
    %269 = arith.addf %267, %268 : vector<2x32xf32>
    %cst_93 = arith.constant 0.000000e+00 : f32
    %270 = vector.broadcast %cst_93 : f32 to vector<2x32xf32>
    %271 = arith.subf %270, %269 : vector<2x32xf32>
    %272 = math.exp %271 : vector<2x32xf32>
    %cst_94 = arith.constant 1.000000e+00 : f32
    %273 = vector.broadcast %cst_94 : f32 to vector<2x32xf32>
    %274 = arith.addf %273, %272 : vector<2x32xf32>
    %cst_95 = arith.constant 1.000000e+00 : f32
    %275 = vector.broadcast %cst_95 : f32 to vector<2x32xf32>
    %276 = arith.divf %275, %274 : vector<2x32xf32>
    %277 = vector.extract_strided_slice %263 {offsets = [0, 32], sizes = [2, 32], strides = [1, 1]} : vector<2x96xf32> to vector<2x32xf32>
    %278 = vector.extract_strided_slice %266 {offsets = [0, 32], sizes = [2, 32], strides = [1, 1]} : vector<2x96xf32> to vector<2x32xf32>
    %279 = arith.addf %277, %278 : vector<2x32xf32>
    %cst_96 = arith.constant 0.000000e+00 : f32
    %280 = vector.broadcast %cst_96 : f32 to vector<2x32xf32>
    %281 = arith.subf %280, %279 : vector<2x32xf32>
    %282 = math.exp %281 : vector<2x32xf32>
    %cst_97 = arith.constant 1.000000e+00 : f32
    %283 = vector.broadcast %cst_97 : f32 to vector<2x32xf32>
    %284 = arith.addf %283, %282 : vector<2x32xf32>
    %cst_98 = arith.constant 1.000000e+00 : f32
    %285 = vector.broadcast %cst_98 : f32 to vector<2x32xf32>
    %286 = arith.divf %285, %284 : vector<2x32xf32>
    %287 = vector.extract_strided_slice %263 {offsets = [0, 64], sizes = [2, 32], strides = [1, 1]} : vector<2x96xf32> to vector<2x32xf32>
    %288 = vector.extract_strided_slice %266 {offsets = [0, 64], sizes = [2, 32], strides = [1, 1]} : vector<2x96xf32> to vector<2x32xf32>
    %289 = arith.mulf %276, %288 : vector<2x32xf32>
    %290 = arith.addf %287, %289 : vector<2x32xf32>
    %291 = math.tanh %290 : vector<2x32xf32>
    %cst_99 = arith.constant 1.000000e+00 : f32
    %292 = vector.broadcast %cst_99 : f32 to vector<2x32xf32>
    %293 = arith.subf %292, %286 : vector<2x32xf32>
    %294 = arith.mulf %293, %291 : vector<2x32xf32>
    %295 = arith.mulf %286, %214 : vector<2x32xf32>
    %296 = arith.addf %294, %295 : vector<2x32xf32>
    %cst_100 = arith.constant dense<0.000000e+00> : vector<2x96xf32>
    %297 = tpu.matmul %296, %4, %cst_100 {dimension_numbers = #tpu.dot_dimension_numbers<[1], [0], [0], [1], [0, 0, 1, 1], [], []>} : vector<2x32xf32>, vector<32x96xf32>, vector<2x96xf32> -> vector<2x96xf32>
    %298 = vector.broadcast %6 : vector<1x96xf32> to vector<2x96xf32>
    %299 = arith.addf %297, %298 : vector<2x96xf32>
    %cst_101 = arith.constant dense<0.000000e+00> : vector<2x96xf32>
    %300 = tpu.matmul %250, %5, %cst_101 {dimension_numbers = #tpu.dot_dimension_numbers<[1], [0], [0], [1], [0, 0, 1, 1], [], []>} : vector<2x32xf32>, vector<32x96xf32>, vector<2x96xf32> -> vector<2x96xf32>
    %301 = vector.broadcast %7 : vector<1x96xf32> to vector<2x96xf32>
    %302 = arith.addf %300, %301 : vector<2x96xf32>
    %303 = vector.extract_strided_slice %299 {offsets = [0, 0], sizes = [2, 32], strides = [1, 1]} : vector<2x96xf32> to vector<2x32xf32>
    %304 = vector.extract_strided_slice %302 {offsets = [0, 0], sizes = [2, 32], strides = [1, 1]} : vector<2x96xf32> to vector<2x32xf32>
    %305 = arith.addf %303, %304 : vector<2x32xf32>
    %cst_102 = arith.constant 0.000000e+00 : f32
    %306 = vector.broadcast %cst_102 : f32 to vector<2x32xf32>
    %307 = arith.subf %306, %305 : vector<2x32xf32>
    %308 = math.exp %307 : vector<2x32xf32>
    %cst_103 = arith.constant 1.000000e+00 : f32
    %309 = vector.broadcast %cst_103 : f32 to vector<2x32xf32>
    %310 = arith.addf %309, %308 : vector<2x32xf32>
    %cst_104 = arith.constant 1.000000e+00 : f32
    %311 = vector.broadcast %cst_104 : f32 to vector<2x32xf32>
    %312 = arith.divf %311, %310 : vector<2x32xf32>
    %313 = vector.extract_strided_slice %299 {offsets = [0, 32], sizes = [2, 32], strides = [1, 1]} : vector<2x96xf32> to vector<2x32xf32>
    %314 = vector.extract_strided_slice %302 {offsets = [0, 32], sizes = [2, 32], strides = [1, 1]} : vector<2x96xf32> to vector<2x32xf32>
    %315 = arith.addf %313, %314 : vector<2x32xf32>
    %cst_105 = arith.constant 0.000000e+00 : f32
    %316 = vector.broadcast %cst_105 : f32 to vector<2x32xf32>
    %317 = arith.subf %316, %315 : vector<2x32xf32>
    %318 = math.exp %317 : vector<2x32xf32>
    %cst_106 = arith.constant 1.000000e+00 : f32
    %319 = vector.broadcast %cst_106 : f32 to vector<2x32xf32>
    %320 = arith.addf %319, %318 : vector<2x32xf32>
    %cst_107 = arith.constant 1.000000e+00 : f32
    %321 = vector.broadcast %cst_107 : f32 to vector<2x32xf32>
    %322 = arith.divf %321, %320 : vector<2x32xf32>
    %323 = vector.extract_strided_slice %299 {offsets = [0, 64], sizes = [2, 32], strides = [1, 1]} : vector<2x96xf32> to vector<2x32xf32>
    %324 = vector.extract_strided_slice %302 {offsets = [0, 64], sizes = [2, 32], strides = [1, 1]} : vector<2x96xf32> to vector<2x32xf32>
    %325 = arith.mulf %312, %324 : vector<2x32xf32>
    %326 = arith.addf %323, %325 : vector<2x32xf32>
    %327 = math.tanh %326 : vector<2x32xf32>
    %cst_108 = arith.constant 1.000000e+00 : f32
    %328 = vector.broadcast %cst_108 : f32 to vector<2x32xf32>
    %329 = arith.subf %328, %322 : vector<2x32xf32>
    %330 = arith.mulf %329, %327 : vector<2x32xf32>
    %331 = arith.mulf %322, %250 : vector<2x32xf32>
    %332 = arith.addf %330, %331 : vector<2x32xf32>
    %cst_109 = arith.constant dense<0.000000e+00> : vector<2x1xf32>
    %333 = tpu.matmul %332, %8, %cst_109 {dimension_numbers = #tpu.dot_dimension_numbers<[1], [0], [0], [1], [0, 0, 1, 1], [], []>} : vector<2x32xf32>, vector<32x1xf32>, vector<2x1xf32> -> vector<2x1xf32>
    %334 = vector.broadcast %9 : vector<1x1xf32> to vector<2x1xf32>
    %335 = arith.addf %333, %334 : vector<2x1xf32>
    %336 = arith.index_cast %c3_i32 : i32 to index
    %c0_110 = arith.constant 0 : index
    %c0_111 = arith.constant 0 : index
    %337 = vector.load %arg12[%336, %c0_110, %c0_111] : memref<8x2x1xf32, #tpu.memory_space<vmem>>, vector<1x2x1xf32>
    %338 = vector.shape_cast %337 : vector<1x2x1xf32> to vector<2x1xf32>
    %339 = vector.shape_cast %335 : vector<2x1xf32> to vector<1x2x1xf32>
    tpu.vector_store %arg12[%336, %c0_110, %c0_111], %339 {strides = array<i32>} : memref<8x2x1xf32, #tpu.memory_space<vmem>>, vector<1x2x1xf32>,
    %c4_i32 = arith.constant 4 : i32
    %340 = arith.index_cast %c4_i32 : i32 to index
    %c0_112 = arith.constant 0 : index
    %c0_113 = arith.constant 0 : index
    %341 = vector.load %arg1[%340, %c0_112, %c0_113] : memref<8x2x4xf32, #tpu.memory_space<vmem>>, vector<1x2x4xf32>
    %342 = vector.shape_cast %341 : vector<1x2x4xf32> to vector<2x4xf32>
    %cst_114 = arith.constant dense<0.000000e+00> : vector<2x96xf32>
    %343 = tpu.matmul %342, %0, %cst_114 {dimension_numbers = #tpu.dot_dimension_numbers<[1], [0], [0], [1], [0, 0, 1, 1], [], []>} : vector<2x4xf32>, vector<4x96xf32>, vector<2x96xf32> -> vector<2x96xf32>
    %344 = vector.broadcast %2 : vector<1x96xf32> to vector<2x96xf32>
    %345 = arith.addf %343, %344 : vector<2x96xf32>
    %cst_115 = arith.constant dense<0.000000e+00> : vector<2x96xf32>
    %346 = tpu.matmul %296, %1, %cst_115 {dimension_numbers = #tpu.dot_dimension_numbers<[1], [0], [0], [1], [0, 0, 1, 1], [], []>} : vector<2x32xf32>, vector<32x96xf32>, vector<2x96xf32> -> vector<2x96xf32>
    %347 = vector.broadcast %3 : vector<1x96xf32> to vector<2x96xf32>
    %348 = arith.addf %346, %347 : vector<2x96xf32>
    %349 = vector.extract_strided_slice %345 {offsets = [0, 0], sizes = [2, 32], strides = [1, 1]} : vector<2x96xf32> to vector<2x32xf32>
    %350 = vector.extract_strided_slice %348 {offsets = [0, 0], sizes = [2, 32], strides = [1, 1]} : vector<2x96xf32> to vector<2x32xf32>
    %351 = arith.addf %349, %350 : vector<2x32xf32>
    %cst_116 = arith.constant 0.000000e+00 : f32
    %352 = vector.broadcast %cst_116 : f32 to vector<2x32xf32>
    %353 = arith.subf %352, %351 : vector<2x32xf32>
    %354 = math.exp %353 : vector<2x32xf32>
    %cst_117 = arith.constant 1.000000e+00 : f32
    %355 = vector.broadcast %cst_117 : f32 to vector<2x32xf32>
    %356 = arith.addf %355, %354 : vector<2x32xf32>
    %cst_118 = arith.constant 1.000000e+00 : f32
    %357 = vector.broadcast %cst_118 : f32 to vector<2x32xf32>
    %358 = arith.divf %357, %356 : vector<2x32xf32>
    %359 = vector.extract_strided_slice %345 {offsets = [0, 32], sizes = [2, 32], strides = [1, 1]} : vector<2x96xf32> to vector<2x32xf32>
    %360 = vector.extract_strided_slice %348 {offsets = [0, 32], sizes = [2, 32], strides = [1, 1]} : vector<2x96xf32> to vector<2x32xf32>
    %361 = arith.addf %359, %360 : vector<2x32xf32>
    %cst_119 = arith.constant 0.000000e+00 : f32
    %362 = vector.broadcast %cst_119 : f32 to vector<2x32xf32>
    %363 = arith.subf %362, %361 : vector<2x32xf32>
    %364 = math.exp %363 : vector<2x32xf32>
    %cst_120 = arith.constant 1.000000e+00 : f32
    %365 = vector.broadcast %cst_120 : f32 to vector<2x32xf32>
    %366 = arith.addf %365, %364 : vector<2x32xf32>
    %cst_121 = arith.constant 1.000000e+00 : f32
    %367 = vector.broadcast %cst_121 : f32 to vector<2x32xf32>
    %368 = arith.divf %367, %366 : vector<2x32xf32>
    %369 = vector.extract_strided_slice %345 {offsets = [0, 64], sizes = [2, 32], strides = [1, 1]} : vector<2x96xf32> to vector<2x32xf32>
    %370 = vector.extract_strided_slice %348 {offsets = [0, 64], sizes = [2, 32], strides = [1, 1]} : vector<2x96xf32> to vector<2x32xf32>
    %371 = arith.mulf %358, %370 : vector<2x32xf32>
    %372 = arith.addf %369, %371 : vector<2x32xf32>
    %373 = math.tanh %372 : vector<2x32xf32>
    %cst_122 = arith.constant 1.000000e+00 : f32
    %374 = vector.broadcast %cst_122 : f32 to vector<2x32xf32>
    %375 = arith.subf %374, %368 : vector<2x32xf32>
    %376 = arith.mulf %375, %373 : vector<2x32xf32>
    %377 = arith.mulf %368, %296 : vector<2x32xf32>
    %378 = arith.addf %376, %377 : vector<2x32xf32>
    %cst_123 = arith.constant dense<0.000000e+00> : vector<2x96xf32>
    %379 = tpu.matmul %378, %4, %cst_123 {dimension_numbers = #tpu.dot_dimension_numbers<[1], [0], [0], [1], [0, 0, 1, 1], [], []>} : vector<2x32xf32>, vector<32x96xf32>, vector<2x96xf32> -> vector<2x96xf32>
    %380 = vector.broadcast %6 : vector<1x96xf32> to vector<2x96xf32>
    %381 = arith.addf %379, %380 : vector<2x96xf32>
    %cst_124 = arith.constant dense<0.000000e+00> : vector<2x96xf32>
    %382 = tpu.matmul %332, %5, %cst_124 {dimension_numbers = #tpu.dot_dimension_numbers<[1], [0], [0], [1], [0, 0, 1, 1], [], []>} : vector<2x32xf32>, vector<32x96xf32>, vector<2x96xf32> -> vector<2x96xf32>
    %383 = vector.broadcast %7 : vector<1x96xf32> to vector<2x96xf32>
    %384 = arith.addf %382, %383 : vector<2x96xf32>
    %385 = vector.extract_strided_slice %381 {offsets = [0, 0], sizes = [2, 32], strides = [1, 1]} : vector<2x96xf32> to vector<2x32xf32>
    %386 = vector.extract_strided_slice %384 {offsets = [0, 0], sizes = [2, 32], strides = [1, 1]} : vector<2x96xf32> to vector<2x32xf32>
    %387 = arith.addf %385, %386 : vector<2x32xf32>
    %cst_125 = arith.constant 0.000000e+00 : f32
    %388 = vector.broadcast %cst_125 : f32 to vector<2x32xf32>
    %389 = arith.subf %388, %387 : vector<2x32xf32>
    %390 = math.exp %389 : vector<2x32xf32>
    %cst_126 = arith.constant 1.000000e+00 : f32
    %391 = vector.broadcast %cst_126 : f32 to vector<2x32xf32>
    %392 = arith.addf %391, %390 : vector<2x32xf32>
    %cst_127 = arith.constant 1.000000e+00 : f32
    %393 = vector.broadcast %cst_127 : f32 to vector<2x32xf32>
    %394 = arith.divf %393, %392 : vector<2x32xf32>
    %395 = vector.extract_strided_slice %381 {offsets = [0, 32], sizes = [2, 32], strides = [1, 1]} : vector<2x96xf32> to vector<2x32xf32>
    %396 = vector.extract_strided_slice %384 {offsets = [0, 32], sizes = [2, 32], strides = [1, 1]} : vector<2x96xf32> to vector<2x32xf32>
    %397 = arith.addf %395, %396 : vector<2x32xf32>
    %cst_128 = arith.constant 0.000000e+00 : f32
    %398 = vector.broadcast %cst_128 : f32 to vector<2x32xf32>
    %399 = arith.subf %398, %397 : vector<2x32xf32>
    %400 = math.exp %399 : vector<2x32xf32>
    %cst_129 = arith.constant 1.000000e+00 : f32
    %401 = vector.broadcast %cst_129 : f32 to vector<2x32xf32>
    %402 = arith.addf %401, %400 : vector<2x32xf32>
    %cst_130 = arith.constant 1.000000e+00 : f32
    %403 = vector.broadcast %cst_130 : f32 to vector<2x32xf32>
    %404 = arith.divf %403, %402 : vector<2x32xf32>
    %405 = vector.extract_strided_slice %381 {offsets = [0, 64], sizes = [2, 32], strides = [1, 1]} : vector<2x96xf32> to vector<2x32xf32>
    %406 = vector.extract_strided_slice %384 {offsets = [0, 64], sizes = [2, 32], strides = [1, 1]} : vector<2x96xf32> to vector<2x32xf32>
    %407 = arith.mulf %394, %406 : vector<2x32xf32>
    %408 = arith.addf %405, %407 : vector<2x32xf32>
    %409 = math.tanh %408 : vector<2x32xf32>
    %cst_131 = arith.constant 1.000000e+00 : f32
    %410 = vector.broadcast %cst_131 : f32 to vector<2x32xf32>
    %411 = arith.subf %410, %404 : vector<2x32xf32>
    %412 = arith.mulf %411, %409 : vector<2x32xf32>
    %413 = arith.mulf %404, %332 : vector<2x32xf32>
    %414 = arith.addf %412, %413 : vector<2x32xf32>
    %cst_132 = arith.constant dense<0.000000e+00> : vector<2x1xf32>
    %415 = tpu.matmul %414, %8, %cst_132 {dimension_numbers = #tpu.dot_dimension_numbers<[1], [0], [0], [1], [0, 0, 1, 1], [], []>} : vector<2x32xf32>, vector<32x1xf32>, vector<2x1xf32> -> vector<2x1xf32>
    %416 = vector.broadcast %9 : vector<1x1xf32> to vector<2x1xf32>
    %417 = arith.addf %415, %416 : vector<2x1xf32>
    %418 = arith.index_cast %c4_i32 : i32 to index
    %c0_133 = arith.constant 0 : index
    %c0_134 = arith.constant 0 : index
    %419 = vector.load %arg12[%418, %c0_133, %c0_134] : memref<8x2x1xf32, #tpu.memory_space<vmem>>, vector<1x2x1xf32>
    %420 = vector.shape_cast %419 : vector<1x2x1xf32> to vector<2x1xf32>
    %421 = vector.shape_cast %417 : vector<2x1xf32> to vector<1x2x1xf32>
    tpu.vector_store %arg12[%418, %c0_133, %c0_134], %421 {strides = array<i32>} : memref<8x2x1xf32, #tpu.memory_space<vmem>>, vector<1x2x1xf32>,
    %c5_i32 = arith.constant 5 : i32
    %422 = arith.index_cast %c5_i32 : i32 to index
    %c0_135 = arith.constant 0 : index
    %c0_136 = arith.constant 0 : index
    %423 = vector.load %arg1[%422, %c0_135, %c0_136] : memref<8x2x4xf32, #tpu.memory_space<vmem>>, vector<1x2x4xf32>
    %424 = vector.shape_cast %423 : vector<1x2x4xf32> to vector<2x4xf32>
    %cst_137 = arith.constant dense<0.000000e+00> : vector<2x96xf32>
    %425 = tpu.matmul %424, %0, %cst_137 {dimension_numbers = #tpu.dot_dimension_numbers<[1], [0], [0], [1], [0, 0, 1, 1], [], []>} : vector<2x4xf32>, vector<4x96xf32>, vector<2x96xf32> -> vector<2x96xf32>
    %426 = vector.broadcast %2 : vector<1x96xf32> to vector<2x96xf32>
    %427 = arith.addf %425, %426 : vector<2x96xf32>
    %cst_138 = arith.constant dense<0.000000e+00> : vector<2x96xf32>
    %428 = tpu.matmul %378, %1, %cst_138 {dimension_numbers = #tpu.dot_dimension_numbers<[1], [0], [0], [1], [0, 0, 1, 1], [], []>} : vector<2x32xf32>, vector<32x96xf32>, vector<2x96xf32> -> vector<2x96xf32>
    %429 = vector.broadcast %3 : vector<1x96xf32> to vector<2x96xf32>
    %430 = arith.addf %428, %429 : vector<2x96xf32>
    %431 = vector.extract_strided_slice %427 {offsets = [0, 0], sizes = [2, 32], strides = [1, 1]} : vector<2x96xf32> to vector<2x32xf32>
    %432 = vector.extract_strided_slice %430 {offsets = [0, 0], sizes = [2, 32], strides = [1, 1]} : vector<2x96xf32> to vector<2x32xf32>
    %433 = arith.addf %431, %432 : vector<2x32xf32>
    %cst_139 = arith.constant 0.000000e+00 : f32
    %434 = vector.broadcast %cst_139 : f32 to vector<2x32xf32>
    %435 = arith.subf %434, %433 : vector<2x32xf32>
    %436 = math.exp %435 : vector<2x32xf32>
    %cst_140 = arith.constant 1.000000e+00 : f32
    %437 = vector.broadcast %cst_140 : f32 to vector<2x32xf32>
    %438 = arith.addf %437, %436 : vector<2x32xf32>
    %cst_141 = arith.constant 1.000000e+00 : f32
    %439 = vector.broadcast %cst_141 : f32 to vector<2x32xf32>
    %440 = arith.divf %439, %438 : vector<2x32xf32>
    %441 = vector.extract_strided_slice %427 {offsets = [0, 32], sizes = [2, 32], strides = [1, 1]} : vector<2x96xf32> to vector<2x32xf32>
    %442 = vector.extract_strided_slice %430 {offsets = [0, 32], sizes = [2, 32], strides = [1, 1]} : vector<2x96xf32> to vector<2x32xf32>
    %443 = arith.addf %441, %442 : vector<2x32xf32>
    %cst_142 = arith.constant 0.000000e+00 : f32
    %444 = vector.broadcast %cst_142 : f32 to vector<2x32xf32>
    %445 = arith.subf %444, %443 : vector<2x32xf32>
    %446 = math.exp %445 : vector<2x32xf32>
    %cst_143 = arith.constant 1.000000e+00 : f32
    %447 = vector.broadcast %cst_143 : f32 to vector<2x32xf32>
    %448 = arith.addf %447, %446 : vector<2x32xf32>
    %cst_144 = arith.constant 1.000000e+00 : f32
    %449 = vector.broadcast %cst_144 : f32 to vector<2x32xf32>
    %450 = arith.divf %449, %448 : vector<2x32xf32>
    %451 = vector.extract_strided_slice %427 {offsets = [0, 64], sizes = [2, 32], strides = [1, 1]} : vector<2x96xf32> to vector<2x32xf32>
    %452 = vector.extract_strided_slice %430 {offsets = [0, 64], sizes = [2, 32], strides = [1, 1]} : vector<2x96xf32> to vector<2x32xf32>
    %453 = arith.mulf %440, %452 : vector<2x32xf32>
    %454 = arith.addf %451, %453 : vector<2x32xf32>
    %455 = math.tanh %454 : vector<2x32xf32>
    %cst_145 = arith.constant 1.000000e+00 : f32
    %456 = vector.broadcast %cst_145 : f32 to vector<2x32xf32>
    %457 = arith.subf %456, %450 : vector<2x32xf32>
    %458 = arith.mulf %457, %455 : vector<2x32xf32>
    %459 = arith.mulf %450, %378 : vector<2x32xf32>
    %460 = arith.addf %458, %459 : vector<2x32xf32>
    %cst_146 = arith.constant dense<0.000000e+00> : vector<2x96xf32>
    %461 = tpu.matmul %460, %4, %cst_146 {dimension_numbers = #tpu.dot_dimension_numbers<[1], [0], [0], [1], [0, 0, 1, 1], [], []>} : vector<2x32xf32>, vector<32x96xf32>, vector<2x96xf32> -> vector<2x96xf32>
    %462 = vector.broadcast %6 : vector<1x96xf32> to vector<2x96xf32>
    %463 = arith.addf %461, %462 : vector<2x96xf32>
    %cst_147 = arith.constant dense<0.000000e+00> : vector<2x96xf32>
    %464 = tpu.matmul %414, %5, %cst_147 {dimension_numbers = #tpu.dot_dimension_numbers<[1], [0], [0], [1], [0, 0, 1, 1], [], []>} : vector<2x32xf32>, vector<32x96xf32>, vector<2x96xf32> -> vector<2x96xf32>
    %465 = vector.broadcast %7 : vector<1x96xf32> to vector<2x96xf32>
    %466 = arith.addf %464, %465 : vector<2x96xf32>
    %467 = vector.extract_strided_slice %463 {offsets = [0, 0], sizes = [2, 32], strides = [1, 1]} : vector<2x96xf32> to vector<2x32xf32>
    %468 = vector.extract_strided_slice %466 {offsets = [0, 0], sizes = [2, 32], strides = [1, 1]} : vector<2x96xf32> to vector<2x32xf32>
    %469 = arith.addf %467, %468 : vector<2x32xf32>
    %cst_148 = arith.constant 0.000000e+00 : f32
    %470 = vector.broadcast %cst_148 : f32 to vector<2x32xf32>
    %471 = arith.subf %470, %469 : vector<2x32xf32>
    %472 = math.exp %471 : vector<2x32xf32>
    %cst_149 = arith.constant 1.000000e+00 : f32
    %473 = vector.broadcast %cst_149 : f32 to vector<2x32xf32>
    %474 = arith.addf %473, %472 : vector<2x32xf32>
    %cst_150 = arith.constant 1.000000e+00 : f32
    %475 = vector.broadcast %cst_150 : f32 to vector<2x32xf32>
    %476 = arith.divf %475, %474 : vector<2x32xf32>
    %477 = vector.extract_strided_slice %463 {offsets = [0, 32], sizes = [2, 32], strides = [1, 1]} : vector<2x96xf32> to vector<2x32xf32>
    %478 = vector.extract_strided_slice %466 {offsets = [0, 32], sizes = [2, 32], strides = [1, 1]} : vector<2x96xf32> to vector<2x32xf32>
    %479 = arith.addf %477, %478 : vector<2x32xf32>
    %cst_151 = arith.constant 0.000000e+00 : f32
    %480 = vector.broadcast %cst_151 : f32 to vector<2x32xf32>
    %481 = arith.subf %480, %479 : vector<2x32xf32>
    %482 = math.exp %481 : vector<2x32xf32>
    %cst_152 = arith.constant 1.000000e+00 : f32
    %483 = vector.broadcast %cst_152 : f32 to vector<2x32xf32>
    %484 = arith.addf %483, %482 : vector<2x32xf32>
    %cst_153 = arith.constant 1.000000e+00 : f32
    %485 = vector.broadcast %cst_153 : f32 to vector<2x32xf32>
    %486 = arith.divf %485, %484 : vector<2x32xf32>
    %487 = vector.extract_strided_slice %463 {offsets = [0, 64], sizes = [2, 32], strides = [1, 1]} : vector<2x96xf32> to vector<2x32xf32>
    %488 = vector.extract_strided_slice %466 {offsets = [0, 64], sizes = [2, 32], strides = [1, 1]} : vector<2x96xf32> to vector<2x32xf32>
    %489 = arith.mulf %476, %488 : vector<2x32xf32>
    %490 = arith.addf %487, %489 : vector<2x32xf32>
    %491 = math.tanh %490 : vector<2x32xf32>
    %cst_154 = arith.constant 1.000000e+00 : f32
    %492 = vector.broadcast %cst_154 : f32 to vector<2x32xf32>
    %493 = arith.subf %492, %486 : vector<2x32xf32>
    %494 = arith.mulf %493, %491 : vector<2x32xf32>
    %495 = arith.mulf %486, %414 : vector<2x32xf32>
    %496 = arith.addf %494, %495 : vector<2x32xf32>
    %cst_155 = arith.constant dense<0.000000e+00> : vector<2x1xf32>
    %497 = tpu.matmul %496, %8, %cst_155 {dimension_numbers = #tpu.dot_dimension_numbers<[1], [0], [0], [1], [0, 0, 1, 1], [], []>} : vector<2x32xf32>, vector<32x1xf32>, vector<2x1xf32> -> vector<2x1xf32>
    %498 = vector.broadcast %9 : vector<1x1xf32> to vector<2x1xf32>
    %499 = arith.addf %497, %498 : vector<2x1xf32>
    %500 = arith.index_cast %c5_i32 : i32 to index
    %c0_156 = arith.constant 0 : index
    %c0_157 = arith.constant 0 : index
    %501 = vector.load %arg12[%500, %c0_156, %c0_157] : memref<8x2x1xf32, #tpu.memory_space<vmem>>, vector<1x2x1xf32>
    %502 = vector.shape_cast %501 : vector<1x2x1xf32> to vector<2x1xf32>
    %503 = vector.shape_cast %499 : vector<2x1xf32> to vector<1x2x1xf32>
    tpu.vector_store %arg12[%500, %c0_156, %c0_157], %503 {strides = array<i32>} : memref<8x2x1xf32, #tpu.memory_space<vmem>>, vector<1x2x1xf32>,
    %c6_i32 = arith.constant 6 : i32
    %504 = arith.index_cast %c6_i32 : i32 to index
    %c0_158 = arith.constant 0 : index
    %c0_159 = arith.constant 0 : index
    %505 = vector.load %arg1[%504, %c0_158, %c0_159] : memref<8x2x4xf32, #tpu.memory_space<vmem>>, vector<1x2x4xf32>
    %506 = vector.shape_cast %505 : vector<1x2x4xf32> to vector<2x4xf32>
    %cst_160 = arith.constant dense<0.000000e+00> : vector<2x96xf32>
    %507 = tpu.matmul %506, %0, %cst_160 {dimension_numbers = #tpu.dot_dimension_numbers<[1], [0], [0], [1], [0, 0, 1, 1], [], []>} : vector<2x4xf32>, vector<4x96xf32>, vector<2x96xf32> -> vector<2x96xf32>
    %508 = vector.broadcast %2 : vector<1x96xf32> to vector<2x96xf32>
    %509 = arith.addf %507, %508 : vector<2x96xf32>
    %cst_161 = arith.constant dense<0.000000e+00> : vector<2x96xf32>
    %510 = tpu.matmul %460, %1, %cst_161 {dimension_numbers = #tpu.dot_dimension_numbers<[1], [0], [0], [1], [0, 0, 1, 1], [], []>} : vector<2x32xf32>, vector<32x96xf32>, vector<2x96xf32> -> vector<2x96xf32>
    %511 = vector.broadcast %3 : vector<1x96xf32> to vector<2x96xf32>
    %512 = arith.addf %510, %511 : vector<2x96xf32>
    %513 = vector.extract_strided_slice %509 {offsets = [0, 0], sizes = [2, 32], strides = [1, 1]} : vector<2x96xf32> to vector<2x32xf32>
    %514 = vector.extract_strided_slice %512 {offsets = [0, 0], sizes = [2, 32], strides = [1, 1]} : vector<2x96xf32> to vector<2x32xf32>
    %515 = arith.addf %513, %514 : vector<2x32xf32>
    %cst_162 = arith.constant 0.000000e+00 : f32
    %516 = vector.broadcast %cst_162 : f32 to vector<2x32xf32>
    %517 = arith.subf %516, %515 : vector<2x32xf32>
    %518 = math.exp %517 : vector<2x32xf32>
    %cst_163 = arith.constant 1.000000e+00 : f32
    %519 = vector.broadcast %cst_163 : f32 to vector<2x32xf32>
    %520 = arith.addf %519, %518 : vector<2x32xf32>
    %cst_164 = arith.constant 1.000000e+00 : f32
    %521 = vector.broadcast %cst_164 : f32 to vector<2x32xf32>
    %522 = arith.divf %521, %520 : vector<2x32xf32>
    %523 = vector.extract_strided_slice %509 {offsets = [0, 32], sizes = [2, 32], strides = [1, 1]} : vector<2x96xf32> to vector<2x32xf32>
    %524 = vector.extract_strided_slice %512 {offsets = [0, 32], sizes = [2, 32], strides = [1, 1]} : vector<2x96xf32> to vector<2x32xf32>
    %525 = arith.addf %523, %524 : vector<2x32xf32>
    %cst_165 = arith.constant 0.000000e+00 : f32
    %526 = vector.broadcast %cst_165 : f32 to vector<2x32xf32>
    %527 = arith.subf %526, %525 : vector<2x32xf32>
    %528 = math.exp %527 : vector<2x32xf32>
    %cst_166 = arith.constant 1.000000e+00 : f32
    %529 = vector.broadcast %cst_166 : f32 to vector<2x32xf32>
    %530 = arith.addf %529, %528 : vector<2x32xf32>
    %cst_167 = arith.constant 1.000000e+00 : f32
    %531 = vector.broadcast %cst_167 : f32 to vector<2x32xf32>
    %532 = arith.divf %531, %530 : vector<2x32xf32>
    %533 = vector.extract_strided_slice %509 {offsets = [0, 64], sizes = [2, 32], strides = [1, 1]} : vector<2x96xf32> to vector<2x32xf32>
    %534 = vector.extract_strided_slice %512 {offsets = [0, 64], sizes = [2, 32], strides = [1, 1]} : vector<2x96xf32> to vector<2x32xf32>
    %535 = arith.mulf %522, %534 : vector<2x32xf32>
    %536 = arith.addf %533, %535 : vector<2x32xf32>
    %537 = math.tanh %536 : vector<2x32xf32>
    %cst_168 = arith.constant 1.000000e+00 : f32
    %538 = vector.broadcast %cst_168 : f32 to vector<2x32xf32>
    %539 = arith.subf %538, %532 : vector<2x32xf32>
    %540 = arith.mulf %539, %537 : vector<2x32xf32>
    %541 = arith.mulf %532, %460 : vector<2x32xf32>
    %542 = arith.addf %540, %541 : vector<2x32xf32>
    %cst_169 = arith.constant dense<0.000000e+00> : vector<2x96xf32>
    %543 = tpu.matmul %542, %4, %cst_169 {dimension_numbers = #tpu.dot_dimension_numbers<[1], [0], [0], [1], [0, 0, 1, 1], [], []>} : vector<2x32xf32>, vector<32x96xf32>, vector<2x96xf32> -> vector<2x96xf32>
    %544 = vector.broadcast %6 : vector<1x96xf32> to vector<2x96xf32>
    %545 = arith.addf %543, %544 : vector<2x96xf32>
    %cst_170 = arith.constant dense<0.000000e+00> : vector<2x96xf32>
    %546 = tpu.matmul %496, %5, %cst_170 {dimension_numbers = #tpu.dot_dimension_numbers<[1], [0], [0], [1], [0, 0, 1, 1], [], []>} : vector<2x32xf32>, vector<32x96xf32>, vector<2x96xf32> -> vector<2x96xf32>
    %547 = vector.broadcast %7 : vector<1x96xf32> to vector<2x96xf32>
    %548 = arith.addf %546, %547 : vector<2x96xf32>
    %549 = vector.extract_strided_slice %545 {offsets = [0, 0], sizes = [2, 32], strides = [1, 1]} : vector<2x96xf32> to vector<2x32xf32>
    %550 = vector.extract_strided_slice %548 {offsets = [0, 0], sizes = [2, 32], strides = [1, 1]} : vector<2x96xf32> to vector<2x32xf32>
    %551 = arith.addf %549, %550 : vector<2x32xf32>
    %cst_171 = arith.constant 0.000000e+00 : f32
    %552 = vector.broadcast %cst_171 : f32 to vector<2x32xf32>
    %553 = arith.subf %552, %551 : vector<2x32xf32>
    %554 = math.exp %553 : vector<2x32xf32>
    %cst_172 = arith.constant 1.000000e+00 : f32
    %555 = vector.broadcast %cst_172 : f32 to vector<2x32xf32>
    %556 = arith.addf %555, %554 : vector<2x32xf32>
    %cst_173 = arith.constant 1.000000e+00 : f32
    %557 = vector.broadcast %cst_173 : f32 to vector<2x32xf32>
    %558 = arith.divf %557, %556 : vector<2x32xf32>
    %559 = vector.extract_strided_slice %545 {offsets = [0, 32], sizes = [2, 32], strides = [1, 1]} : vector<2x96xf32> to vector<2x32xf32>
    %560 = vector.extract_strided_slice %548 {offsets = [0, 32], sizes = [2, 32], strides = [1, 1]} : vector<2x96xf32> to vector<2x32xf32>
    %561 = arith.addf %559, %560 : vector<2x32xf32>
    %cst_174 = arith.constant 0.000000e+00 : f32
    %562 = vector.broadcast %cst_174 : f32 to vector<2x32xf32>
    %563 = arith.subf %562, %561 : vector<2x32xf32>
    %564 = math.exp %563 : vector<2x32xf32>
    %cst_175 = arith.constant 1.000000e+00 : f32
    %565 = vector.broadcast %cst_175 : f32 to vector<2x32xf32>
    %566 = arith.addf %565, %564 : vector<2x32xf32>
    %cst_176 = arith.constant 1.000000e+00 : f32
    %567 = vector.broadcast %cst_176 : f32 to vector<2x32xf32>
    %568 = arith.divf %567, %566 : vector<2x32xf32>
    %569 = vector.extract_strided_slice %545 {offsets = [0, 64], sizes = [2, 32], strides = [1, 1]} : vector<2x96xf32> to vector<2x32xf32>
    %570 = vector.extract_strided_slice %548 {offsets = [0, 64], sizes = [2, 32], strides = [1, 1]} : vector<2x96xf32> to vector<2x32xf32>
    %571 = arith.mulf %558, %570 : vector<2x32xf32>
    %572 = arith.addf %569, %571 : vector<2x32xf32>
    %573 = math.tanh %572 : vector<2x32xf32>
    %cst_177 = arith.constant 1.000000e+00 : f32
    %574 = vector.broadcast %cst_177 : f32 to vector<2x32xf32>
    %575 = arith.subf %574, %568 : vector<2x32xf32>
    %576 = arith.mulf %575, %573 : vector<2x32xf32>
    %577 = arith.mulf %568, %496 : vector<2x32xf32>
    %578 = arith.addf %576, %577 : vector<2x32xf32>
    %cst_178 = arith.constant dense<0.000000e+00> : vector<2x1xf32>
    %579 = tpu.matmul %578, %8, %cst_178 {dimension_numbers = #tpu.dot_dimension_numbers<[1], [0], [0], [1], [0, 0, 1, 1], [], []>} : vector<2x32xf32>, vector<32x1xf32>, vector<2x1xf32> -> vector<2x1xf32>
    %580 = vector.broadcast %9 : vector<1x1xf32> to vector<2x1xf32>
    %581 = arith.addf %579, %580 : vector<2x1xf32>
    %582 = arith.index_cast %c6_i32 : i32 to index
    %c0_179 = arith.constant 0 : index
    %c0_180 = arith.constant 0 : index
    %583 = vector.load %arg12[%582, %c0_179, %c0_180] : memref<8x2x1xf32, #tpu.memory_space<vmem>>, vector<1x2x1xf32>
    %584 = vector.shape_cast %583 : vector<1x2x1xf32> to vector<2x1xf32>
    %585 = vector.shape_cast %581 : vector<2x1xf32> to vector<1x2x1xf32>
    tpu.vector_store %arg12[%582, %c0_179, %c0_180], %585 {strides = array<i32>} : memref<8x2x1xf32, #tpu.memory_space<vmem>>, vector<1x2x1xf32>,
    %c7_i32 = arith.constant 7 : i32
    %586 = arith.index_cast %c7_i32 : i32 to index
    %c0_181 = arith.constant 0 : index
    %c0_182 = arith.constant 0 : index
    %587 = vector.load %arg1[%586, %c0_181, %c0_182] : memref<8x2x4xf32, #tpu.memory_space<vmem>>, vector<1x2x4xf32>
    %588 = vector.shape_cast %587 : vector<1x2x4xf32> to vector<2x4xf32>
    %cst_183 = arith.constant dense<0.000000e+00> : vector<2x96xf32>
    %589 = tpu.matmul %588, %0, %cst_183 {dimension_numbers = #tpu.dot_dimension_numbers<[1], [0], [0], [1], [0, 0, 1, 1], [], []>} : vector<2x4xf32>, vector<4x96xf32>, vector<2x96xf32> -> vector<2x96xf32>
    %590 = vector.broadcast %2 : vector<1x96xf32> to vector<2x96xf32>
    %591 = arith.addf %589, %590 : vector<2x96xf32>
    %cst_184 = arith.constant dense<0.000000e+00> : vector<2x96xf32>
    %592 = tpu.matmul %542, %1, %cst_184 {dimension_numbers = #tpu.dot_dimension_numbers<[1], [0], [0], [1], [0, 0, 1, 1], [], []>} : vector<2x32xf32>, vector<32x96xf32>, vector<2x96xf32> -> vector<2x96xf32>
    %593 = vector.broadcast %3 : vector<1x96xf32> to vector<2x96xf32>
    %594 = arith.addf %592, %593 : vector<2x96xf32>
    %595 = vector.extract_strided_slice %591 {offsets = [0, 0], sizes = [2, 32], strides = [1, 1]} : vector<2x96xf32> to vector<2x32xf32>
    %596 = vector.extract_strided_slice %594 {offsets = [0, 0], sizes = [2, 32], strides = [1, 1]} : vector<2x96xf32> to vector<2x32xf32>
    %597 = arith.addf %595, %596 : vector<2x32xf32>
    %cst_185 = arith.constant 0.000000e+00 : f32
    %598 = vector.broadcast %cst_185 : f32 to vector<2x32xf32>
    %599 = arith.subf %598, %597 : vector<2x32xf32>
    %600 = math.exp %599 : vector<2x32xf32>
    %cst_186 = arith.constant 1.000000e+00 : f32
    %601 = vector.broadcast %cst_186 : f32 to vector<2x32xf32>
    %602 = arith.addf %601, %600 : vector<2x32xf32>
    %cst_187 = arith.constant 1.000000e+00 : f32
    %603 = vector.broadcast %cst_187 : f32 to vector<2x32xf32>
    %604 = arith.divf %603, %602 : vector<2x32xf32>
    %605 = vector.extract_strided_slice %591 {offsets = [0, 32], sizes = [2, 32], strides = [1, 1]} : vector<2x96xf32> to vector<2x32xf32>
    %606 = vector.extract_strided_slice %594 {offsets = [0, 32], sizes = [2, 32], strides = [1, 1]} : vector<2x96xf32> to vector<2x32xf32>
    %607 = arith.addf %605, %606 : vector<2x32xf32>
    %cst_188 = arith.constant 0.000000e+00 : f32
    %608 = vector.broadcast %cst_188 : f32 to vector<2x32xf32>
    %609 = arith.subf %608, %607 : vector<2x32xf32>
    %610 = math.exp %609 : vector<2x32xf32>
    %cst_189 = arith.constant 1.000000e+00 : f32
    %611 = vector.broadcast %cst_189 : f32 to vector<2x32xf32>
    %612 = arith.addf %611, %610 : vector<2x32xf32>
    %cst_190 = arith.constant 1.000000e+00 : f32
    %613 = vector.broadcast %cst_190 : f32 to vector<2x32xf32>
    %614 = arith.divf %613, %612 : vector<2x32xf32>
    %615 = vector.extract_strided_slice %591 {offsets = [0, 64], sizes = [2, 32], strides = [1, 1]} : vector<2x96xf32> to vector<2x32xf32>
    %616 = vector.extract_strided_slice %594 {offsets = [0, 64], sizes = [2, 32], strides = [1, 1]} : vector<2x96xf32> to vector<2x32xf32>
    %617 = arith.mulf %604, %616 : vector<2x32xf32>
    %618 = arith.addf %615, %617 : vector<2x32xf32>
    %619 = math.tanh %618 : vector<2x32xf32>
    %cst_191 = arith.constant 1.000000e+00 : f32
    %620 = vector.broadcast %cst_191 : f32 to vector<2x32xf32>
    %621 = arith.subf %620, %614 : vector<2x32xf32>
    %622 = arith.mulf %621, %619 : vector<2x32xf32>
    %623 = arith.mulf %614, %542 : vector<2x32xf32>
    %624 = arith.addf %622, %623 : vector<2x32xf32>
    %cst_192 = arith.constant dense<0.000000e+00> : vector<2x96xf32>
    %625 = tpu.matmul %624, %4, %cst_192 {dimension_numbers = #tpu.dot_dimension_numbers<[1], [0], [0], [1], [0, 0, 1, 1], [], []>} : vector<2x32xf32>, vector<32x96xf32>, vector<2x96xf32> -> vector<2x96xf32>
    %626 = vector.broadcast %6 : vector<1x96xf32> to vector<2x96xf32>
    %627 = arith.addf %625, %626 : vector<2x96xf32>
    %cst_193 = arith.constant dense<0.000000e+00> : vector<2x96xf32>
    %628 = tpu.matmul %578, %5, %cst_193 {dimension_numbers = #tpu.dot_dimension_numbers<[1], [0], [0], [1], [0, 0, 1, 1], [], []>} : vector<2x32xf32>, vector<32x96xf32>, vector<2x96xf32> -> vector<2x96xf32>
    %629 = vector.broadcast %7 : vector<1x96xf32> to vector<2x96xf32>
    %630 = arith.addf %628, %629 : vector<2x96xf32>
    %631 = vector.extract_strided_slice %627 {offsets = [0, 0], sizes = [2, 32], strides = [1, 1]} : vector<2x96xf32> to vector<2x32xf32>
    %632 = vector.extract_strided_slice %630 {offsets = [0, 0], sizes = [2, 32], strides = [1, 1]} : vector<2x96xf32> to vector<2x32xf32>
    %633 = arith.addf %631, %632 : vector<2x32xf32>
    %cst_194 = arith.constant 0.000000e+00 : f32
    %634 = vector.broadcast %cst_194 : f32 to vector<2x32xf32>
    %635 = arith.subf %634, %633 : vector<2x32xf32>
    %636 = math.exp %635 : vector<2x32xf32>
    %cst_195 = arith.constant 1.000000e+00 : f32
    %637 = vector.broadcast %cst_195 : f32 to vector<2x32xf32>
    %638 = arith.addf %637, %636 : vector<2x32xf32>
    %cst_196 = arith.constant 1.000000e+00 : f32
    %639 = vector.broadcast %cst_196 : f32 to vector<2x32xf32>
    %640 = arith.divf %639, %638 : vector<2x32xf32>
    %641 = vector.extract_strided_slice %627 {offsets = [0, 32], sizes = [2, 32], strides = [1, 1]} : vector<2x96xf32> to vector<2x32xf32>
    %642 = vector.extract_strided_slice %630 {offsets = [0, 32], sizes = [2, 32], strides = [1, 1]} : vector<2x96xf32> to vector<2x32xf32>
    %643 = arith.addf %641, %642 : vector<2x32xf32>
    %cst_197 = arith.constant 0.000000e+00 : f32
    %644 = vector.broadcast %cst_197 : f32 to vector<2x32xf32>
    %645 = arith.subf %644, %643 : vector<2x32xf32>
    %646 = math.exp %645 : vector<2x32xf32>
    %cst_198 = arith.constant 1.000000e+00 : f32
    %647 = vector.broadcast %cst_198 : f32 to vector<2x32xf32>
    %648 = arith.addf %647, %646 : vector<2x32xf32>
    %cst_199 = arith.constant 1.000000e+00 : f32
    %649 = vector.broadcast %cst_199 : f32 to vector<2x32xf32>
    %650 = arith.divf %649, %648 : vector<2x32xf32>
    %651 = vector.extract_strided_slice %627 {offsets = [0, 64], sizes = [2, 32], strides = [1, 1]} : vector<2x96xf32> to vector<2x32xf32>
    %652 = vector.extract_strided_slice %630 {offsets = [0, 64], sizes = [2, 32], strides = [1, 1]} : vector<2x96xf32> to vector<2x32xf32>
    %653 = arith.mulf %640, %652 : vector<2x32xf32>
    %654 = arith.addf %651, %653 : vector<2x32xf32>
    %655 = math.tanh %654 : vector<2x32xf32>
    %cst_200 = arith.constant 1.000000e+00 : f32
    %656 = vector.broadcast %cst_200 : f32 to vector<2x32xf32>
    %657 = arith.subf %656, %650 : vector<2x32xf32>
    %658 = arith.mulf %657, %655 : vector<2x32xf32>
    %659 = arith.mulf %650, %578 : vector<2x32xf32>
    %660 = arith.addf %658, %659 : vector<2x32xf32>
    %cst_201 = arith.constant dense<0.000000e+00> : vector<2x1xf32>
    %661 = tpu.matmul %660, %8, %cst_201 {dimension_numbers = #tpu.dot_dimension_numbers<[1], [0], [0], [1], [0, 0, 1, 1], [], []>} : vector<2x32xf32>, vector<32x1xf32>, vector<2x1xf32> -> vector<2x1xf32>
    %662 = vector.broadcast %9 : vector<1x1xf32> to vector<2x1xf32>
    %663 = arith.addf %661, %662 : vector<2x1xf32>
    %664 = arith.index_cast %c7_i32 : i32 to index
    %c0_202 = arith.constant 0 : index
    %c0_203 = arith.constant 0 : index
    %665 = vector.load %arg12[%664, %c0_202, %c0_203] : memref<8x2x1xf32, #tpu.memory_space<vmem>>, vector<1x2x1xf32>
    %666 = vector.shape_cast %665 : vector<1x2x1xf32> to vector<2x1xf32>
    %667 = vector.shape_cast %663 : vector<2x1xf32> to vector<1x2x1xf32>
    tpu.vector_store %arg12[%664, %c0_202, %c0_203], %667 {strides = array<i32>} : memref<8x2x1xf32, #tpu.memory_space<vmem>>, vector<1x2x1xf32>,
    %c8_i32 = arith.constant 8 : i32
    return
  }
  func.func @transform_0(%arg0: i32) -> (i32, i32, i32) {
    %c0_i32 = arith.constant 0 : i32
    %c0_i32_0 = arith.constant 0 : i32
    %c0_i32_1 = arith.constant 0 : i32
    return %c0_i32, %arg0, %c0_i32_0 : i32, i32, i32
  }
  func.func @transform_1(%arg0: i32) -> (i32, i32) {
    %c0_i32 = arith.constant 0 : i32
    %c0_i32_0 = arith.constant 0 : i32
    %c0_i32_1 = arith.constant 0 : i32
    return %c0_i32, %c0_i32_0 : i32, i32
  }
  func.func @transform_2(%arg0: i32) -> (i32, i32) {
    %c0_i32 = arith.constant 0 : i32
    %c0_i32_0 = arith.constant 0 : i32
    %c0_i32_1 = arith.constant 0 : i32
    return %c0_i32, %c0_i32_0 : i32, i32
  }
  func.func @transform_3(%arg0: i32) -> (i32, i32) {
    %c0_i32 = arith.constant 0 : i32
    %c0_i32_0 = arith.constant 0 : i32
    %c0_i32_1 = arith.constant 0 : i32
    return %c0_i32, %c0_i32_0 : i32, i32
  }
  func.func @transform_4(%arg0: i32) -> (i32, i32) {
    %c0_i32 = arith.constant 0 : i32
    %c0_i32_0 = arith.constant 0 : i32
    %c0_i32_1 = arith.constant 0 : i32
    return %c0_i32, %c0_i32_0 : i32, i32
  }
  func.func @transform_5(%arg0: i32) -> (i32, i32) {
    %c0_i32 = arith.constant 0 : i32
    %c0_i32_0 = arith.constant 0 : i32
    %c0_i32_1 = arith.constant 0 : i32
    return %c0_i32, %c0_i32_0 : i32, i32
  }
  func.func @transform_6(%arg0: i32) -> (i32, i32) {
    %c0_i32 = arith.constant 0 : i32
    %c0_i32_0 = arith.constant 0 : i32
    %c0_i32_1 = arith.constant 0 : i32
    return %c0_i32, %c0_i32_0 : i32, i32
  }
  func.func @transform_7(%arg0: i32) -> (i32, i32) {
    %c0_i32 = arith.constant 0 : i32
    %c0_i32_0 = arith.constant 0 : i32
    %c0_i32_1 = arith.constant 0 : i32
    return %c0_i32, %c0_i32_0 : i32, i32
  }
  func.func @transform_8(%arg0: i32) -> (i32, i32) {
    %c0_i32 = arith.constant 0 : i32
    %c0_i32_0 = arith.constant 0 : i32
    %c0_i32_1 = arith.constant 0 : i32
    return %c0_i32, %c0_i32_0 : i32, i32
  }
  func.func @transform_9(%arg0: i32) -> (i32, i32) {
    %c0_i32 = arith.constant 0 : i32
    %c0_i32_0 = arith.constant 0 : i32
    %c0_i32_1 = arith.constant 0 : i32
    return %c0_i32, %c0_i32_0 : i32, i32
  }
  func.func @transform_10(%arg0: i32) -> (i32, i32) {
    %c0_i32 = arith.constant 0 : i32
    %c0_i32_0 = arith.constant 0 : i32
    %c0_i32_1 = arith.constant 0 : i32
    return %c0_i32, %c0_i32_0 : i32, i32
  }
  func.func @transform_11(%arg0: i32) -> (i32, i32, i32) {
    %c0_i32 = arith.constant 0 : i32
    %c0_i32_0 = arith.constant 0 : i32
    %c0_i32_1 = arith.constant 0 : i32
    return %c0_i32, %arg0, %c0_i32_0 : i32, i32, i32
  }
}

</mosaic_0001>

<llo_original>
// kernel: regression_gru_forward.1
$region0: #{regression_gru_forward.1}
  #allocation0 [shape = 'u32[]', space=smem, size = 0x4, offset = 0x4, fixed_abs, tag = 'smem constant byte address 0x4 - core index']
  #allocation1 [shape = 'u32[144,128]{1,0:T(1,128)}', space=vmem, size = 0x12000, scoped, tag = 'internal scratch']
  #allocation2 [shape = 'f32[1,1]{1,0:T(1,128)S(1)}', space=vmem, size = 0x200, scoped, tag = 'scoped memory for regression_gru_forward.1']
  %s0 = inlined_call_operand.vmem [shape: f32[8,2,4], index: 0, kind: input, shape index: {}]
  %s1 = inlined_call_operand.vmem [shape: f32[4,96], index: 1, kind: input, shape index: {}]
  %s2 = inlined_call_operand.vmem [shape: f32[32,96], index: 2, kind: input, shape index: {}]
  %s3 = inlined_call_operand.hbm [shape: f32[1,96], index: 3, kind: input, shape index: {}]
  %s4 = inlined_call_operand.hbm [shape: f32[1,96], index: 4, kind: input, shape index: {}]
  %s5 = inlined_call_operand.vmem [shape: f32[32,96], index: 5, kind: input, shape index: {}]
  %s6 = inlined_call_operand.hbm [shape: f32[32,96], index: 6, kind: input, shape index: {}]
  %s7 = inlined_call_operand.hbm [shape: f32[1,96], index: 7, kind: input, shape index: {}]
  %s8 = inlined_call_operand.hbm [shape: f32[1,96], index: 8, kind: input, shape index: {}]
  %s9 = inlined_call_operand.vmem [shape: f32[32,1], index: 9, kind: input, shape index: {}]
  %s10 = inlined_call_operand.<no memory space> [shape: f32[1,1], index: 10, kind: input, shape index: {}]
  %s11 = inlined_call_operand.vmem [shape: f32[8,2,1], index: 11, kind: output, shape index: {}]
  %s12 = sld [smem:[#allocation0]]
  $region74: #{regression_gru_forward.1} parent=0
    _
  %s14 = ssub.s32 1, %s12
  %s15 = scalar_select 0, %s14, %s12
  %v16 = vstv %s10
  %17 = vst [vmem:[#allocation2] sm:$0x1] %v16
  $region1: #{regression_gru_forward.1} parent=0
    #allocation3 [shape = 'u8[512]{0}', space=vmem, size = 0x400, scoped, tag = 'input window, operand 3, single buffered']
    #allocation4 [shape = 's32[1]{0}', space=sflag, size = 0x4, scoped, tag = 'scoped memory for regression_gru_forward.1']
    #allocation5 [shape = 'u8[512]{0}', space=vmem, size = 0x400, scoped, tag = 'input window, operand 4, single buffered']
    #allocation6 [shape = 's32[1]{0}', space=sflag, size = 0x4, scoped, tag = 'scoped memory for regression_gru_forward.1']
    #allocation7 [shape = 'u8[16384]{0}', space=vmem, size = 0x4000, scoped, tag = 'input window, operand 6, single buffered']
    #allocation8 [shape = 'u8[512]{0}', space=vmem, size = 0x400, scoped, tag = 'input window, operand 7, single buffered']
    #allocation9 [shape = 's32[1]{0}', space=sflag, size = 0x4, scoped, tag = 'scoped memory for regression_gru_forward.1']
    #allocation10 [shape = 'u8[512]{0}', space=vmem, size = 0x400, scoped, tag = 'input window, operand 8, single buffered']
    %18 = vsyncpa [#allocation4], 0
    %19 = vsyncpa [#allocation6], 0
    %20 = vsyncpa [#allocation9], 0
    // Predicated region
    $region2: #{regression_gru_forward.1} parent=1 // pred_check
      _
    $region3: #{regression_gru_forward.1} parent=1 // pred_check_branch
      %22 = sbr.rel (0) target = $region5
    $region4: #{regression_gru_forward.1} parent=1 // pred_region
      _
    $region5: #{regression_gru_forward.1} parent=1 // pred_fallthru
      _
    // Predicated region
    $region6: #{regression_gru_forward.1} parent=1 // pred_check
      _
    $region7: #{regression_gru_forward.1} parent=1 // pred_check_branch
      %24 = sbr.rel (0) target = $region9
    $region8: #{regression_gru_forward.1} parent=1 // pred_region
      _
    $region9: #{regression_gru_forward.1} parent=1 // pred_fallthru
      _
    // Predicated region
    $region10: #{regression_gru_forward.1} parent=1 // pred_check
      _
    $region11: #{regression_gru_forward.1} parent=1 // pred_check_branch
      %26 = sbr.rel (0) target = $region13
    $region12: #{regression_gru_forward.1} parent=1 // pred_region
      _
    $region13: #{regression_gru_forward.1} parent=1 // pred_fallthru
      _
    // Predicated region
    $region14: #{regression_gru_forward.1} parent=1 // pred_check
      _
    $region15: #{regression_gru_forward.1} parent=1 // pred_check_branch
      %28 = sbr.rel (0) target = $region17
    $region16: #{regression_gru_forward.1} parent=1 // pred_region
      %s30 = ssub.s32 16, 16
      %31 = vsyncadd [#allocation4], %s30
      %s33 = sshll.u32 [#allocation3], 4
      %s34 = int_to_ptr.vmem [resolvable:$true] %s33
      %36 = dma.hbm_to_vmem [thread:$0]  %s3, 16, %s34, [#allocation4]
    $region17: #{regression_gru_forward.1} parent=1 // pred_fallthru
      _
    // Predicated region
    $region18: #{regression_gru_forward.1} parent=1 // pred_check
      _
    $region19: #{regression_gru_forward.1} parent=1 // pred_check_branch
      %38 = sbr.rel (0) target = $region21
    $region20: #{regression_gru_forward.1} parent=1 // pred_region
      %s40 = ssub.s32 16, 16
      %41 = vsyncadd [#allocation6], %s40
      %s43 = sshll.u32 [#allocation5], 4
      %s44 = int_to_ptr.vmem [resolvable:$true] %s43
      %46 = dma.hbm_to_vmem [thread:$0]  %s4, 16, %s44, [#allocation6]
    $region21: #{regression_gru_forward.1} parent=1 // pred_fallthru
      _
    // Predicated region
    $region22: #{regression_gru_forward.1} parent=1 // pred_check
      _
    $region23: #{regression_gru_forward.1} parent=1 // pred_check_branch
      %48 = sbr.rel (0) target = $region25
    $region24: #{regression_gru_forward.1} parent=1 // pred_region
      _
    $region25: #{regression_gru_forward.1} parent=1 // pred_fallthru
      _
    // Predicated region
    $region26: #{regression_gru_forward.1} parent=1 // pred_check
      _
    $region27: #{regression_gru_forward.1} parent=1 // pred_check_branch
      %50 = sbr.rel (0) target = $region29
    $region28: #{regression_gru_forward.1} parent=1 // pred_region
      %s52 = ssub.s32 512, 512
      %53 = vsyncadd [#allocation6], %s52
      %s54 = sshll.u32 [#allocation7], 4
      %s55 = int_to_ptr.vmem [resolvable:$true] %s54
      %60 = dma.hbm_to_vmem [thread:$0]  %s6, 512, %s55, [#allocation6], 128, 128, 8
    $region29: #{regression_gru_forward.1} parent=1 // pred_fallthru
      _
    // Predicated region
    $region30: #{regression_gru_forward.1} parent=1 // pred_check
      _
    $region31: #{regression_gru_forward.1} parent=1 // pred_check_branch
      %62 = sbr.rel (0) target = $region33
    $region32: #{regression_gru_forward.1} parent=1 // pred_region
      %s64 = ssub.s32 16, 16
      %65 = vsyncadd [#allocation9], %s64
      %s67 = sshll.u32 [#allocation8], 4
      %s68 = int_to_ptr.vmem [resolvable:$true] %s67
      %70 = dma.hbm_to_vmem [thread:$0]  %s7, 16, %s68, [#allocation9]
    $region33: #{regression_gru_forward.1} parent=1 // pred_fallthru
      _
    // Predicated region
    $region34: #{regression_gru_forward.1} parent=1 // pred_check
      _
    $region35: #{regression_gru_forward.1} parent=1 // pred_check_branch
      %72 = sbr.rel (0) target = $region37
    $region36: #{regression_gru_forward.1} parent=1 // pred_region
      %s74 = ssub.s32 16, 16
      %75 = vsyncadd [#allocation9], %s74
      %s77 = sshll.u32 [#allocation10], 4
      %s78 = int_to_ptr.vmem [resolvable:$true] %s77
      %80 = dma.hbm_to_vmem [thread:$0]  %s8, 16, %s78, [#allocation9]
    $region37: #{regression_gru_forward.1} parent=1 // pred_fallthru
      _
    // Predicated region
    $region38: #{regression_gru_forward.1} parent=1 // pred_check
      _
    $region39: #{regression_gru_forward.1} parent=1 // pred_check_branch
      %82 = sbr.rel (0) target = $region41
    $region40: #{regression_gru_forward.1} parent=1 // pred_region
      _
    $region41: #{regression_gru_forward.1} parent=1 // pred_fallthru
      _
    // Predicated region
    $region42: #{regression_gru_forward.1} parent=1 // pred_check
      _
    $region43: #{regression_gru_forward.1} parent=1 // pred_check_branch
      %84 = sbr.rel (0) target = $region45
    $region44: #{regression_gru_forward.1} parent=1 // pred_region
      _
    $region45: #{regression_gru_forward.1} parent=1 // pred_fallthru
      _
    // Predicated region
    $region46: #{regression_gru_forward.1} parent=1 // pred_check
      _
    $region47: #{regression_gru_forward.1} parent=1 // pred_check_branch
      %86 = sbr.rel (0) target = $region49
    $region48: #{regression_gru_forward.1} parent=1 // pred_region
      %87 = dma.done [#allocation4], 16
    $region49: #{regression_gru_forward.1} parent=1 // pred_fallthru
      _
    // Predicated region
    $region50: #{regression_gru_forward.1} parent=1 // pred_check
      _
    $region51: #{regression_gru_forward.1} parent=1 // pred_check_branch
      %89 = sbr.rel (0) target = $region53
    $region52: #{regression_gru_forward.1} parent=1 // pred_region
      %90 = dma.done [#allocation6], 16
    $region53: #{regression_gru_forward.1} parent=1 // pred_fallthru
      _
    // Predicated region
    $region54: #{regression_gru_forward.1} parent=1 // pred_check
      _
    $region55: #{regression_gru_forward.1} parent=1 // pred_check_branch
      %92 = sbr.rel (0) target = $region57
    $region56: #{regression_gru_forward.1} parent=1 // pred_region
      %93 = dma.done [#allocation6], 512
    $region57: #{regression_gru_forward.1} parent=1 // pred_fallthru
      _
    // Predicated region
    $region58: #{regression_gru_forward.1} parent=1 // pred_check
      _
    $region59: #{regression_gru_forward.1} parent=1 // pred_check_branch
      %95 = sbr.rel (0) target = $region61
    $region60: #{regression_gru_forward.1} parent=1 // pred_region
      %96 = dma.done [#allocation9], 16
    $region61: #{regression_gru_forward.1} parent=1 // pred_fallthru
      _
    // Predicated region
    $region62: #{regression_gru_forward.1} parent=1 // pred_check
      _
    $region63: #{regression_gru_forward.1} parent=1 // pred_check_branch
      %98 = sbr.rel (0) target = $region65
    $region64: #{regression_gru_forward.1} parent=1 // pred_region
      %99 = dma.done [#allocation9], 16
    $region65: #{regression_gru_forward.1} parent=1 // pred_fallthru
      _
    %v100 = vld [vmem:[%s1] sm:$0xf]
    %v101 = vld [vmem:[%s2] sm:$0xff]
    %v102 = vld [vmem:[%s2 + $0x8] sm:$0xff]
    %v103 = vld [vmem:[%s2 + $0x10] sm:$0xff]
    %v104 = vld [vmem:[%s2 + $0x18] sm:$0xff]
    %v105 = vld [vmem:[#allocation3] sm:$0x1]
    %v106 = vld [vmem:[#allocation5] sm:$0x1]
    %v107 = vld [vmem:[%s5] sm:$0xff]
    %v108 = vld [vmem:[%s5 + $0x8] sm:$0xff]
    %v109 = vld [vmem:[%s5 + $0x10] sm:$0xff]
    %v110 = vld [vmem:[%s5 + $0x18] sm:$0xff]
    %v111 = vld [vmem:[#allocation7] sm:$0xff]
    %v112 = vld [vmem:[#allocation7 + $0x8] sm:$0xff]
    %v113 = vld [vmem:[#allocation7 + $0x10] sm:$0xff]
    %v114 = vld [vmem:[#allocation7 + $0x18] sm:$0xff]
    %v115 = vld [vmem:[#allocation8] sm:$0x1]
    %v116 = vld [vmem:[#allocation10] sm:$0x1]
    %v117 = vld [vmem:[%s9] sm:$0xff]
    %v118 = vld [vmem:[%s9 + $0x8] sm:$0xff]
    %v119 = vld [vmem:[%s9 + $0x10] sm:$0xff]
    %v120 = vld [vmem:[%s9 + $0x18] sm:$0xff]
    %v121 = vld [vmem:[#allocation2] sm:$0x1]
    %v122 = vld [vmem:[%s0] sm:$0x3]
    %v124 = vlaneseq
    %v125 = vshrl.u32 %v124, 7
    %v126 = vsub.s32 0, %v125
    %v127 = vrot.slane %v105, %v126
    %vm129 = vcmask 31744
    %v131 = vsel %vm129, %v122, 0
    %vm133 = vcmask 1043456
    %v135 = vsel %vm133, %v100, 0
    %137 = vmatprep.subr.mxu0 0.0
    %138 = vmatpush1.msra.mxu0 0.0
    %139 = vmatprep.subr.mxu0 0.0
    %140 = vmatpush1.msra.mxu0 0.0
    %141 = vmatprep.subr.mxu0 0.0
    %142 = vmatpush1.msra.mxu0 0.0
    %143 = vmatprep.subr.mxu0 0.0
    %144 = vmatpush1.msra.mxu0 0.0
    %145 = vmatprep.subr.mxu0 0.0
    %146 = vmatpush1.msra.mxu0 0.0
    %147 = vmatprep.subr.mxu0 0.0
    %148 = vmatpush1.msra.mxu0 0.0
    %149 = vmatprep.subr.mxu0 0.0
    %150 = vmatpush1.msra.mxu0 0.0
    %151 = vmatprep.subr.mxu0 0.0
    %152 = vmatpush1.msra.mxu0 0.0
    %153 = vmatprep.subr.mxu0 0.0
    %154 = vmatpush1.msra.mxu0 0.0
    %155 = vmatprep.subr.mxu0 0.0
    %156 = vmatpush1.msra.mxu0 0.0
    %157 = vmatprep.subr.mxu0 0.0
    %158 = vmatpush1.msra.mxu0 0.0
    %159 = vmatprep.subr.mxu0 0.0
    %160 = vmatpush1.msra.mxu0 0.0
    %161 = vmatprep.subr.mxu0 0.0
    %162 = vmatpush1.msra.mxu0 0.0
    %163 = vmatprep.subr.mxu0 0.0
    %164 = vmatpush1.msra.mxu0 0.0
    %165 = vmatprep.subr.mxu0 0.0
    %166 = vmatpush1.msra.mxu0 0.0
    %167 = vmatprep.subr.mxu0 0.0
    %168 = vmatpush1.msra.mxu0 %v135
    %169 = vmatprep.subr.mxu0 0.0
    %170 = vmatpush2.msra.mxu0 0.0
    %171 = vmatprep.subr.mxu0 0.0
    %172 = vmatpush2.msra.mxu0 0.0
    %173 = vmatprep.subr.mxu0 0.0
    %174 = vmatpush2.msra.mxu0 0.0
    %175 = vmatprep.subr.mxu0 0.0
    %176 = vmatpush2.msra.mxu0 0.0
    %177 = vmatprep.subr.mxu0 0.0
    %178 = vmatpush2.msra.mxu0 0.0
    %179 = vmatprep.subr.mxu0 0.0
    %180 = vmatpush2.msra.mxu0 0.0
    %181 = vmatprep.subr.mxu0 0.0
    %182 = vmatpush2.msra.mxu0 0.0
    %183 = vmatprep.subr.mxu0 0.0
    %184 = vmatpush2.msra.mxu0 0.0
    %185 = vmatprep.subr.mxu0 0.0
    %186 = vmatpush2.msra.mxu0 0.0
    %187 = vmatprep.subr.mxu0 0.0
    %188 = vmatpush2.msra.mxu0 0.0
    %189 = vmatprep.subr.mxu0 0.0
    %190 = vmatpush2.msra.mxu0 0.0
    %191 = vmatprep.subr.mxu0 0.0
    %192 = vmatpush2.msra.mxu0 0.0
    %193 = vmatprep.subr.mxu0 0.0
    %194 = vmatpush2.msra.mxu0 0.0
    %195 = vmatprep.subr.mxu0 0.0
    %196 = vmatpush2.msra.mxu0 0.0
    %197 = vmatprep.subr.mxu0 0.0
    %198 = vmatpush2.msra.mxu0 0.0
    %199 = vmatprep.subr.mxu0 0.0
    %200 = vmatpush2.msra.mxu0 0.0
    %201 = vmatprep.mubr.f32.mxu0 0.0
    %202 = vmatmul.mubr.f32.gmra.mxu0 %v131
    %v203 = vpop.f32.mrf.mxu0
    %v204 = vadd.f32 %v127, %v203
    %v205 = vpop.f32.mrf.mxu0
    %206 = vdwg.mxu0
    %v208 = vlaneseq
    %v209 = vshrl.u32 %v208, 7
    %v210 = vsub.s32 0, %v209
    %v211 = vrot.slane %v106, %v210
    %vm213 = vcmask 261120
    %v215 = vsel %vm213, 0.0, 0
    %217 = vmatprep.subr.mxu0 0.0
    %218 = vmatpush1.msra.mxu0 0.0
    %219 = vmatprep.subr.mxu0 0.0
    %220 = vmatpush1.msra.mxu0 0.0
    %221 = vmatprep.subr.mxu0 0.0
    %222 = vmatpush1.msra.mxu0 0.0
    %223 = vmatprep.subr.mxu0 0.0
    %224 = vmatpush1.msra.mxu0 0.0
    %225 = vmatprep.subr.mxu0 0.0
    %226 = vmatpush1.msra.mxu0 0.0
    %227 = vmatprep.subr.mxu0 0.0
    %228 = vmatpush1.msra.mxu0 0.0
    %229 = vmatprep.subr.mxu0 0.0
    %230 = vmatpush1.msra.mxu0 0.0
    %231 = vmatprep.subr.mxu0 0.0
    %232 = vmatpush1.msra.mxu0 0.0
    %233 = vmatprep.subr.mxu0 0.0
    %234 = vmatpush1.msra.mxu0 0.0
    %235 = vmatprep.subr.mxu0 0.0
    %236 = vmatpush1.msra.mxu0 0.0
    %237 = vmatprep.subr.mxu0 0.0
    %238 = vmatpush1.msra.mxu0 0.0
    %239 = vmatprep.subr.mxu0 0.0
    %240 = vmatpush1.msra.mxu0 0.0
    %241 = vmatprep.subr.mxu0 0.0
    %242 = vmatpush1.msra.mxu0 %v104
    %243 = vmatprep.subr.mxu0 0.0
    %244 = vmatpush1.msra.mxu0 %v103
    %245 = vmatprep.subr.mxu0 0.0
    %246 = vmatpush1.msra.mxu0 %v102
    %247 = vmatprep.subr.mxu0 0.0
    %248 = vmatpush1.msra.mxu0 %v101
    %249 = vmatprep.subr.mxu0 0.0
    %250 = vmatpush2.msra.mxu0 0.0
    %251 = vmatprep.subr.mxu0 0.0
    %252 = vmatpush2.msra.mxu0 0.0
    %253 = vmatprep.subr.mxu0 0.0
    %254 = vmatpush2.msra.mxu0 0.0
    %255 = vmatprep.subr.mxu0 0.0
    %256 = vmatpush2.msra.mxu0 0.0
    %257 = vmatprep.subr.mxu0 0.0
    %258 = vmatpush2.msra.mxu0 0.0
    %259 = vmatprep.subr.mxu0 0.0
    %260 = vmatpush2.msra.mxu0 0.0
    %261 = vmatprep.subr.mxu0 0.0
    %262 = vmatpush2.msra.mxu0 0.0
    %263 = vmatprep.subr.mxu0 0.0
    %264 = vmatpush2.msra.mxu0 0.0
    %265 = vmatprep.subr.mxu0 0.0
    %266 = vmatpush2.msra.mxu0 0.0
    %267 = vmatprep.subr.mxu0 0.0
    %268 = vmatpush2.msra.mxu0 0.0
    %269 = vmatprep.subr.mxu0 0.0
    %270 = vmatpush2.msra.mxu0 0.0
    %271 = vmatprep.subr.mxu0 0.0
    %272 = vmatpush2.msra.mxu0 0.0
    %273 = vmatprep.subr.mxu0 0.0
    %274 = vmatpush2.msra.mxu0 0.0
    %275 = vmatprep.subr.mxu0 0.0
    %276 = vmatpush2.msra.mxu0 0.0
    %277 = vmatprep.subr.mxu0 0.0
    %278 = vmatpush2.msra.mxu0 0.0
    %279 = vmatprep.subr.mxu0 0.0
    %280 = vmatpush2.msra.mxu0 0.0
    %281 = vmatprep.mubr.f32.mxu0 0.0
    %282 = vmatmul.mubr.f32.gmra.mxu0 %v215
    %v283 = vpop.f32.mrf.mxu0
    %v284 = vadd.f32 %v211, %v283
    %v285 = vpop.f32.mrf.mxu0
    %286 = vdwg.mxu0
    %v287 = vadd.f32 %v204, %v284
    %v288 = vsub.f32 0.0, %v287
    %v289 = vmul.f32 %v288, 1.442695
    %v290 = vpow.pop %v289
    %v291 = vadd.f32 %v290, 1.0
    %v292 = vrcp.pop %v291
    %v293 = vmul.f32 1.0, %v292
    %295 = vrot.lane.b32.xlu0 %v284, 64
    %v296 = vpop.permute.xlu0 %295
    %v298 = vmul.f32 %v293, %v296
    %300 = vrot.lane.b32.xlu0 %v298, 64
    %v301 = vpop.permute.xlu0 %300
    %v303 = vadd.f32 %v204, %v301
    %v304 = vtanh.pop %v303
    %v305 = vsub.f32 1.0, %v293
    %307 = vrot.lane.b32.xlu0 %v304, 96
    %v308 = vpop.permute.xlu0 %307
    %v310 = vmul.f32 %v305, %v308
    %v311 = vmul.f32 %v293, 0.0
    %v312 = vadd.f32 %v310, %v311
    %v314 = vlaneseq
    %v315 = vshrl.u32 %v314, 7
    %v316 = vsub.s32 0, %v315
    %v317 = vrot.slane %v115, %v316
    %320 = vrot.lane.b32.xlu0 %v312, 96
    %v321 = vpop.permute.xlu0 %320
    %v322 = vsel %vm213, %v321, 0
    %324 = vmatprep.subr.mxu0 0.0
    %325 = vmatpush1.msra.mxu0 0.0
    %326 = vmatprep.subr.mxu0 0.0
    %327 = vmatpush1.msra.mxu0 0.0
    %328 = vmatprep.subr.mxu0 0.0
    %329 = vmatpush1.msra.mxu0 0.0
    %330 = vmatprep.subr.mxu0 0.0
    %331 = vmatpush1.msra.mxu0 0.0
    %332 = vmatprep.subr.mxu0 0.0
    %333 = vmatpush1.msra.mxu0 0.0
    %334 = vmatprep.subr.mxu0 0.0
    %335 = vmatpush1.msra.mxu0 0.0
    %336 = vmatprep.subr.mxu0 0.0
    %337 = vmatpush1.msra.mxu0 0.0
    %338 = vmatprep.subr.mxu0 0.0
    %339 = vmatpush1.msra.mxu0 0.0
    %340 = vmatprep.subr.mxu0 0.0
    %341 = vmatpush1.msra.mxu0 0.0
    %342 = vmatprep.subr.mxu0 0.0
    %343 = vmatpush1.msra.mxu0 0.0
    %344 = vmatprep.subr.mxu0 0.0
    %345 = vmatpush1.msra.mxu0 0.0
    %346 = vmatprep.subr.mxu0 0.0
    %347 = vmatpush1.msra.mxu0 0.0
    %348 = vmatprep.subr.mxu0 0.0
    %349 = vmatpush1.msra.mxu0 %v110
    %350 = vmatprep.subr.mxu0 0.0
    %351 = vmatpush1.msra.mxu0 %v109
    %352 = vmatprep.subr.mxu0 0.0
    %353 = vmatpush1.msra.mxu0 %v108
    %354 = vmatprep.subr.mxu0 0.0
    %355 = vmatpush1.msra.mxu0 %v107
    %356 = vmatprep.subr.mxu0 0.0
    %357 = vmatpush2.msra.mxu0 0.0
    %358 = vmatprep.subr.mxu0 0.0
    %359 = vmatpush2.msra.mxu0 0.0
    %360 = vmatprep.subr.mxu0 0.0
    %361 = vmatpush2.msra.mxu0 0.0
    %362 = vmatprep.subr.mxu0 0.0
    %363 = vmatpush2.msra.mxu0 0.0
    %364 = vmatprep.subr.mxu0 0.0
    %365 = vmatpush2.msra.mxu0 0.0
    %366 = vmatprep.subr.mxu0 0.0
    %367 = vmatpush2.msra.mxu0 0.0
    %368 = vmatprep.subr.mxu0 0.0
    %369 = vmatpush2.msra.mxu0 0.0
    %370 = vmatprep.subr.mxu0 0.0
    %371 = vmatpush2.msra.mxu0 0.0
    %372 = vmatprep.subr.mxu0 0.0
    %373 = vmatpush2.msra.mxu0 0.0
    %374 = vmatprep.subr.mxu0 0.0
    %375 = vmatpush2.msra.mxu0 0.0
    %376 = vmatprep.subr.mxu0 0.0
    %377 = vmatpush2.msra.mxu0 0.0
    %378 = vmatprep.subr.mxu0 0.0
    %379 = vmatpush2.msra.mxu0 0.0
    %380 = vmatprep.subr.mxu0 0.0
    %381 = vmatpush2.msra.mxu0 0.0
    %382 = vmatprep.subr.mxu0 0.0
    %383 = vmatpush2.msra.mxu0 0.0
    %384 = vmatprep.subr.mxu0 0.0
    %385 = vmatpush2.msra.mxu0 0.0
    %386 = vmatprep.subr.mxu0 0.0
    %387 = vmatpush2.msra.mxu0 0.0
    %388 = vmatprep.mubr.f32.mxu0 0.0
    %389 = vmatmul.mubr.f32.gmra.mxu0 %v322
    %v390 = vpop.f32.mrf.mxu0
    %v391 = vadd.f32 %v317, %v390
    %v392 = vpop.f32.mrf.mxu0
    %393 = vdwg.mxu0
    %v395 = vlaneseq
    %v396 = vshrl.u32 %v395, 7
    %v397 = vsub.s32 0, %v396
    %v398 = vrot.slane %v116, %v397
    %400 = vmatprep.subr.mxu0 0.0
    %401 = vmatpush1.msra.mxu0 0.0
    %402 = vmatprep.subr.mxu0 0.0
    %403 = vmatpush1.msra.mxu0 0.0
    %404 = vmatprep.subr.mxu0 0.0
    %405 = vmatpush1.msra.mxu0 0.0
    %406 = vmatprep.subr.mxu0 0.0
    %407 = vmatpush1.msra.mxu0 0.0
    %408 = vmatprep.subr.mxu0 0.0
    %409 = vmatpush1.msra.mxu0 0.0
    %410 = vmatprep.subr.mxu0 0.0
    %411 = vmatpush1.msra.mxu0 0.0
    %412 = vmatprep.subr.mxu0 0.0
    %413 = vmatpush1.msra.mxu0 0.0
    %414 = vmatprep.subr.mxu0 0.0
    %415 = vmatpush1.msra.mxu0 0.0
    %416 = vmatprep.subr.mxu0 0.0
    %417 = vmatpush1.msra.mxu0 0.0
    %418 = vmatprep.subr.mxu0 0.0
    %419 = vmatpush1.msra.mxu0 0.0
    %420 = vmatprep.subr.mxu0 0.0
    %421 = vmatpush1.msra.mxu0 0.0
    %422 = vmatprep.subr.mxu0 0.0
    %423 = vmatpush1.msra.mxu0 0.0
    %424 = vmatprep.subr.mxu0 0.0
    %425 = vmatpush1.msra.mxu0 %v114
    %426 = vmatprep.subr.mxu0 0.0
    %427 = vmatpush1.msra.mxu0 %v113
    %428 = vmatprep.subr.mxu0 0.0
    %429 = vmatpush1.msra.mxu0 %v112
    %430 = vmatprep.subr.mxu0 0.0
    %431 = vmatpush1.msra.mxu0 %v111
    %432 = vmatprep.subr.mxu0 0.0
    %433 = vmatpush2.msra.mxu0 0.0
    %434 = vmatprep.subr.mxu0 0.0
    %435 = vmatpush2.msra.mxu0 0.0
    %436 = vmatprep.subr.mxu0 0.0
    %437 = vmatpush2.msra.mxu0 0.0
    %438 = vmatprep.subr.mxu0 0.0
    %439 = vmatpush2.msra.mxu0 0.0
    %440 = vmatprep.subr.mxu0 0.0
    %441 = vmatpush2.msra.mxu0 0.0
    %442 = vmatprep.subr.mxu0 0.0
    %443 = vmatpush2.msra.mxu0 0.0
    %444 = vmatprep.subr.mxu0 0.0
    %445 = vmatpush2.msra.mxu0 0.0
    %446 = vmatprep.subr.mxu0 0.0
    %447 = vmatpush2.msra.mxu0 0.0
    %448 = vmatprep.subr.mxu0 0.0
    %449 = vmatpush2.msra.mxu0 0.0
    %450 = vmatprep.subr.mxu0 0.0
    %451 = vmatpush2.msra.mxu0 0.0
    %452 = vmatprep.subr.mxu0 0.0
    %453 = vmatpush2.msra.mxu0 0.0
    %454 = vmatprep.subr.mxu0 0.0
    %455 = vmatpush2.msra.mxu0 0.0
    %456 = vmatprep.subr.mxu0 0.0
    %457 = vmatpush2.msra.mxu0 0.0
    %458 = vmatprep.subr.mxu0 0.0
    %459 = vmatpush2.msra.mxu0 0.0
    %460 = vmatprep.subr.mxu0 0.0
    %461 = vmatpush2.msra.mxu0 0.0
    %462 = vmatprep.subr.mxu0 0.0
    %463 = vmatpush2.msra.mxu0 0.0
    %464 = vmatprep.mubr.f32.mxu0 0.0
    %465 = vmatmul.mubr.f32.gmra.mxu0 %v215
    %v466 = vpop.f32.mrf.mxu0
    %v467 = vadd.f32 %v398, %v466
    %v468 = vpop.f32.mrf.mxu0
    %469 = vdwg.mxu0
    %v470 = vadd.f32 %v391, %v467
    %v471 = vsub.f32 0.0, %v470
    %v472 = vmul.f32 %v471, 1.442695
    %v473 = vpow.pop %v472
    %v474 = vadd.f32 %v473, 1.0
    %v475 = vrcp.pop %v474
    %v476 = vmul.f32 1.0, %v475
    %478 = vrot.lane.b32.xlu0 %v467, 64
    %v479 = vpop.permute.xlu0 %478
    %v481 = vmul.f32 %v476, %v479
    %483 = vrot.lane.b32.xlu0 %v481, 64
    %v484 = vpop.permute.xlu0 %483
    %v486 = vadd.f32 %v391, %v484
    %v487 = vtanh.pop %v486
    %v488 = vsub.f32 1.0, %v476
    %490 = vrot.lane.b32.xlu0 %v487, 96
    %v491 = vpop.permute.xlu0 %490
    %v493 = vmul.f32 %v488, %v491
    %v494 = vmul.f32 %v476, 0.0
    %v495 = vadd.f32 %v493, %v494
    %v497 = vlaneseq
    %v498 = vshrl.u32 %v497, 7
    %v499 = vsub.s32 0, %v498
    %v500 = vrot.slane %v121, %v499
    %503 = vrot.lane.b32.xlu0 %v495, 96
    %v504 = vpop.permute.xlu0 %503
    %v505 = vsel %vm213, %v504, 0
    %507 = vmatprep.subr.mxu0 0.0
    %508 = vmatpush1.msra.mxu0 0.0
    %509 = vmatprep.subr.mxu0 0.0
    %510 = vmatpush1.msra.mxu0 0.0
    %511 = vmatprep.subr.mxu0 0.0
    %512 = vmatpush1.msra.mxu0 0.0
    %513 = vmatprep.subr.mxu0 0.0
    %514 = vmatpush1.msra.mxu0 0.0
    %515 = vmatprep.subr.mxu0 0.0
    %516 = vmatpush1.msra.mxu0 0.0
    %517 = vmatprep.subr.mxu0 0.0
    %518 = vmatpush1.msra.mxu0 0.0
    %519 = vmatprep.subr.mxu0 0.0
    %520 = vmatpush1.msra.mxu0 0.0
    %521 = vmatprep.subr.mxu0 0.0
    %522 = vmatpush1.msra.mxu0 0.0
    %523 = vmatprep.subr.mxu0 0.0
    %524 = vmatpush1.msra.mxu0 0.0
    %525 = vmatprep.subr.mxu0 0.0
    %526 = vmatpush1.msra.mxu0 0.0
    %527 = vmatprep.subr.mxu0 0.0
    %528 = vmatpush1.msra.mxu0 0.0
    %529 = vmatprep.subr.mxu0 0.0
    %530 = vmatpush1.msra.mxu0 0.0
    %531 = vmatprep.subr.mxu0 0.0
    %532 = vmatpush1.msra.mxu0 %v120
    %533 = vmatprep.subr.mxu0 0.0
    %534 = vmatpush1.msra.mxu0 %v119
    %535 = vmatprep.subr.mxu0 0.0
    %536 = vmatpush1.msra.mxu0 %v118
    %537 = vmatprep.subr.mxu0 0.0
    %538 = vmatpush1.msra.mxu0 %v117
    %539 = vmatprep.subr.mxu0 0.0
    %540 = vmatpush2.msra.mxu0 0.0
    %541 = vmatprep.subr.mxu0 0.0
    %542 = vmatpush2.msra.mxu0 0.0
    %543 = vmatprep.subr.mxu0 0.0
    %544 = vmatpush2.msra.mxu0 0.0
    %545 = vmatprep.subr.mxu0 0.0
    %546 = vmatpush2.msra.mxu0 0.0
    %547 = vmatprep.subr.mxu0 0.0
    %548 = vmatpush2.msra.mxu0 0.0
    %549 = vmatprep.subr.mxu0 0.0
    %550 = vmatpush2.msra.mxu0 0.0
    %551 = vmatprep.subr.mxu0 0.0
    %552 = vmatpush2.msra.mxu0 0.0
    %553 = vmatprep.subr.mxu0 0.0
    %554 = vmatpush2.msra.mxu0 0.0
    %555 = vmatprep.subr.mxu0 0.0
    %556 = vmatpush2.msra.mxu0 0.0
    %557 = vmatprep.subr.mxu0 0.0
    %558 = vmatpush2.msra.mxu0 0.0
    %559 = vmatprep.subr.mxu0 0.0
    %560 = vmatpush2.msra.mxu0 0.0
    %561 = vmatprep.subr.mxu0 0.0
    %562 = vmatpush2.msra.mxu0 0.0
    %563 = vmatprep.subr.mxu0 0.0
    %564 = vmatpush2.msra.mxu0 0.0
    %565 = vmatprep.subr.mxu0 0.0
    %566 = vmatpush2.msra.mxu0 0.0
    %567 = vmatprep.subr.mxu0 0.0
    %568 = vmatpush2.msra.mxu0 0.0
    %569 = vmatprep.subr.mxu0 0.0
    %570 = vmatpush2.msra.mxu0 0.0
    %571 = vmatprep.mubr.f32.mxu0 0.0
    %572 = vmatmul.mubr.f32.gmra.mxu0 %v505
    %v573 = vpop.f32.mrf.mxu0
    %v574 = vadd.f32 %v500, %v573
    %v575 = vpop.f32.mrf.mxu0
    %576 = vdwg.mxu0
    %vm577 = vcmask 1024
    %578 = vst.msk [vmem:[%s11] sm:$0x3] %vm577, %v574
    %s579 = scalar_lea.vmem %s0, 2
    %v580 = vld [vmem:[%s579] sm:$0x3]
    %v582 = vsel %vm129, %v580, 0
    %584 = vmatprep.subr.mxu0 0.0
    %585 = vmatpush1.msra.mxu0 0.0
    %586 = vmatprep.subr.mxu0 0.0
    %587 = vmatpush1.msra.mxu0 0.0
    %588 = vmatprep.subr.mxu0 0.0
    %589 = vmatpush1.msra.mxu0 0.0
    %590 = vmatprep.subr.mxu0 0.0
    %591 = vmatpush1.msra.mxu0 0.0
    %592 = vmatprep.subr.mxu0 0.0
    %593 = vmatpush1.msra.mxu0 0.0
    %594 = vmatprep.subr.mxu0 0.0
    %595 = vmatpush1.msra.mxu0 0.0
    %596 = vmatprep.subr.mxu0 0.0
    %597 = vmatpush1.msra.mxu0 0.0
    %598 = vmatprep.subr.mxu0 0.0
    %599 = vmatpush1.msra.mxu0 0.0
    %600 = vmatprep.subr.mxu0 0.0
    %601 = vmatpush1.msra.mxu0 0.0
    %602 = vmatprep.subr.mxu0 0.0
    %603 = vmatpush1.msra.mxu0 0.0
    %604 = vmatprep.subr.mxu0 0.0
    %605 = vmatpush1.msra.mxu0 0.0
    %606 = vmatprep.subr.mxu0 0.0
    %607 = vmatpush1.msra.mxu0 0.0
    %608 = vmatprep.subr.mxu0 0.0
    %609 = vmatpush1.msra.mxu0 0.0
    %610 = vmatprep.subr.mxu0 0.0
    %611 = vmatpush1.msra.mxu0 0.0
    %612 = vmatprep.subr.mxu0 0.0
    %613 = vmatpush1.msra.mxu0 0.0
    %614 = vmatprep.subr.mxu0 0.0
    %615 = vmatpush1.msra.mxu0 %v135
    %616 = vmatprep.subr.mxu0 0.0
    %617 = vmatpush2.msra.mxu0 0.0
    %618 = vmatprep.subr.mxu0 0.0
    %619 = vmatpush2.msra.mxu0 0.0
    %620 = vmatprep.subr.mxu0 0.0
    %621 = vmatpush2.msra.mxu0 0.0
    %622 = vmatprep.subr.mxu0 0.0
    %623 = vmatpush2.msra.mxu0 0.0
    %624 = vmatprep.subr.mxu0 0.0
    %625 = vmatpush2.msra.mxu0 0.0
    %626 = vmatprep.subr.mxu0 0.0
    %627 = vmatpush2.msra.mxu0 0.0
    %628 = vmatprep.subr.mxu0 0.0
    %629 = vmatpush2.msra.mxu0 0.0
    %630 = vmatprep.subr.mxu0 0.0
    %631 = vmatpush2.msra.mxu0 0.0
    %632 = vmatprep.subr.mxu0 0.0
    %633 = vmatpush2.msra.mxu0 0.0
    %634 = vmatprep.subr.mxu0 0.0
    %635 = vmatpush2.msra.mxu0 0.0
    %636 = vmatprep.subr.mxu0 0.0
    %637 = vmatpush2.msra.mxu0 0.0
    %638 = vmatprep.subr.mxu0 0.0
    %639 = vmatpush2.msra.mxu0 0.0
    %640 = vmatprep.subr.mxu0 0.0
    %641 = vmatpush2.msra.mxu0 0.0
    %642 = vmatprep.subr.mxu0 0.0
    %643 = vmatpush2.msra.mxu0 0.0
    %644 = vmatprep.subr.mxu0 0.0
    %645 = vmatpush2.msra.mxu0 0.0
    %646 = vmatprep.subr.mxu0 0.0
    %647 = vmatpush2.msra.mxu0 0.0
    %648 = vmatprep.mubr.f32.mxu0 0.0
    %649 = vmatmul.mubr.f32.gmra.mxu0 %v582
    %v650 = vpop.f32.mrf.mxu0
    %v651 = vadd.f32 %v127, %v650
    %v652 = vpop.f32.mrf.mxu0
    %653 = vdwg.mxu0
    %654 = vmatprep.subr.mxu0 0.0
    %655 = vmatpush1.msra.mxu0 0.0
    %656 = vmatprep.subr.mxu0 0.0
    %657 = vmatpush1.msra.mxu0 0.0
    %658 = vmatprep.subr.mxu0 0.0
    %659 = vmatpush1.msra.mxu0 0.0
    %660 = vmatprep.subr.mxu0 0.0
    %661 = vmatpush1.msra.mxu0 0.0
    %662 = vmatprep.subr.mxu0 0.0
    %663 = vmatpush1.msra.mxu0 0.0
    %664 = vmatprep.subr.mxu0 0.0
    %665 = vmatpush1.msra.mxu0 0.0
    %666 = vmatprep.subr.mxu0 0.0
    %667 = vmatpush1.msra.mxu0 0.0
    %668 = vmatprep.subr.mxu0 0.0
    %669 = vmatpush1.msra.mxu0 0.0
    %670 = vmatprep.subr.mxu0 0.0
    %671 = vmatpush1.msra.mxu0 0.0
    %672 = vmatprep.subr.mxu0 0.0
    %673 = vmatpush1.msra.mxu0 0.0
    %674 = vmatprep.subr.mxu0 0.0
    %675 = vmatpush1.msra.mxu0 0.0
    %676 = vmatprep.subr.mxu0 0.0
    %677 = vmatpush1.msra.mxu0 0.0
    %678 = vmatprep.subr.mxu0 0.0
    %679 = vmatpush1.msra.mxu0 %v104
    %680 = vmatprep.subr.mxu0 0.0
    %681 = vmatpush1.msra.mxu0 %v103
    %682 = vmatprep.subr.mxu0 0.0
    %683 = vmatpush1.msra.mxu0 %v102
    %684 = vmatprep.subr.mxu0 0.0
    %685 = vmatpush1.msra.mxu0 %v101
    %686 = vmatprep.subr.mxu0 0.0
    %687 = vmatpush2.msra.mxu0 0.0
    %688 = vmatprep.subr.mxu0 0.0
    %689 = vmatpush2.msra.mxu0 0.0
    %690 = vmatprep.subr.mxu0 0.0
    %691 = vmatpush2.msra.mxu0 0.0
    %692 = vmatprep.subr.mxu0 0.0
    %693 = vmatpush2.msra.mxu0 0.0
    %694 = vmatprep.subr.mxu0 0.0
    %695 = vmatpush2.msra.mxu0 0.0
    %696 = vmatprep.subr.mxu0 0.0
    %697 = vmatpush2.msra.mxu0 0.0
    %698 = vmatprep.subr.mxu0 0.0
    %699 = vmatpush2.msra.mxu0 0.0
    %700 = vmatprep.subr.mxu0 0.0
    %701 = vmatpush2.msra.mxu0 0.0
    %702 = vmatprep.subr.mxu0 0.0
    %703 = vmatpush2.msra.mxu0 0.0
    %704 = vmatprep.subr.mxu0 0.0
    %705 = vmatpush2.msra.mxu0 0.0
    %706 = vmatprep.subr.mxu0 0.0
    %707 = vmatpush2.msra.mxu0 0.0
    %708 = vmatprep.subr.mxu0 0.0
    %709 = vmatpush2.msra.mxu0 0.0
    %710 = vmatprep.subr.mxu0 0.0
    %711 = vmatpush2.msra.mxu0 0.0
    %712 = vmatprep.subr.mxu0 0.0
    %713 = vmatpush2.msra.mxu0 0.0
    %714 = vmatprep.subr.mxu0 0.0
    %715 = vmatpush2.msra.mxu0 0.0
    %716 = vmatprep.subr.mxu0 0.0
    %717 = vmatpush2.msra.mxu0 0.0
    %718 = vmatprep.mubr.f32.mxu0 0.0
    %719 = vmatmul.mubr.f32.gmra.mxu0 %v322
    %v720 = vpop.f32.mrf.mxu0
    %v721 = vadd.f32 %v211, %v720
    %v722 = vpop.f32.mrf.mxu0
    %723 = vdwg.mxu0
    %v724 = vadd.f32 %v651, %v721
    %v725 = vsub.f32 0.0, %v724
    %v726 = vmul.f32 %v725, 1.442695
    %v727 = vpow.pop %v726
    %v728 = vadd.f32 %v727, 1.0
    %v729 = vrcp.pop %v728
    %v730 = vmul.f32 1.0, %v729
    %732 = vrot.lane.b32.xlu0 %v721, 64
    %v733 = vpop.permute.xlu0 %732
    %v735 = vmul.f32 %v730, %v733
    %737 = vrot.lane.b32.xlu0 %v735, 64
    %v738 = vpop.permute.xlu0 %737
    %v740 = vadd.f32 %v651, %v738
    %v741 = vtanh.pop %v740
    %v742 = vsub.f32 1.0, %v730
    %744 = vrot.lane.b32.xlu0 %v741, 96
    %v745 = vpop.permute.xlu0 %744
    %v747 = vmul.f32 %v742, %v745
    %v748 = vmul.f32 %v730, %v312
    %v749 = vadd.f32 %v747, %v748
    %751 = vrot.lane.b32.xlu0 %v749, 96
    %v752 = vpop.permute.xlu0 %751
    %v753 = vsel %vm213, %v752, 0
    %755 = vmatprep.subr.mxu0 0.0
    %756 = vmatpush1.msra.mxu0 0.0
    %757 = vmatprep.subr.mxu0 0.0
    %758 = vmatpush1.msra.mxu0 0.0
    %759 = vmatprep.subr.mxu0 0.0
    %760 = vmatpush1.msra.mxu0 0.0
    %761 = vmatprep.subr.mxu0 0.0
    %762 = vmatpush1.msra.mxu0 0.0
    %763 = vmatprep.subr.mxu0 0.0
    %764 = vmatpush1.msra.mxu0 0.0
    %765 = vmatprep.subr.mxu0 0.0
    %766 = vmatpush1.msra.mxu0 0.0
    %767 = vmatprep.subr.mxu0 0.0
    %768 = vmatpush1.msra.mxu0 0.0
    %769 = vmatprep.subr.mxu0 0.0
    %770 = vmatpush1.msra.mxu0 0.0
    %771 = vmatprep.subr.mxu0 0.0
    %772 = vmatpush1.msra.mxu0 0.0
    %773 = vmatprep.subr.mxu0 0.0
    %774 = vmatpush1.msra.mxu0 0.0
    %775 = vmatprep.subr.mxu0 0.0
    %776 = vmatpush1.msra.mxu0 0.0
    %777 = vmatprep.subr.mxu0 0.0
    %778 = vmatpush1.msra.mxu0 0.0
    %779 = vmatprep.subr.mxu0 0.0
    %780 = vmatpush1.msra.mxu0 %v110
    %781 = vmatprep.subr.mxu0 0.0
    %782 = vmatpush1.msra.mxu0 %v109
    %783 = vmatprep.subr.mxu0 0.0
    %784 = vmatpush1.msra.mxu0 %v108
    %785 = vmatprep.subr.mxu0 0.0
    %786 = vmatpush1.msra.mxu0 %v107
    %787 = vmatprep.subr.mxu0 0.0
    %788 = vmatpush2.msra.mxu0 0.0
    %789 = vmatprep.subr.mxu0 0.0
    %790 = vmatpush2.msra.mxu0 0.0
    %791 = vmatprep.subr.mxu0 0.0
    %792 = vmatpush2.msra.mxu0 0.0
    %793 = vmatprep.subr.mxu0 0.0
    %794 = vmatpush2.msra.mxu0 0.0
    %795 = vmatprep.subr.mxu0 0.0
    %796 = vmatpush2.msra.mxu0 0.0
    %797 = vmatprep.subr.mxu0 0.0
    %798 = vmatpush2.msra.mxu0 0.0
    %799 = vmatprep.subr.mxu0 0.0
    %800 = vmatpush2.msra.mxu0 0.0
    %801 = vmatprep.subr.mxu0 0.0
    %802 = vmatpush2.msra.mxu0 0.0
    %803 = vmatprep.subr.mxu0 0.0
    %804 = vmatpush2.msra.mxu0 0.0
    %805 = vmatprep.subr.mxu0 0.0
    %806 = vmatpush2.msra.mxu0 0.0
    %807 = vmatprep.subr.mxu0 0.0
    %808 = vmatpush2.msra.mxu0 0.0
    %809 = vmatprep.subr.mxu0 0.0
    %810 = vmatpush2.msra.mxu0 0.0
    %811 = vmatprep.subr.mxu0 0.0
    %812 = vmatpush2.msra.mxu0 0.0
    %813 = vmatprep.subr.mxu0 0.0
    %814 = vmatpush2.msra.mxu0 0.0
    %815 = vmatprep.subr.mxu0 0.0
    %816 = vmatpush2.msra.mxu0 0.0
    %817 = vmatprep.subr.mxu0 0.0
    %818 = vmatpush2.msra.mxu0 0.0
    %819 = vmatprep.mubr.f32.mxu0 0.0
    %820 = vmatmul.mubr.f32.gmra.mxu0 %v753
    %v821 = vpop.f32.mrf.mxu0
    %v822 = vadd.f32 %v317, %v821
    %v823 = vpop.f32.mrf.mxu0
    %824 = vdwg.mxu0
    %825 = vmatprep.subr.mxu0 0.0
    %826 = vmatpush1.msra.mxu0 0.0
    %827 = vmatprep.subr.mxu0 0.0
    %828 = vmatpush1.msra.mxu0 0.0
    %829 = vmatprep.subr.mxu0 0.0
    %830 = vmatpush1.msra.mxu0 0.0
    %831 = vmatprep.subr.mxu0 0.0
    %832 = vmatpush1.msra.mxu0 0.0
    %833 = vmatprep.subr.mxu0 0.0
    %834 = vmatpush1.msra.mxu0 0.0
    %835 = vmatprep.subr.mxu0 0.0
    %836 = vmatpush1.msra.mxu0 0.0
    %837 = vmatprep.subr.mxu0 0.0
    %838 = vmatpush1.msra.mxu0 0.0
    %839 = vmatprep.subr.mxu0 0.0
    %840 = vmatpush1.msra.mxu0 0.0
    %841 = vmatprep.subr.mxu0 0.0
    %842 = vmatpush1.msra.mxu0 0.0
    %843 = vmatprep.subr.mxu0 0.0
    %844 = vmatpush1.msra.mxu0 0.0
    %845 = vmatprep.subr.mxu0 0.0
    %846 = vmatpush1.msra.mxu0 0.0
    %847 = vmatprep.subr.mxu0 0.0
    %848 = vmatpush1.msra.mxu0 0.0
    %849 = vmatprep.subr.mxu0 0.0
    %850 = vmatpush1.msra.mxu0 %v114
    %851 = vmatprep.subr.mxu0 0.0
    %852 = vmatpush1.msra.mxu0 %v113
    %853 = vmatprep.subr.mxu0 0.0
    %854 = vmatpush1.msra.mxu0 %v112
    %855 = vmatprep.subr.mxu0 0.0
    %856 = vmatpush1.msra.mxu0 %v111
    %857 = vmatprep.subr.mxu0 0.0
    %858 = vmatpush2.msra.mxu0 0.0
    %859 = vmatprep.subr.mxu0 0.0
    %860 = vmatpush2.msra.mxu0 0.0
    %861 = vmatprep.subr.mxu0 0.0
    %862 = vmatpush2.msra.mxu0 0.0
    %863 = vmatprep.subr.mxu0 0.0
    %864 = vmatpush2.msra.mxu0 0.0
    %865 = vmatprep.subr.mxu0 0.0
    %866 = vmatpush2.msra.mxu0 0.0
    %867 = vmatprep.subr.mxu0 0.0
    %868 = vmatpush2.msra.mxu0 0.0
    %869 = vmatprep.subr.mxu0 0.0
    %870 = vmatpush2.msra.mxu0 0.0
    %871 = vmatprep.subr.mxu0 0.0
    %872 = vmatpush2.msra.mxu0 0.0
    %873 = vmatprep.subr.mxu0 0.0
    %874 = vmatpush2.msra.mxu0 0.0
    %875 = vmatprep.subr.mxu0 0.0
    %876 = vmatpush2.msra.mxu0 0.0
    %877 = vmatprep.subr.mxu0 0.0
    %878 = vmatpush2.msra.mxu0 0.0
    %879 = vmatprep.subr.mxu0 0.0
    %880 = vmatpush2.msra.mxu0 0.0
    %881 = vmatprep.subr.mxu0 0.0
    %882 = vmatpush2.msra.mxu0 0.0
    %883 = vmatprep.subr.mxu0 0.0
    %884 = vmatpush2.msra.mxu0 0.0
    %885 = vmatprep.subr.mxu0 0.0
    %886 = vmatpush2.msra.mxu0 0.0
    %887 = vmatprep.subr.mxu0 0.0
    %888 = vmatpush2.msra.mxu0 0.0
    %889 = vmatprep.mubr.f32.mxu0 0.0
    %890 = vmatmul.mubr.f32.gmra.mxu0 %v505
    %v891 = vpop.f32.mrf.mxu0
    %v892 = vadd.f32 %v398, %v891
    %v893 = vpop.f32.mrf.mxu0
    %894 = vdwg.mxu0
    %v895 = vadd.f32 %v822, %v892
    %v896 = vsub.f32 0.0, %v895
    %v897 = vmul.f32 %v896, 1.442695
    %v898 = vpow.pop %v897
    %v899 = vadd.f32 %v898, 1.0
    %v900 = vrcp.pop %v899
    %v901 = vmul.f32 1.0, %v900
    %903 = vrot.lane.b32.xlu0 %v892, 64
    %v904 = vpop.permute.xlu0 %903
    %v906 = vmul.f32 %v901, %v904
    %908 = vrot.lane.b32.xlu0 %v906, 64
    %v909 = vpop.permute.xlu0 %908
    %v911 = vadd.f32 %v822, %v909
    %v912 = vtanh.pop %v911
    %v913 = vsub.f32 1.0, %v901
    %915 = vrot.lane.b32.xlu0 %v912, 96
    %v916 = vpop.permute.xlu0 %915
    %v918 = vmul.f32 %v913, %v916
    %v919 = vmul.f32 %v901, %v495
    %v920 = vadd.f32 %v918, %v919
    %922 = vrot.lane.b32.xlu0 %v920, 96
    %v923 = vpop.permute.xlu0 %922
    %v924 = vsel %vm213, %v923, 0
    %926 = vmatprep.subr.mxu0 0.0
    %927 = vmatpush1.msra.mxu0 0.0
    %928 = vmatprep.subr.mxu0 0.0
    %929 = vmatpush1.msra.mxu0 0.0
    %930 = vmatprep.subr.mxu0 0.0
    %931 = vmatpush1.msra.mxu0 0.0
    %932 = vmatprep.subr.mxu0 0.0
    %933 = vmatpush1.msra.mxu0 0.0
    %934 = vmatprep.subr.mxu0 0.0
    %935 = vmatpush1.msra.mxu0 0.0
    %936 = vmatprep.subr.mxu0 0.0
    %937 = vmatpush1.msra.mxu0 0.0
    %938 = vmatprep.subr.mxu0 0.0
    %939 = vmatpush1.msra.mxu0 0.0
    %940 = vmatprep.subr.mxu0 0.0
    %941 = vmatpush1.msra.mxu0 0.0
    %942 = vmatprep.subr.mxu0 0.0
    %943 = vmatpush1.msra.mxu0 0.0
    %944 = vmatprep.subr.mxu0 0.0
    %945 = vmatpush1.msra.mxu0 0.0
    %946 = vmatprep.subr.mxu0 0.0
    %947 = vmatpush1.msra.mxu0 0.0
    %948 = vmatprep.subr.mxu0 0.0
    %949 = vmatpush1.msra.mxu0 0.0
    %950 = vmatprep.subr.mxu0 0.0
    %951 = vmatpush1.msra.mxu0 %v120
    %952 = vmatprep.subr.mxu0 0.0
    %953 = vmatpush1.msra.mxu0 %v119
    %954 = vmatprep.subr.mxu0 0.0
    %955 = vmatpush1.msra.mxu0 %v118
    %956 = vmatprep.subr.mxu0 0.0
    %957 = vmatpush1.msra.mxu0 %v117
    %958 = vmatprep.subr.mxu0 0.0
    %959 = vmatpush2.msra.mxu0 0.0
    %960 = vmatprep.subr.mxu0 0.0
    %961 = vmatpush2.msra.mxu0 0.0
    %962 = vmatprep.subr.mxu0 0.0
    %963 = vmatpush2.msra.mxu0 0.0
    %964 = vmatprep.subr.mxu0 0.0
    %965 = vmatpush2.msra.mxu0 0.0
    %966 = vmatprep.subr.mxu0 0.0
    %967 = vmatpush2.msra.mxu0 0.0
    %968 = vmatprep.subr.mxu0 0.0
    %969 = vmatpush2.msra.mxu0 0.0
    %970 = vmatprep.subr.mxu0 0.0
    %971 = vmatpush2.msra.mxu0 0.0
    %972 = vmatprep.subr.mxu0 0.0
    %973 = vmatpush2.msra.mxu0 0.0
    %974 = vmatprep.subr.mxu0 0.0
    %975 = vmatpush2.msra.mxu0 0.0
    %976 = vmatprep.subr.mxu0 0.0
    %977 = vmatpush2.msra.mxu0 0.0
    %978 = vmatprep.subr.mxu0 0.0
    %979 = vmatpush2.msra.mxu0 0.0
    %980 = vmatprep.subr.mxu0 0.0
    %981 = vmatpush2.msra.mxu0 0.0
    %982 = vmatprep.subr.mxu0 0.0
    %983 = vmatpush2.msra.mxu0 0.0
    %984 = vmatprep.subr.mxu0 0.0
    %985 = vmatpush2.msra.mxu0 0.0
    %986 = vmatprep.subr.mxu0 0.0
    %987 = vmatpush2.msra.mxu0 0.0
    %988 = vmatprep.subr.mxu0 0.0
    %989 = vmatpush2.msra.mxu0 0.0
    %990 = vmatprep.mubr.f32.mxu0 0.0
    %991 = vmatmul.mubr.f32.gmra.mxu0 %v924
    %v992 = vpop.f32.mrf.mxu0
    %v993 = vadd.f32 %v500, %v992
    %v994 = vpop.f32.mrf.mxu0
    %995 = vdwg.mxu0
    %s996 = scalar_lea.vmem %s11, 2
    %997 = vst.msk [vmem:[%s996] sm:$0x3] %vm577, %v993
    %s998 = scalar_lea.vmem %s0, 4
    %v999 = vld [vmem:[%s998] sm:$0x3]
    %v1001 = vsel %vm129, %v999, 0
    %1003 = vmatprep.subr.mxu0 0.0
    %1004 = vmatpush1.msra.mxu0 0.0
    %1005 = vmatprep.subr.mxu0 0.0
    %1006 = vmatpush1.msra.mxu0 0.0
    %1007 = vmatprep.subr.mxu0 0.0
    %1008 = vmatpush1.msra.mxu0 0.0
    %1009 = vmatprep.subr.mxu0 0.0
    %1010 = vmatpush1.msra.mxu0 0.0
    %1011 = vmatprep.subr.mxu0 0.0
    %1012 = vmatpush1.msra.mxu0 0.0
    %1013 = vmatprep.subr.mxu0 0.0
    %1014 = vmatpush1.msra.mxu0 0.0
    %1015 = vmatprep.subr.mxu0 0.0
    %1016 = vmatpush1.msra.mxu0 0.0
    %1017 = vmatprep.subr.mxu0 0.0
    %1018 = vmatpush1.msra.mxu0 0.0
    %1019 = vmatprep.subr.mxu0 0.0
    %1020 = vmatpush1.msra.mxu0 0.0
    %1021 = vmatprep.subr.mxu0 0.0
    %1022 = vmatpush1.msra.mxu0 0.0
    %1023 = vmatprep.subr.mxu0 0.0
    %1024 = vmatpush1.msra.mxu0 0.0
    %1025 = vmatprep.subr.mxu0 0.0
    %1026 = vmatpush1.msra.mxu0 0.0
    %1027 = vmatprep.subr.mxu0 0.0
    %1028 = vmatpush1.msra.mxu0 0.0
    %1029 = vmatprep.subr.mxu0 0.0
    %1030 = vmatpush1.msra.mxu0 0.0
    %1031 = vmatprep.subr.mxu0 0.0
    %1032 = vmatpush1.msra.mxu0 0.0
    %1033 = vmatprep.subr.mxu0 0.0
    %1034 = vmatpush1.msra.mxu0 %v135
    %1035 = vmatprep.subr.mxu0 0.0
    %1036 = vmatpush2.msra.mxu0 0.0
    %1037 = vmatprep.subr.mxu0 0.0
    %1038 = vmatpush2.msra.mxu0 0.0
    %1039 = vmatprep.subr.mxu0 0.0
    %1040 = vmatpush2.msra.mxu0 0.0
    %1041 = vmatprep.subr.mxu0 0.0
    %1042 = vmatpush2.msra.mxu0 0.0
    %1043 = vmatprep.subr.mxu0 0.0
    %1044 = vmatpush2.msra.mxu0 0.0
    %1045 = vmatprep.subr.mxu0 0.0
    %1046 = vmatpush2.msra.mxu0 0.0
    %1047 = vmatprep.subr.mxu0 0.0
    %1048 = vmatpush2.msra.mxu0 0.0
    %1049 = vmatprep.subr.mxu0 0.0
    %1050 = vmatpush2.msra.mxu0 0.0
    %1051 = vmatprep.subr.mxu0 0.0
    %1052 = vmatpush2.msra.mxu0 0.0
    %1053 = vmatprep.subr.mxu0 0.0
    %1054 = vmatpush2.msra.mxu0 0.0
    %1055 = vmatprep.subr.mxu0 0.0
    %1056 = vmatpush2.msra.mxu0 0.0
    %1057 = vmatprep.subr.mxu0 0.0
    %1058 = vmatpush2.msra.mxu0 0.0
    %1059 = vmatprep.subr.mxu0 0.0
    %1060 = vmatpush2.msra.mxu0 0.0
    %1061 = vmatprep.subr.mxu0 0.0
    %1062 = vmatpush2.msra.mxu0 0.0
    %1063 = vmatprep.subr.mxu0 0.0
    %1064 = vmatpush2.msra.mxu0 0.0
    %1065 = vmatprep.subr.mxu0 0.0
    %1066 = vmatpush2.msra.mxu0 0.0
    %1067 = vmatprep.mubr.f32.mxu0 0.0
    %1068 = vmatmul.mubr.f32.gmra.mxu0 %v1001
    %v1069 = vpop.f32.mrf.mxu0
    %v1070 = vadd.f32 %v127, %v1069
    %v1071 = vpop.f32.mrf.mxu0
    %1072 = vdwg.mxu0
    %1073 = vmatprep.subr.mxu0 0.0
    %1074 = vmatpush1.msra.mxu0 0.0
    %1075 = vmatprep.subr.mxu0 0.0
    %1076 = vmatpush1.msra.mxu0 0.0
    %1077 = vmatprep.subr.mxu0 0.0
    %1078 = vmatpush1.msra.mxu0 0.0
    %1079 = vmatprep.subr.mxu0 0.0
    %1080 = vmatpush1.msra.mxu0 0.0
    %1081 = vmatprep.subr.mxu0 0.0
    %1082 = vmatpush1.msra.mxu0 0.0
    %1083 = vmatprep.subr.mxu0 0.0
    %1084 = vmatpush1.msra.mxu0 0.0
    %1085 = vmatprep.subr.mxu0 0.0
    %1086 = vmatpush1.msra.mxu0 0.0
    %1087 = vmatprep.subr.mxu0 0.0
    %1088 = vmatpush1.msra.mxu0 0.0
    %1089 = vmatprep.subr.mxu0 0.0
    %1090 = vmatpush1.msra.mxu0 0.0
    %1091 = vmatprep.subr.mxu0 0.0
    %1092 = vmatpush1.msra.mxu0 0.0
    %1093 = vmatprep.subr.mxu0 0.0
    %1094 = vmatpush1.msra.mxu0 0.0
    %1095 = vmatprep.subr.mxu0 0.0
    %1096 = vmatpush1.msra.mxu0 0.0
    %1097 = vmatprep.subr.mxu0 0.0
    %1098 = vmatpush1.msra.mxu0 %v104
    %1099 = vmatprep.subr.mxu0 0.0
    %1100 = vmatpush1.msra.mxu0 %v103
    %1101 = vmatprep.subr.mxu0 0.0
    %1102 = vmatpush1.msra.mxu0 %v102
    %1103 = vmatprep.subr.mxu0 0.0
    %1104 = vmatpush1.msra.mxu0 %v101
    %1105 = vmatprep.subr.mxu0 0.0
    %1106 = vmatpush2.msra.mxu0 0.0
    %1107 = vmatprep.subr.mxu0 0.0
    %1108 = vmatpush2.msra.mxu0 0.0
    %1109 = vmatprep.subr.mxu0 0.0
    %1110 = vmatpush2.msra.mxu0 0.0
    %1111 = vmatprep.subr.mxu0 0.0
    %1112 = vmatpush2.msra.mxu0 0.0
    %1113 = vmatprep.subr.mxu0 0.0
    %1114 = vmatpush2.msra.mxu0 0.0
    %1115 = vmatprep.subr.mxu0 0.0
    %1116 = vmatpush2.msra.mxu0 0.0
    %1117 = vmatprep.subr.mxu0 0.0
    %1118 = vmatpush2.msra.mxu0 0.0
    %1119 = vmatprep.subr.mxu0 0.0
    %1120 = vmatpush2.msra.mxu0 0.0
    %1121 = vmatprep.subr.mxu0 0.0
    %1122 = vmatpush2.msra.mxu0 0.0
    %1123 = vmatprep.subr.mxu0 0.0
    %1124 = vmatpush2.msra.mxu0 0.0
    %1125 = vmatprep.subr.mxu0 0.0
    %1126 = vmatpush2.msra.mxu0 0.0
    %1127 = vmatprep.subr.mxu0 0.0
    %1128 = vmatpush2.msra.mxu0 0.0
    %1129 = vmatprep.subr.mxu0 0.0
    %1130 = vmatpush2.msra.mxu0 0.0
    %1131 = vmatprep.subr.mxu0 0.0
    %1132 = vmatpush2.msra.mxu0 0.0
    %1133 = vmatprep.subr.mxu0 0.0
    %1134 = vmatpush2.msra.mxu0 0.0
    %1135 = vmatprep.subr.mxu0 0.0
    %1136 = vmatpush2.msra.mxu0 0.0
    %1137 = vmatprep.mubr.f32.mxu0 0.0
    %1138 = vmatmul.mubr.f32.gmra.mxu0 %v753
    %v1139 = vpop.f32.mrf.mxu0
    %v1140 = vadd.f32 %v211, %v1139
    %v1141 = vpop.f32.mrf.mxu0
    %1142 = vdwg.mxu0
    %v1143 = vadd.f32 %v1070, %v1140
    %v1144 = vsub.f32 0.0, %v1143
    %v1145 = vmul.f32 %v1144, 1.442695
    %v1146 = vpow.pop %v1145
    %v1147 = vadd.f32 %v1146, 1.0
    %v1148 = vrcp.pop %v1147
    %v1149 = vmul.f32 1.0, %v1148
    %1151 = vrot.lane.b32.xlu0 %v1140, 64
    %v1152 = vpop.permute.xlu0 %1151
    %v1154 = vmul.f32 %v1149, %v1152
    %1156 = vrot.lane.b32.xlu0 %v1154, 64
    %v1157 = vpop.permute.xlu0 %1156
    %v1159 = vadd.f32 %v1070, %v1157
    %v1160 = vtanh.pop %v1159
    %v1161 = vsub.f32 1.0, %v1149
    %1163 = vrot.lane.b32.xlu0 %v1160, 96
    %v1164 = vpop.permute.xlu0 %1163
    %v1166 = vmul.f32 %v1161, %v1164
    %v1167 = vmul.f32 %v1149, %v749
    %v1168 = vadd.f32 %v1166, %v1167
    %1170 = vrot.lane.b32.xlu0 %v1168, 96
    %v1171 = vpop.permute.xlu0 %1170
    %v1172 = vsel %vm213, %v1171, 0
    %1174 = vmatprep.subr.mxu0 0.0
    %1175 = vmatpush1.msra.mxu0 0.0
    %1176 = vmatprep.subr.mxu0 0.0
    %1177 = vmatpush1.msra.mxu0 0.0
    %1178 = vmatprep.subr.mxu0 0.0
    %1179 = vmatpush1.msra.mxu0 0.0
    %1180 = vmatprep.subr.mxu0 0.0
    %1181 = vmatpush1.msra.mxu0 0.0
    %1182 = vmatprep.subr.mxu0 0.0
    %1183 = vmatpush1.msra.mxu0 0.0
    %1184 = vmatprep.subr.mxu0 0.0
    %1185 = vmatpush1.msra.mxu0 0.0
    %1186 = vmatprep.subr.mxu0 0.0
    %1187 = vmatpush1.msra.mxu0 0.0
    %1188 = vmatprep.subr.mxu0 0.0
    %1189 = vmatpush1.msra.mxu0 0.0
    %1190 = vmatprep.subr.mxu0 0.0
    %1191 = vmatpush1.msra.mxu0 0.0
    %1192 = vmatprep.subr.mxu0 0.0
    %1193 = vmatpush1.msra.mxu0 0.0
    %1194 = vmatprep.subr.mxu0 0.0
    %1195 = vmatpush1.msra.mxu0 0.0
    %1196 = vmatprep.subr.mxu0 0.0
    %1197 = vmatpush1.msra.mxu0 0.0
    %1198 = vmatprep.subr.mxu0 0.0
    %1199 = vmatpush1.msra.mxu0 %v110
    %1200 = vmatprep.subr.mxu0 0.0
    %1201 = vmatpush1.msra.mxu0 %v109
    %1202 = vmatprep.subr.mxu0 0.0
    %1203 = vmatpush1.msra.mxu0 %v108
    %1204 = vmatprep.subr.mxu0 0.0
    %1205 = vmatpush1.msra.mxu0 %v107
    %1206 = vmatprep.subr.mxu0 0.0
    %1207 = vmatpush2.msra.mxu0 0.0
    %1208 = vmatprep.subr.mxu0 0.0
    %1209 = vmatpush2.msra.mxu0 0.0
    %1210 = vmatprep.subr.mxu0 0.0
    %1211 = vmatpush2.msra.mxu0 0.0
    %1212 = vmatprep.subr.mxu0 0.0
    %1213 = vmatpush2.msra.mxu0 0.0
    %1214 = vmatprep.subr.mxu0 0.0
    %1215 = vmatpush2.msra.mxu0 0.0
    %1216 = vmatprep.subr.mxu0 0.0
    %1217 = vmatpush2.msra.mxu0 0.0
    %1218 = vmatprep.subr.mxu0 0.0
    %1219 = vmatpush2.msra.mxu0 0.0
    %1220 = vmatprep.subr.mxu0 0.0
    %1221 = vmatpush2.msra.mxu0 0.0
    %1222 = vmatprep.subr.mxu0 0.0
    %1223 = vmatpush2.msra.mxu0 0.0
    %1224 = vmatprep.subr.mxu0 0.0
    %1225 = vmatpush2.msra.mxu0 0.0
    %1226 = vmatprep.subr.mxu0 0.0
    %1227 = vmatpush2.msra.mxu0 0.0
    %1228 = vmatprep.subr.mxu0 0.0
    %1229 = vmatpush2.msra.mxu0 0.0
    %1230 = vmatprep.subr.mxu0 0.0
    %1231 = vmatpush2.msra.mxu0 0.0
    %1232 = vmatprep.subr.mxu0 0.0
    %1233 = vmatpush2.msra.mxu0 0.0
    %1234 = vmatprep.subr.mxu0 0.0
    %1235 = vmatpush2.msra.mxu0 0.0
    %1236 = vmatprep.subr.mxu0 0.0
    %1237 = vmatpush2.msra.mxu0 0.0
    %1238 = vmatprep.mubr.f32.mxu0 0.0
    %1239 = vmatmul.mubr.f32.gmra.mxu0 %v1172
    %v1240 = vpop.f32.mrf.mxu0
    %v1241 = vadd.f32 %v317, %v1240
    %v1242 = vpop.f32.mrf.mxu0
    %1243 = vdwg.mxu0
    %1244 = vmatprep.subr.mxu0 0.0
    %1245 = vmatpush1.msra.mxu0 0.0
    %1246 = vmatprep.subr.mxu0 0.0
    %1247 = vmatpush1.msra.mxu0 0.0
    %1248 = vmatprep.subr.mxu0 0.0
    %1249 = vmatpush1.msra.mxu0 0.0
    %1250 = vmatprep.subr.mxu0 0.0
    %1251 = vmatpush1.msra.mxu0 0.0
    %1252 = vmatprep.subr.mxu0 0.0
    %1253 = vmatpush1.msra.mxu0 0.0
    %1254 = vmatprep.subr.mxu0 0.0
    %1255 = vmatpush1.msra.mxu0 0.0
    %1256 = vmatprep.subr.mxu0 0.0
    %1257 = vmatpush1.msra.mxu0 0.0
    %1258 = vmatprep.subr.mxu0 0.0
    %1259 = vmatpush1.msra.mxu0 0.0
    %1260 = vmatprep.subr.mxu0 0.0
    %1261 = vmatpush1.msra.mxu0 0.0
    %1262 = vmatprep.subr.mxu0 0.0
    %1263 = vmatpush1.msra.mxu0 0.0
    %1264 = vmatprep.subr.mxu0 0.0
    %1265 = vmatpush1.msra.mxu0 0.0
    %1266 = vmatprep.subr.mxu0 0.0
    %1267 = vmatpush1.msra.mxu0 0.0
    %1268 = vmatprep.subr.mxu0 0.0
    %1269 = vmatpush1.msra.mxu0 %v114
    %1270 = vmatprep.subr.mxu0 0.0
    %1271 = vmatpush1.msra.mxu0 %v113
    %1272 = vmatprep.subr.mxu0 0.0
    %1273 = vmatpush1.msra.mxu0 %v112
    %1274 = vmatprep.subr.mxu0 0.0
    %1275 = vmatpush1.msra.mxu0 %v111
    %1276 = vmatprep.subr.mxu0 0.0
    %1277 = vmatpush2.msra.mxu0 0.0
    %1278 = vmatprep.subr.mxu0 0.0
    %1279 = vmatpush2.msra.mxu0 0.0
    %1280 = vmatprep.subr.mxu0 0.0
    %1281 = vmatpush2.msra.mxu0 0.0
    %1282 = vmatprep.subr.mxu0 0.0
    %1283 = vmatpush2.msra.mxu0 0.0
    %1284 = vmatprep.subr.mxu0 0.0
    %1285 = vmatpush2.msra.mxu0 0.0
    %1286 = vmatprep.subr.mxu0 0.0
    %1287 = vmatpush2.msra.mxu0 0.0
    %1288 = vmatprep.subr.mxu0 0.0
    %1289 = vmatpush2.msra.mxu0 0.0
    %1290 = vmatprep.subr.mxu0 0.0
    %1291 = vmatpush2.msra.mxu0 0.0
    %1292 = vmatprep.subr.mxu0 0.0
    %1293 = vmatpush2.msra.mxu0 0.0
    %1294 = vmatprep.subr.mxu0 0.0
    %1295 = vmatpush2.msra.mxu0 0.0
    %1296 = vmatprep.subr.mxu0 0.0
    %1297 = vmatpush2.msra.mxu0 0.0
    %1298 = vmatprep.subr.mxu0 0.0
    %1299 = vmatpush2.msra.mxu0 0.0
    %1300 = vmatprep.subr.mxu0 0.0
    %1301 = vmatpush2.msra.mxu0 0.0
    %1302 = vmatprep.subr.mxu0 0.0
    %1303 = vmatpush2.msra.mxu0 0.0
    %1304 = vmatprep.subr.mxu0 0.0
    %1305 = vmatpush2.msra.mxu0 0.0
    %1306 = vmatprep.subr.mxu0 0.0
    %1307 = vmatpush2.msra.mxu0 0.0
    %1308 = vmatprep.mubr.f32.mxu0 0.0
    %1309 = vmatmul.mubr.f32.gmra.mxu0 %v924
    %v1310 = vpop.f32.mrf.mxu0
    %v1311 = vadd.f32 %v398, %v1310
    %v1312 = vpop.f32.mrf.mxu0
    %1313 = vdwg.mxu0
    %v1314 = vadd.f32 %v1241, %v1311
    %v1315 = vsub.f32 0.0, %v1314
    %v1316 = vmul.f32 %v1315, 1.442695
    %v1317 = vpow.pop %v1316
    %v1318 = vadd.f32 %v1317, 1.0
    %v1319 = vrcp.pop %v1318
    %v1320 = vmul.f32 1.0, %v1319
    %1322 = vrot.lane.b32.xlu0 %v1311, 64
    %v1323 = vpop.permute.xlu0 %1322
    %v1325 = vmul.f32 %v1320, %v1323
    %1327 = vrot.lane.b32.xlu0 %v1325, 64
    %v1328 = vpop.permute.xlu0 %1327
    %v1330 = vadd.f32 %v1241, %v1328
    %v1331 = vtanh.pop %v1330
    %v1332 = vsub.f32 1.0, %v1320
    %1334 = vrot.lane.b32.xlu0 %v1331, 96
    %v1335 = vpop.permute.xlu0 %1334
    %v1337 = vmul.f32 %v1332, %v1335
    %v1338 = vmul.f32 %v1320, %v920
    %v1339 = vadd.f32 %v1337, %v1338
    %1341 = vrot.lane.b32.xlu0 %v1339, 96
    %v1342 = vpop.permute.xlu0 %1341
    %v1343 = vsel %vm213, %v1342, 0
    %1345 = vmatprep.subr.mxu0 0.0
    %1346 = vmatpush1.msra.mxu0 0.0
    %1347 = vmatprep.subr.mxu0 0.0
    %1348 = vmatpush1.msra.mxu0 0.0
    %1349 = vmatprep.subr.mxu0 0.0
    %1350 = vmatpush1.msra.mxu0 0.0
    %1351 = vmatprep.subr.mxu0 0.0
    %1352 = vmatpush1.msra.mxu0 0.0
    %1353 = vmatprep.subr.mxu0 0.0
    %1354 = vmatpush1.msra.mxu0 0.0
    %1355 = vmatprep.subr.mxu0 0.0
    %1356 = vmatpush1.msra.mxu0 0.0
    %1357 = vmatprep.subr.mxu0 0.0
    %1358 = vmatpush1.msra.mxu0 0.0
    %1359 = vmatprep.subr.mxu0 0.0
    %1360 = vmatpush1.msra.mxu0 0.0
    %1361 = vmatprep.subr.mxu0 0.0
    %1362 = vmatpush1.msra.mxu0 0.0
    %1363 = vmatprep.subr.mxu0 0.0
    %1364 = vmatpush1.msra.mxu0 0.0
    %1365 = vmatprep.subr.mxu0 0.0
    %1366 = vmatpush1.msra.mxu0 0.0
    %1367 = vmatprep.subr.mxu0 0.0
    %1368 = vmatpush1.msra.mxu0 0.0
    %1369 = vmatprep.subr.mxu0 0.0
    %1370 = vmatpush1.msra.mxu0 %v120
    %1371 = vmatprep.subr.mxu0 0.0
    %1372 = vmatpush1.msra.mxu0 %v119
    %1373 = vmatprep.subr.mxu0 0.0
    %1374 = vmatpush1.msra.mxu0 %v118
    %1375 = vmatprep.subr.mxu0 0.0
    %1376 = vmatpush1.msra.mxu0 %v117
    %1377 = vmatprep.subr.mxu0 0.0
    %1378 = vmatpush2.msra.mxu0 0.0
    %1379 = vmatprep.subr.mxu0 0.0
    %1380 = vmatpush2.msra.mxu0 0.0
    %1381 = vmatprep.subr.mxu0 0.0
    %1382 = vmatpush2.msra.mxu0 0.0
    %1383 = vmatprep.subr.mxu0 0.0
    %1384 = vmatpush2.msra.mxu0 0.0
    %1385 = vmatprep.subr.mxu0 0.0
    %1386 = vmatpush2.msra.mxu0 0.0
    %1387 = vmatprep.subr.mxu0 0.0
    %1388 = vmatpush2.msra.mxu0 0.0
    %1389 = vmatprep.subr.mxu0 0.0
    %1390 = vmatpush2.msra.mxu0 0.0
    %1391 = vmatprep.subr.mxu0 0.0
    %1392 = vmatpush2.msra.mxu0 0.0
    %1393 = vmatprep.subr.mxu0 0.0
    %1394 = vmatpush2.msra.mxu0 0.0
    %1395 = vmatprep.subr.mxu0 0.0
    %1396 = vmatpush2.msra.mxu0 0.0
    %1397 = vmatprep.subr.mxu0 0.0
    %1398 = vmatpush2.msra.mxu0 0.0
    %1399 = vmatprep.subr.mxu0 0.0
    %1400 = vmatpush2.msra.mxu0 0.0
    %1401 = vmatprep.subr.mxu0 0.0
    %1402 = vmatpush2.msra.mxu0 0.0
    %1403 = vmatprep.subr.mxu0 0.0
    %1404 = vmatpush2.msra.mxu0 0.0
    %1405 = vmatprep.subr.mxu0 0.0
    %1406 = vmatpush2.msra.mxu0 0.0
    %1407 = vmatprep.subr.mxu0 0.0
    %1408 = vmatpush2.msra.mxu0 0.0
    %1409 = vmatprep.mubr.f32.mxu0 0.0
    %1410 = vmatmul.mubr.f32.gmra.mxu0 %v1343
    %v1411 = vpop.f32.mrf.mxu0
    %v1412 = vadd.f32 %v500, %v1411
    %v1413 = vpop.f32.mrf.mxu0
    %1414 = vdwg.mxu0
    %s1415 = scalar_lea.vmem %s11, 4
    %1416 = vst.msk [vmem:[%s1415] sm:$0x3] %vm577, %v1412
    %s1417 = scalar_lea.vmem %s0, 6
    %v1418 = vld [vmem:[%s1417] sm:$0x3]
    %v1420 = vsel %vm129, %v1418, 0
    %1422 = vmatprep.subr.mxu0 0.0
    %1423 = vmatpush1.msra.mxu0 0.0
    %1424 = vmatprep.subr.mxu0 0.0
    %1425 = vmatpush1.msra.mxu0 0.0
    %1426 = vmatprep.subr.mxu0 0.0
    %1427 = vmatpush1.msra.mxu0 0.0
    %1428 = vmatprep.subr.mxu0 0.0
    %1429 = vmatpush1.msra.mxu0 0.0
    %1430 = vmatprep.subr.mxu0 0.0
    %1431 = vmatpush1.msra.mxu0 0.0
    %1432 = vmatprep.subr.mxu0 0.0
    %1433 = vmatpush1.msra.mxu0 0.0
    %1434 = vmatprep.subr.mxu0 0.0
    %1435 = vmatpush1.msra.mxu0 0.0
    %1436 = vmatprep.subr.mxu0 0.0
    %1437 = vmatpush1.msra.mxu0 0.0
    %1438 = vmatprep.subr.mxu0 0.0
    %1439 = vmatpush1.msra.mxu0 0.0
    %1440 = vmatprep.subr.mxu0 0.0
    %1441 = vmatpush1.msra.mxu0 0.0
    %1442 = vmatprep.subr.mxu0 0.0
    %1443 = vmatpush1.msra.mxu0 0.0
    %1444 = vmatprep.subr.mxu0 0.0
    %1445 = vmatpush1.msra.mxu0 0.0
    %1446 = vmatprep.subr.mxu0 0.0
    %1447 = vmatpush1.msra.mxu0 0.0
    %1448 = vmatprep.subr.mxu0 0.0
    %1449 = vmatpush1.msra.mxu0 0.0
    %1450 = vmatprep.subr.mxu0 0.0
    %1451 = vmatpush1.msra.mxu0 0.0
    %1452 = vmatprep.subr.mxu0 0.0
    %1453 = vmatpush1.msra.mxu0 %v135
    %1454 = vmatprep.subr.mxu0 0.0
    %1455 = vmatpush2.msra.mxu0 0.0
    %1456 = vmatprep.subr.mxu0 0.0
    %1457 = vmatpush2.msra.mxu0 0.0
    %1458 = vmatprep.subr.mxu0 0.0
    %1459 = vmatpush2.msra.mxu0 0.0
    %1460 = vmatprep.subr.mxu0 0.0
    %1461 = vmatpush2.msra.mxu0 0.0
    %1462 = vmatprep.subr.mxu0 0.0
    %1463 = vmatpush2.msra.mxu0 0.0
    %1464 = vmatprep.subr.mxu0 0.0
    %1465 = vmatpush2.msra.mxu0 0.0
    %1466 = vmatprep.subr.mxu0 0.0
    %1467 = vmatpush2.msra.mxu0 0.0
    %1468 = vmatprep.subr.mxu0 0.0
    %1469 = vmatpush2.msra.mxu0 0.0
    %1470 = vmatprep.subr.mxu0 0.0
    %1471 = vmatpush2.msra.mxu0 0.0
    %1472 = vmatprep.subr.mxu0 0.0
    %1473 = vmatpush2.msra.mxu0 0.0
    %1474 = vmatprep.subr.mxu0 0.0
    %1475 = vmatpush2.msra.mxu0 0.0
    %1476 = vmatprep.subr.mxu0 0.0
    %1477 = vmatpush2.msra.mxu0 0.0
    %1478 = vmatprep.subr.mxu0 0.0
    %1479 = vmatpush2.msra.mxu0 0.0
    %1480 = vmatprep.subr.mxu0 0.0
    %1481 = vmatpush2.msra.mxu0 0.0
    %1482 = vmatprep.subr.mxu0 0.0
    %1483 = vmatpush2.msra.mxu0 0.0
    %1484 = vmatprep.subr.mxu0 0.0
    %1485 = vmatpush2.msra.mxu0 0.0
    %1486 = vmatprep.mubr.f32.mxu0 0.0
    %1487 = vmatmul.mubr.f32.gmra.mxu0 %v1420
    %v1488 = vpop.f32.mrf.mxu0
    %v1489 = vadd.f32 %v127, %v1488
    %v1490 = vpop.f32.mrf.mxu0
    %1491 = vdwg.mxu0
    %1492 = vmatprep.subr.mxu0 0.0
    %1493 = vmatpush1.msra.mxu0 0.0
    %1494 = vmatprep.subr.mxu0 0.0
    %1495 = vmatpush1.msra.mxu0 0.0
    %1496 = vmatprep.subr.mxu0 0.0
    %1497 = vmatpush1.msra.mxu0 0.0
    %1498 = vmatprep.subr.mxu0 0.0
    %1499 = vmatpush1.msra.mxu0 0.0
    %1500 = vmatprep.subr.mxu0 0.0
    %1501 = vmatpush1.msra.mxu0 0.0
    %1502 = vmatprep.subr.mxu0 0.0
    %1503 = vmatpush1.msra.mxu0 0.0
    %1504 = vmatprep.subr.mxu0 0.0
    %1505 = vmatpush1.msra.mxu0 0.0
    %1506 = vmatprep.subr.mxu0 0.0
    %1507 = vmatpush1.msra.mxu0 0.0
    %1508 = vmatprep.subr.mxu0 0.0
    %1509 = vmatpush1.msra.mxu0 0.0
    %1510 = vmatprep.subr.mxu0 0.0
    %1511 = vmatpush1.msra.mxu0 0.0
    %1512 = vmatprep.subr.mxu0 0.0
    %1513 = vmatpush1.msra.mxu0 0.0
    %1514 = vmatprep.subr.mxu0 0.0
    %1515 = vmatpush1.msra.mxu0 0.0
    %1516 = vmatprep.subr.mxu0 0.0
    %1517 = vmatpush1.msra.mxu0 %v104
    %1518 = vmatprep.subr.mxu0 0.0
    %1519 = vmatpush1.msra.mxu0 %v103
    %1520 = vmatprep.subr.mxu0 0.0
    %1521 = vmatpush1.msra.mxu0 %v102
    %1522 = vmatprep.subr.mxu0 0.0
    %1523 = vmatpush1.msra.mxu0 %v101
    %1524 = vmatprep.subr.mxu0 0.0
    %1525 = vmatpush2.msra.mxu0 0.0
    %1526 = vmatprep.subr.mxu0 0.0
    %1527 = vmatpush2.msra.mxu0 0.0
    %1528 = vmatprep.subr.mxu0 0.0
    %1529 = vmatpush2.msra.mxu0 0.0
    %1530 = vmatprep.subr.mxu0 0.0
    %1531 = vmatpush2.msra.mxu0 0.0
    %1532 = vmatprep.subr.mxu0 0.0
    %1533 = vmatpush2.msra.mxu0 0.0
    %1534 = vmatprep.subr.mxu0 0.0
    %1535 = vmatpush2.msra.mxu0 0.0
    %1536 = vmatprep.subr.mxu0 0.0
    %1537 = vmatpush2.msra.mxu0 0.0
    %1538 = vmatprep.subr.mxu0 0.0
    %1539 = vmatpush2.msra.mxu0 0.0
    %1540 = vmatprep.subr.mxu0 0.0
    %1541 = vmatpush2.msra.mxu0 0.0
    %1542 = vmatprep.subr.mxu0 0.0
    %1543 = vmatpush2.msra.mxu0 0.0
    %1544 = vmatprep.subr.mxu0 0.0
    %1545 = vmatpush2.msra.mxu0 0.0
    %1546 = vmatprep.subr.mxu0 0.0
    %1547 = vmatpush2.msra.mxu0 0.0
    %1548 = vmatprep.subr.mxu0 0.0
    %1549 = vmatpush2.msra.mxu0 0.0
    %1550 = vmatprep.subr.mxu0 0.0
    %1551 = vmatpush2.msra.mxu0 0.0
    %1552 = vmatprep.subr.mxu0 0.0
    %1553 = vmatpush2.msra.mxu0 0.0
    %1554 = vmatprep.subr.mxu0 0.0
    %1555 = vmatpush2.msra.mxu0 0.0
    %1556 = vmatprep.mubr.f32.mxu0 0.0
    %1557 = vmatmul.mubr.f32.gmra.mxu0 %v1172
    %v1558 = vpop.f32.mrf.mxu0
    %v1559 = vadd.f32 %v211, %v1558
    %v1560 = vpop.f32.mrf.mxu0
    %1561 = vdwg.mxu0
    %v1562 = vadd.f32 %v1489, %v1559
    %v1563 = vsub.f32 0.0, %v1562
    %v1564 = vmul.f32 %v1563, 1.442695
    %v1565 = vpow.pop %v1564
    %v1566 = vadd.f32 %v1565, 1.0
    %v1567 = vrcp.pop %v1566
    %v1568 = vmul.f32 1.0, %v1567
    %1570 = vrot.lane.b32.xlu0 %v1559, 64
    %v1571 = vpop.permute.xlu0 %1570
    %v1573 = vmul.f32 %v1568, %v1571
    %1575 = vrot.lane.b32.xlu0 %v1573, 64
    %v1576 = vpop.permute.xlu0 %1575
    %v1578 = vadd.f32 %v1489, %v1576
    %v1579 = vtanh.pop %v1578
    %v1580 = vsub.f32 1.0, %v1568
    %1582 = vrot.lane.b32.xlu0 %v1579, 96
    %v1583 = vpop.permute.xlu0 %1582
    %v1585 = vmul.f32 %v1580, %v1583
    %v1586 = vmul.f32 %v1568, %v1168
    %v1587 = vadd.f32 %v1585, %v1586
    %1589 = vrot.lane.b32.xlu0 %v1587, 96
    %v1590 = vpop.permute.xlu0 %1589
    %v1591 = vsel %vm213, %v1590, 0
    %1593 = vmatprep.subr.mxu0 0.0
    %1594 = vmatpush1.msra.mxu0 0.0
    %1595 = vmatprep.subr.mxu0 0.0
    %1596 = vmatpush1.msra.mxu0 0.0
    %1597 = vmatprep.subr.mxu0 0.0
    %1598 = vmatpush1.msra.mxu0 0.0
    %1599 = vmatprep.subr.mxu0 0.0
    %1600 = vmatpush1.msra.mxu0 0.0
    %1601 = vmatprep.subr.mxu0 0.0
    %1602 = vmatpush1.msra.mxu0 0.0
    %1603 = vmatprep.subr.mxu0 0.0
    %1604 = vmatpush1.msra.mxu0 0.0
    %1605 = vmatprep.subr.mxu0 0.0
    %1606 = vmatpush1.msra.mxu0 0.0
    %1607 = vmatprep.subr.mxu0 0.0
    %1608 = vmatpush1.msra.mxu0 0.0
    %1609 = vmatprep.subr.mxu0 0.0
    %1610 = vmatpush1.msra.mxu0 0.0
    %1611 = vmatprep.subr.mxu0 0.0
    %1612 = vmatpush1.msra.mxu0 0.0
    %1613 = vmatprep.subr.mxu0 0.0
    %1614 = vmatpush1.msra.mxu0 0.0
    %1615 = vmatprep.subr.mxu0 0.0
    %1616 = vmatpush1.msra.mxu0 0.0
    %1617 = vmatprep.subr.mxu0 0.0
    %1618 = vmatpush1.msra.mxu0 %v110
    %1619 = vmatprep.subr.mxu0 0.0
    %1620 = vmatpush1.msra.mxu0 %v109
    %1621 = vmatprep.subr.mxu0 0.0
    %1622 = vmatpush1.msra.mxu0 %v108
    %1623 = vmatprep.subr.mxu0 0.0
    %1624 = vmatpush1.msra.mxu0 %v107
    %1625 = vmatprep.subr.mxu0 0.0
    %1626 = vmatpush2.msra.mxu0 0.0
    %1627 = vmatprep.subr.mxu0 0.0
    %1628 = vmatpush2.msra.mxu0 0.0
    %1629 = vmatprep.subr.mxu0 0.0
    %1630 = vmatpush2.msra.mxu0 0.0
    %1631 = vmatprep.subr.mxu0 0.0
    %1632 = vmatpush2.msra.mxu0 0.0
    %1633 = vmatprep.subr.mxu0 0.0
    %1634 = vmatpush2.msra.mxu0 0.0
    %1635 = vmatprep.subr.mxu0 0.0
    %1636 = vmatpush2.msra.mxu0 0.0
    %1637 = vmatprep.subr.mxu0 0.0
    %1638 = vmatpush2.msra.mxu0 0.0
    %1639 = vmatprep.subr.mxu0 0.0
    %1640 = vmatpush2.msra.mxu0 0.0
    %1641 = vmatprep.subr.mxu0 0.0
    %1642 = vmatpush2.msra.mxu0 0.0
    %1643 = vmatprep.subr.mxu0 0.0
    %1644 = vmatpush2.msra.mxu0 0.0
    %1645 = vmatprep.subr.mxu0 0.0
    %1646 = vmatpush2.msra.mxu0 0.0
    %1647 = vmatprep.subr.mxu0 0.0
    %1648 = vmatpush2.msra.mxu0 0.0
    %1649 = vmatprep.subr.mxu0 0.0
    %1650 = vmatpush2.msra.mxu0 0.0
    %1651 = vmatprep.subr.mxu0 0.0
    %1652 = vmatpush2.msra.mxu0 0.0
    %1653 = vmatprep.subr.mxu0 0.0
    %1654 = vmatpush2.msra.mxu0 0.0
    %1655 = vmatprep.subr.mxu0 0.0
    %1656 = vmatpush2.msra.mxu0 0.0
    %1657 = vmatprep.mubr.f32.mxu0 0.0
    %1658 = vmatmul.mubr.f32.gmra.mxu0 %v1591
    %v1659 = vpop.f32.mrf.mxu0
    %v1660 = vadd.f32 %v317, %v1659
    %v1661 = vpop.f32.mrf.mxu0
    %1662 = vdwg.mxu0
    %1663 = vmatprep.subr.mxu0 0.0
    %1664 = vmatpush1.msra.mxu0 0.0
    %1665 = vmatprep.subr.mxu0 0.0
    %1666 = vmatpush1.msra.mxu0 0.0
    %1667 = vmatprep.subr.mxu0 0.0
    %1668 = vmatpush1.msra.mxu0 0.0
    %1669 = vmatprep.subr.mxu0 0.0
    %1670 = vmatpush1.msra.mxu0 0.0
    %1671 = vmatprep.subr.mxu0 0.0
    %1672 = vmatpush1.msra.mxu0 0.0
    %1673 = vmatprep.subr.mxu0 0.0
    %1674 = vmatpush1.msra.mxu0 0.0
    %1675 = vmatprep.subr.mxu0 0.0
    %1676 = vmatpush1.msra.mxu0 0.0
    %1677 = vmatprep.subr.mxu0 0.0
    %1678 = vmatpush1.msra.mxu0 0.0
    %1679 = vmatprep.subr.mxu0 0.0
    %1680 = vmatpush1.msra.mxu0 0.0
    %1681 = vmatprep.subr.mxu0 0.0
    %1682 = vmatpush1.msra.mxu0 0.0
    %1683 = vmatprep.subr.mxu0 0.0
    %1684 = vmatpush1.msra.mxu0 0.0
    %1685 = vmatprep.subr.mxu0 0.0
    %1686 = vmatpush1.msra.mxu0 0.0
    %1687 = vmatprep.subr.mxu0 0.0
    %1688 = vmatpush1.msra.mxu0 %v114
    %1689 = vmatprep.subr.mxu0 0.0
    %1690 = vmatpush1.msra.mxu0 %v113
    %1691 = vmatprep.subr.mxu0 0.0
    %1692 = vmatpush1.msra.mxu0 %v112
    %1693 = vmatprep.subr.mxu0 0.0
    %1694 = vmatpush1.msra.mxu0 %v111
    %1695 = vmatprep.subr.mxu0 0.0
    %1696 = vmatpush2.msra.mxu0 0.0
    %1697 = vmatprep.subr.mxu0 0.0
    %1698 = vmatpush2.msra.mxu0 0.0
    %1699 = vmatprep.subr.mxu0 0.0
    %1700 = vmatpush2.msra.mxu0 0.0
    %1701 = vmatprep.subr.mxu0 0.0
    %1702 = vmatpush2.msra.mxu0 0.0
    %1703 = vmatprep.subr.mxu0 0.0
    %1704 = vmatpush2.msra.mxu0 0.0
    %1705 = vmatprep.subr.mxu0 0.0
    %1706 = vmatpush2.msra.mxu0 0.0
    %1707 = vmatprep.subr.mxu0 0.0
    %1708 = vmatpush2.msra.mxu0 0.0
    %1709 = vmatprep.subr.mxu0 0.0
    %1710 = vmatpush2.msra.mxu0 0.0
    %1711 = vmatprep.subr.mxu0 0.0
    %1712 = vmatpush2.msra.mxu0 0.0
    %1713 = vmatprep.subr.mxu0 0.0
    %1714 = vmatpush2.msra.mxu0 0.0
    %1715 = vmatprep.subr.mxu0 0.0
    %1716 = vmatpush2.msra.mxu0 0.0
    %1717 = vmatprep.subr.mxu0 0.0
    %1718 = vmatpush2.msra.mxu0 0.0
    %1719 = vmatprep.subr.mxu0 0.0
    %1720 = vmatpush2.msra.mxu0 0.0
    %1721 = vmatprep.subr.mxu0 0.0
    %1722 = vmatpush2.msra.mxu0 0.0
    %1723 = vmatprep.subr.mxu0 0.0
    %1724 = vmatpush2.msra.mxu0 0.0
    %1725 = vmatprep.subr.mxu0 0.0
    %1726 = vmatpush2.msra.mxu0 0.0
    %1727 = vmatprep.mubr.f32.mxu0 0.0
    %1728 = vmatmul.mubr.f32.gmra.mxu0 %v1343
    %v1729 = vpop.f32.mrf.mxu0
    %v1730 = vadd.f32 %v398, %v1729
    %v1731 = vpop.f32.mrf.mxu0
    %1732 = vdwg.mxu0
    %v1733 = vadd.f32 %v1660, %v1730
    %v1734 = vsub.f32 0.0, %v1733
    %v1735 = vmul.f32 %v1734, 1.442695
    %v1736 = vpow.pop %v1735
    %v1737 = vadd.f32 %v1736, 1.0
    %v1738 = vrcp.pop %v1737
    %v1739 = vmul.f32 1.0, %v1738
    %1741 = vrot.lane.b32.xlu0 %v1730, 64
    %v1742 = vpop.permute.xlu0 %1741
    %v1744 = vmul.f32 %v1739, %v1742
    %1746 = vrot.lane.b32.xlu0 %v1744, 64
    %v1747 = vpop.permute.xlu0 %1746
    %v1749 = vadd.f32 %v1660, %v1747
    %v1750 = vtanh.pop %v1749
    %v1751 = vsub.f32 1.0, %v1739
    %1753 = vrot.lane.b32.xlu0 %v1750, 96
    %v1754 = vpop.permute.xlu0 %1753
    %v1756 = vmul.f32 %v1751, %v1754
    %v1757 = vmul.f32 %v1739, %v1339
    %v1758 = vadd.f32 %v1756, %v1757
    %1760 = vrot.lane.b32.xlu0 %v1758, 96
    %v1761 = vpop.permute.xlu0 %1760
    %v1762 = vsel %vm213, %v1761, 0
    %1764 = vmatprep.subr.mxu0 0.0
    %1765 = vmatpush1.msra.mxu0 0.0
    %1766 = vmatprep.subr.mxu0 0.0
    %1767 = vmatpush1.msra.mxu0 0.0
    %1768 = vmatprep.subr.mxu0 0.0
    %1769 = vmatpush1.msra.mxu0 0.0
    %1770 = vmatprep.subr.mxu0 0.0
    %1771 = vmatpush1.msra.mxu0 0.0
    %1772 = vmatprep.subr.mxu0 0.0
    %1773 = vmatpush1.msra.mxu0 0.0
    %1774 = vmatprep.subr.mxu0 0.0
    %1775 = vmatpush1.msra.mxu0 0.0
    %1776 = vmatprep.subr.mxu0 0.0
    %1777 = vmatpush1.msra.mxu0 0.0
    %1778 = vmatprep.subr.mxu0 0.0
    %1779 = vmatpush1.msra.mxu0 0.0
    %1780 = vmatprep.subr.mxu0 0.0
    %1781 = vmatpush1.msra.mxu0 0.0
    %1782 = vmatprep.subr.mxu0 0.0
    %1783 = vmatpush1.msra.mxu0 0.0
    %1784 = vmatprep.subr.mxu0 0.0
    %1785 = vmatpush1.msra.mxu0 0.0
    %1786 = vmatprep.subr.mxu0 0.0
    %1787 = vmatpush1.msra.mxu0 0.0
    %1788 = vmatprep.subr.mxu0 0.0
    %1789 = vmatpush1.msra.mxu0 %v120
    %1790 = vmatprep.subr.mxu0 0.0
    %1791 = vmatpush1.msra.mxu0 %v119
    %1792 = vmatprep.subr.mxu0 0.0
    %1793 = vmatpush1.msra.mxu0 %v118
    %1794 = vmatprep.subr.mxu0 0.0
    %1795 = vmatpush1.msra.mxu0 %v117
    %1796 = vmatprep.subr.mxu0 0.0
    %1797 = vmatpush2.msra.mxu0 0.0
    %1798 = vmatprep.subr.mxu0 0.0
    %1799 = vmatpush2.msra.mxu0 0.0
    %1800 = vmatprep.subr.mxu0 0.0
    %1801 = vmatpush2.msra.mxu0 0.0
    %1802 = vmatprep.subr.mxu0 0.0
    %1803 = vmatpush2.msra.mxu0 0.0
    %1804 = vmatprep.subr.mxu0 0.0
    %1805 = vmatpush2.msra.mxu0 0.0
    %1806 = vmatprep.subr.mxu0 0.0
    %1807 = vmatpush2.msra.mxu0 0.0
    %1808 = vmatprep.subr.mxu0 0.0
    %1809 = vmatpush2.msra.mxu0 0.0
    %1810 = vmatprep.subr.mxu0 0.0
    %1811 = vmatpush2.msra.mxu0 0.0
    %1812 = vmatprep.subr.mxu0 0.0
    %1813 = vmatpush2.msra.mxu0 0.0
    %1814 = vmatprep.subr.mxu0 0.0
    %1815 = vmatpush2.msra.mxu0 0.0
    %1816 = vmatprep.subr.mxu0 0.0
    %1817 = vmatpush2.msra.mxu0 0.0
    %1818 = vmatprep.subr.mxu0 0.0
    %1819 = vmatpush2.msra.mxu0 0.0
    %1820 = vmatprep.subr.mxu0 0.0
    %1821 = vmatpush2.msra.mxu0 0.0
    %1822 = vmatprep.subr.mxu0 0.0
    %1823 = vmatpush2.msra.mxu0 0.0
    %1824 = vmatprep.subr.mxu0 0.0
    %1825 = vmatpush2.msra.mxu0 0.0
    %1826 = vmatprep.subr.mxu0 0.0
    %1827 = vmatpush2.msra.mxu0 0.0
    %1828 = vmatprep.mubr.f32.mxu0 0.0
    %1829 = vmatmul.mubr.f32.gmra.mxu0 %v1762
    %v1830 = vpop.f32.mrf.mxu0
    %v1831 = vadd.f32 %v500, %v1830
    %v1832 = vpop.f32.mrf.mxu0
    %1833 = vdwg.mxu0
    %s1834 = scalar_lea.vmem %s11, 6
    %1835 = vst.msk [vmem:[%s1834] sm:$0x3] %vm577, %v1831
    %s1836 = scalar_lea.vmem %s0, 8
    %v1837 = vld [vmem:[%s1836] sm:$0x3]
    %v1839 = vsel %vm129, %v1837, 0
    %1841 = vmatprep.subr.mxu0 0.0
    %1842 = vmatpush1.msra.mxu0 0.0
    %1843 = vmatprep.subr.mxu0 0.0
    %1844 = vmatpush1.msra.mxu0 0.0
    %1845 = vmatprep.subr.mxu0 0.0
    %1846 = vmatpush1.msra.mxu0 0.0
    %1847 = vmatprep.subr.mxu0 0.0
    %1848 = vmatpush1.msra.mxu0 0.0
    %1849 = vmatprep.subr.mxu0 0.0
    %1850 = vmatpush1.msra.mxu0 0.0
    %1851 = vmatprep.subr.mxu0 0.0
    %1852 = vmatpush1.msra.mxu0 0.0
    %1853 = vmatprep.subr.mxu0 0.0
    %1854 = vmatpush1.msra.mxu0 0.0
    %1855 = vmatprep.subr.mxu0 0.0
    %1856 = vmatpush1.msra.mxu0 0.0
    %1857 = vmatprep.subr.mxu0 0.0
    %1858 = vmatpush1.msra.mxu0 0.0
    %1859 = vmatprep.subr.mxu0 0.0
    %1860 = vmatpush1.msra.mxu0 0.0
    %1861 = vmatprep.subr.mxu0 0.0
    %1862 = vmatpush1.msra.mxu0 0.0
    %1863 = vmatprep.subr.mxu0 0.0
    %1864 = vmatpush1.msra.mxu0 0.0
    %1865 = vmatprep.subr.mxu0 0.0
    %1866 = vmatpush1.msra.mxu0 0.0
    %1867 = vmatprep.subr.mxu0 0.0
    %1868 = vmatpush1.msra.mxu0 0.0
    %1869 = vmatprep.subr.mxu0 0.0
    %1870 = vmatpush1.msra.mxu0 0.0
    %1871 = vmatprep.subr.mxu0 0.0
    %1872 = vmatpush1.msra.mxu0 %v135
    %1873 = vmatprep.subr.mxu0 0.0
    %1874 = vmatpush2.msra.mxu0 0.0
    %1875 = vmatprep.subr.mxu0 0.0
    %1876 = vmatpush2.msra.mxu0 0.0
    %1877 = vmatprep.subr.mxu0 0.0
    %1878 = vmatpush2.msra.mxu0 0.0
    %1879 = vmatprep.subr.mxu0 0.0
    %1880 = vmatpush2.msra.mxu0 0.0
    %1881 = vmatprep.subr.mxu0 0.0
    %1882 = vmatpush2.msra.mxu0 0.0
    %1883 = vmatprep.subr.mxu0 0.0
    %1884 = vmatpush2.msra.mxu0 0.0
    %1885 = vmatprep.subr.mxu0 0.0
    %1886 = vmatpush2.msra.mxu0 0.0
    %1887 = vmatprep.subr.mxu0 0.0
    %1888 = vmatpush2.msra.mxu0 0.0
    %1889 = vmatprep.subr.mxu0 0.0
    %1890 = vmatpush2.msra.mxu0 0.0
    %1891 = vmatprep.subr.mxu0 0.0
    %1892 = vmatpush2.msra.mxu0 0.0
    %1893 = vmatprep.subr.mxu0 0.0
    %1894 = vmatpush2.msra.mxu0 0.0
    %1895 = vmatprep.subr.mxu0 0.0
    %1896 = vmatpush2.msra.mxu0 0.0
    %1897 = vmatprep.subr.mxu0 0.0
    %1898 = vmatpush2.msra.mxu0 0.0
    %1899 = vmatprep.subr.mxu0 0.0
    %1900 = vmatpush2.msra.mxu0 0.0
    %1901 = vmatprep.subr.mxu0 0.0
    %1902 = vmatpush2.msra.mxu0 0.0
    %1903 = vmatprep.subr.mxu0 0.0
    %1904 = vmatpush2.msra.mxu0 0.0
    %1905 = vmatprep.mubr.f32.mxu0 0.0
    %1906 = vmatmul.mubr.f32.gmra.mxu0 %v1839
    %v1907 = vpop.f32.mrf.mxu0
    %v1908 = vadd.f32 %v127, %v1907
    %v1909 = vpop.f32.mrf.mxu0
    %1910 = vdwg.mxu0
    %1911 = vmatprep.subr.mxu0 0.0
    %1912 = vmatpush1.msra.mxu0 0.0
    %1913 = vmatprep.subr.mxu0 0.0
    %1914 = vmatpush1.msra.mxu0 0.0
    %1915 = vmatprep.subr.mxu0 0.0
    %1916 = vmatpush1.msra.mxu0 0.0
    %1917 = vmatprep.subr.mxu0 0.0
    %1918 = vmatpush1.msra.mxu0 0.0
    %1919 = vmatprep.subr.mxu0 0.0
    %1920 = vmatpush1.msra.mxu0 0.0
    %1921 = vmatprep.subr.mxu0 0.0
    %1922 = vmatpush1.msra.mxu0 0.0
    %1923 = vmatprep.subr.mxu0 0.0
    %1924 = vmatpush1.msra.mxu0 0.0
    %1925 = vmatprep.subr.mxu0 0.0
    %1926 = vmatpush1.msra.mxu0 0.0
    %1927 = vmatprep.subr.mxu0 0.0
    %1928 = vmatpush1.msra.mxu0 0.0
    %1929 = vmatprep.subr.mxu0 0.0
    %1930 = vmatpush1.msra.mxu0 0.0
    %1931 = vmatprep.subr.mxu0 0.0
    %1932 = vmatpush1.msra.mxu0 0.0
    %1933 = vmatprep.subr.mxu0 0.0
    %1934 = vmatpush1.msra.mxu0 0.0
    %1935 = vmatprep.subr.mxu0 0.0
    %1936 = vmatpush1.msra.mxu0 %v104
    %1937 = vmatprep.subr.mxu0 0.0
    %1938 = vmatpush1.msra.mxu0 %v103
    %1939 = vmatprep.subr.mxu0 0.0
    %1940 = vmatpush1.msra.mxu0 %v102
    %1941 = vmatprep.subr.mxu0 0.0
    %1942 = vmatpush1.msra.mxu0 %v101
    %1943 = vmatprep.subr.mxu0 0.0
    %1944 = vmatpush2.msra.mxu0 0.0
    %1945 = vmatprep.subr.mxu0 0.0
    %1946 = vmatpush2.msra.mxu0 0.0
    %1947 = vmatprep.subr.mxu0 0.0
    %1948 = vmatpush2.msra.mxu0 0.0
    %1949 = vmatprep.subr.mxu0 0.0
    %1950 = vmatpush2.msra.mxu0 0.0
    %1951 = vmatprep.subr.mxu0 0.0
    %1952 = vmatpush2.msra.mxu0 0.0
    %1953 = vmatprep.subr.mxu0 0.0
    %1954 = vmatpush2.msra.mxu0 0.0
    %1955 = vmatprep.subr.mxu0 0.0
    %1956 = vmatpush2.msra.mxu0 0.0
    %1957 = vmatprep.subr.mxu0 0.0
    %1958 = vmatpush2.msra.mxu0 0.0
    %1959 = vmatprep.subr.mxu0 0.0
    %1960 = vmatpush2.msra.mxu0 0.0
    %1961 = vmatprep.subr.mxu0 0.0
    %1962 = vmatpush2.msra.mxu0 0.0
    %1963 = vmatprep.subr.mxu0 0.0
    %1964 = vmatpush2.msra.mxu0 0.0
    %1965 = vmatprep.subr.mxu0 0.0
    %1966 = vmatpush2.msra.mxu0 0.0
    %1967 = vmatprep.subr.mxu0 0.0
    %1968 = vmatpush2.msra.mxu0 0.0
    %1969 = vmatprep.subr.mxu0 0.0
    %1970 = vmatpush2.msra.mxu0 0.0
    %1971 = vmatprep.subr.mxu0 0.0
    %1972 = vmatpush2.msra.mxu0 0.0
    %1973 = vmatprep.subr.mxu0 0.0
    %1974 = vmatpush2.msra.mxu0 0.0
    %1975 = vmatprep.mubr.f32.mxu0 0.0
    %1976 = vmatmul.mubr.f32.gmra.mxu0 %v1591
    %v1977 = vpop.f32.mrf.mxu0
    %v1978 = vadd.f32 %v211, %v1977
    %v1979 = vpop.f32.mrf.mxu0
    %1980 = vdwg.mxu0
    %v1981 = vadd.f32 %v1908, %v1978
    %v1982 = vsub.f32 0.0, %v1981
    %v1983 = vmul.f32 %v1982, 1.442695
    %v1984 = vpow.pop %v1983
    %v1985 = vadd.f32 %v1984, 1.0
    %v1986 = vrcp.pop %v1985
    %v1987 = vmul.f32 1.0, %v1986
    %1989 = vrot.lane.b32.xlu0 %v1978, 64
    %v1990 = vpop.permute.xlu0 %1989
    %v1992 = vmul.f32 %v1987, %v1990
    %1994 = vrot.lane.b32.xlu0 %v1992, 64
    %v1995 = vpop.permute.xlu0 %1994
    %v1997 = vadd.f32 %v1908, %v1995
    %v1998 = vtanh.pop %v1997
    %v1999 = vsub.f32 1.0, %v1987
    %2001 = vrot.lane.b32.xlu0 %v1998, 96
    %v2002 = vpop.permute.xlu0 %2001
    %v2004 = vmul.f32 %v1999, %v2002
    %v2005 = vmul.f32 %v1987, %v1587
    %v2006 = vadd.f32 %v2004, %v2005
    %2008 = vrot.lane.b32.xlu0 %v2006, 96
    %v2009 = vpop.permute.xlu0 %2008
    %v2010 = vsel %vm213, %v2009, 0
    %2012 = vmatprep.subr.mxu0 0.0
    %2013 = vmatpush1.msra.mxu0 0.0
    %2014 = vmatprep.subr.mxu0 0.0
    %2015 = vmatpush1.msra.mxu0 0.0
    %2016 = vmatprep.subr.mxu0 0.0
    %2017 = vmatpush1.msra.mxu0 0.0
    %2018 = vmatprep.subr.mxu0 0.0
    %2019 = vmatpush1.msra.mxu0 0.0
    %2020 = vmatprep.subr.mxu0 0.0
    %2021 = vmatpush1.msra.mxu0 0.0
    %2022 = vmatprep.subr.mxu0 0.0
    %2023 = vmatpush1.msra.mxu0 0.0
    %2024 = vmatprep.subr.mxu0 0.0
    %2025 = vmatpush1.msra.mxu0 0.0
    %2026 = vmatprep.subr.mxu0 0.0
    %2027 = vmatpush1.msra.mxu0 0.0
    %2028 = vmatprep.subr.mxu0 0.0
    %2029 = vmatpush1.msra.mxu0 0.0
    %2030 = vmatprep.subr.mxu0 0.0
    %2031 = vmatpush1.msra.mxu0 0.0
    %2032 = vmatprep.subr.mxu0 0.0
    %2033 = vmatpush1.msra.mxu0 0.0
    %2034 = vmatprep.subr.mxu0 0.0
    %2035 = vmatpush1.msra.mxu0 0.0
    %2036 = vmatprep.subr.mxu0 0.0
    %2037 = vmatpush1.msra.mxu0 %v110
    %2038 = vmatprep.subr.mxu0 0.0
    %2039 = vmatpush1.msra.mxu0 %v109
    %2040 = vmatprep.subr.mxu0 0.0
    %2041 = vmatpush1.msra.mxu0 %v108
    %2042 = vmatprep.subr.mxu0 0.0
    %2043 = vmatpush1.msra.mxu0 %v107
    %2044 = vmatprep.subr.mxu0 0.0
    %2045 = vmatpush2.msra.mxu0 0.0
    %2046 = vmatprep.subr.mxu0 0.0
    %2047 = vmatpush2.msra.mxu0 0.0
    %2048 = vmatprep.subr.mxu0 0.0
    %2049 = vmatpush2.msra.mxu0 0.0
    %2050 = vmatprep.subr.mxu0 0.0
    %2051 = vmatpush2.msra.mxu0 0.0
    %2052 = vmatprep.subr.mxu0 0.0
    %2053 = vmatpush2.msra.mxu0 0.0
    %2054 = vmatprep.subr.mxu0 0.0
    %2055 = vmatpush2.msra.mxu0 0.0
    %2056 = vmatprep.subr.mxu0 0.0
    %2057 = vmatpush2.msra.mxu0 0.0
    %2058 = vmatprep.subr.mxu0 0.0
    %2059 = vmatpush2.msra.mxu0 0.0
    %2060 = vmatprep.subr.mxu0 0.0
    %2061 = vmatpush2.msra.mxu0 0.0
    %2062 = vmatprep.subr.mxu0 0.0
    %2063 = vmatpush2.msra.mxu0 0.0
    %2064 = vmatprep.subr.mxu0 0.0
    %2065 = vmatpush2.msra.mxu0 0.0
    %2066 = vmatprep.subr.mxu0 0.0
    %2067 = vmatpush2.msra.mxu0 0.0
    %2068 = vmatprep.subr.mxu0 0.0
    %2069 = vmatpush2.msra.mxu0 0.0
    %2070 = vmatprep.subr.mxu0 0.0
    %2071 = vmatpush2.msra.mxu0 0.0
    %2072 = vmatprep.subr.mxu0 0.0
    %2073 = vmatpush2.msra.mxu0 0.0
    %2074 = vmatprep.subr.mxu0 0.0
    %2075 = vmatpush2.msra.mxu0 0.0
    %2076 = vmatprep.mubr.f32.mxu0 0.0
    %2077 = vmatmul.mubr.f32.gmra.mxu0 %v2010
    %v2078 = vpop.f32.mrf.mxu0
    %v2079 = vadd.f32 %v317, %v2078
    %v2080 = vpop.f32.mrf.mxu0
    %2081 = vdwg.mxu0
    %2082 = vmatprep.subr.mxu0 0.0
    %2083 = vmatpush1.msra.mxu0 0.0
    %2084 = vmatprep.subr.mxu0 0.0
    %2085 = vmatpush1.msra.mxu0 0.0
    %2086 = vmatprep.subr.mxu0 0.0
    %2087 = vmatpush1.msra.mxu0 0.0
    %2088 = vmatprep.subr.mxu0 0.0
    %2089 = vmatpush1.msra.mxu0 0.0
    %2090 = vmatprep.subr.mxu0 0.0
    %2091 = vmatpush1.msra.mxu0 0.0
    %2092 = vmatprep.subr.mxu0 0.0
    %2093 = vmatpush1.msra.mxu0 0.0
    %2094 = vmatprep.subr.mxu0 0.0
    %2095 = vmatpush1.msra.mxu0 0.0
    %2096 = vmatprep.subr.mxu0 0.0
    %2097 = vmatpush1.msra.mxu0 0.0
    %2098 = vmatprep.subr.mxu0 0.0
    %2099 = vmatpush1.msra.mxu0 0.0
    %2100 = vmatprep.subr.mxu0 0.0
    %2101 = vmatpush1.msra.mxu0 0.0
    %2102 = vmatprep.subr.mxu0 0.0
    %2103 = vmatpush1.msra.mxu0 0.0
    %2104 = vmatprep.subr.mxu0 0.0
    %2105 = vmatpush1.msra.mxu0 0.0
    %2106 = vmatprep.subr.mxu0 0.0
    %2107 = vmatpush1.msra.mxu0 %v114
    %2108 = vmatprep.subr.mxu0 0.0
    %2109 = vmatpush1.msra.mxu0 %v113
    %2110 = vmatprep.subr.mxu0 0.0
    %2111 = vmatpush1.msra.mxu0 %v112
    %2112 = vmatprep.subr.mxu0 0.0
    %2113 = vmatpush1.msra.mxu0 %v111
    %2114 = vmatprep.subr.mxu0 0.0
    %2115 = vmatpush2.msra.mxu0 0.0
    %2116 = vmatprep.subr.mxu0 0.0
    %2117 = vmatpush2.msra.mxu0 0.0
    %2118 = vmatprep.subr.mxu0 0.0
    %2119 = vmatpush2.msra.mxu0 0.0
    %2120 = vmatprep.subr.mxu0 0.0
    %2121 = vmatpush2.msra.mxu0 0.0
    %2122 = vmatprep.subr.mxu0 0.0
    %2123 = vmatpush2.msra.mxu0 0.0
    %2124 = vmatprep.subr.mxu0 0.0
    %2125 = vmatpush2.msra.mxu0 0.0
    %2126 = vmatprep.subr.mxu0 0.0
    %2127 = vmatpush2.msra.mxu0 0.0
    %2128 = vmatprep.subr.mxu0 0.0
    %2129 = vmatpush2.msra.mxu0 0.0
    %2130 = vmatprep.subr.mxu0 0.0
    %2131 = vmatpush2.msra.mxu0 0.0
    %2132 = vmatprep.subr.mxu0 0.0
    %2133 = vmatpush2.msra.mxu0 0.0
    %2134 = vmatprep.subr.mxu0 0.0
    %2135 = vmatpush2.msra.mxu0 0.0
    %2136 = vmatprep.subr.mxu0 0.0
    %2137 = vmatpush2.msra.mxu0 0.0
    %2138 = vmatprep.subr.mxu0 0.0
    %2139 = vmatpush2.msra.mxu0 0.0
    %2140 = vmatprep.subr.mxu0 0.0
    %2141 = vmatpush2.msra.mxu0 0.0
    %2142 = vmatprep.subr.mxu0 0.0
    %2143 = vmatpush2.msra.mxu0 0.0
    %2144 = vmatprep.subr.mxu0 0.0
    %2145 = vmatpush2.msra.mxu0 0.0
    %2146 = vmatprep.mubr.f32.mxu0 0.0
    %2147 = vmatmul.mubr.f32.gmra.mxu0 %v1762
    %v2148 = vpop.f32.mrf.mxu0
    %v2149 = vadd.f32 %v398, %v2148
    %v2150 = vpop.f32.mrf.mxu0
    %2151 = vdwg.mxu0
    %v2152 = vadd.f32 %v2079, %v2149
    %v2153 = vsub.f32 0.0, %v2152
    %v2154 = vmul.f32 %v2153, 1.442695
    %v2155 = vpow.pop %v2154
    %v2156 = vadd.f32 %v2155, 1.0
    %v2157 = vrcp.pop %v2156
    %v2158 = vmul.f32 1.0, %v2157
    %2160 = vrot.lane.b32.xlu0 %v2149, 64
    %v2161 = vpop.permute.xlu0 %2160
    %v2163 = vmul.f32 %v2158, %v2161
    %2165 = vrot.lane.b32.xlu0 %v2163, 64
    %v2166 = vpop.permute.xlu0 %2165
    %v2168 = vadd.f32 %v2079, %v2166
    %v2169 = vtanh.pop %v2168
    %v2170 = vsub.f32 1.0, %v2158
    %2172 = vrot.lane.b32.xlu0 %v2169, 96
    %v2173 = vpop.permute.xlu0 %2172
    %v2175 = vmul.f32 %v2170, %v2173
    %v2176 = vmul.f32 %v2158, %v1758
    %v2177 = vadd.f32 %v2175, %v2176
    %2179 = vrot.lane.b32.xlu0 %v2177, 96
    %v2180 = vpop.permute.xlu0 %2179
    %v2181 = vsel %vm213, %v2180, 0
    %2183 = vmatprep.subr.mxu0 0.0
    %2184 = vmatpush1.msra.mxu0 0.0
    %2185 = vmatprep.subr.mxu0 0.0
    %2186 = vmatpush1.msra.mxu0 0.0
    %2187 = vmatprep.subr.mxu0 0.0
    %2188 = vmatpush1.msra.mxu0 0.0
    %2189 = vmatprep.subr.mxu0 0.0
    %2190 = vmatpush1.msra.mxu0 0.0
    %2191 = vmatprep.subr.mxu0 0.0
    %2192 = vmatpush1.msra.mxu0 0.0
    %2193 = vmatprep.subr.mxu0 0.0
    %2194 = vmatpush1.msra.mxu0 0.0
    %2195 = vmatprep.subr.mxu0 0.0
    %2196 = vmatpush1.msra.mxu0 0.0
    %2197 = vmatprep.subr.mxu0 0.0
    %2198 = vmatpush1.msra.mxu0 0.0
    %2199 = vmatprep.subr.mxu0 0.0
    %2200 = vmatpush1.msra.mxu0 0.0
    %2201 = vmatprep.subr.mxu0 0.0
    %2202 = vmatpush1.msra.mxu0 0.0
    %2203 = vmatprep.subr.mxu0 0.0
    %2204 = vmatpush1.msra.mxu0 0.0
    %2205 = vmatprep.subr.mxu0 0.0
    %2206 = vmatpush1.msra.mxu0 0.0
    %2207 = vmatprep.subr.mxu0 0.0
    %2208 = vmatpush1.msra.mxu0 %v120
    %2209 = vmatprep.subr.mxu0 0.0
    %2210 = vmatpush1.msra.mxu0 %v119
    %2211 = vmatprep.subr.mxu0 0.0
    %2212 = vmatpush1.msra.mxu0 %v118
    %2213 = vmatprep.subr.mxu0 0.0
    %2214 = vmatpush1.msra.mxu0 %v117
    %2215 = vmatprep.subr.mxu0 0.0
    %2216 = vmatpush2.msra.mxu0 0.0
    %2217 = vmatprep.subr.mxu0 0.0
    %2218 = vmatpush2.msra.mxu0 0.0
    %2219 = vmatprep.subr.mxu0 0.0
    %2220 = vmatpush2.msra.mxu0 0.0
    %2221 = vmatprep.subr.mxu0 0.0
    %2222 = vmatpush2.msra.mxu0 0.0
    %2223 = vmatprep.subr.mxu0 0.0
    %2224 = vmatpush2.msra.mxu0 0.0
    %2225 = vmatprep.subr.mxu0 0.0
    %2226 = vmatpush2.msra.mxu0 0.0
    %2227 = vmatprep.subr.mxu0 0.0
    %2228 = vmatpush2.msra.mxu0 0.0
    %2229 = vmatprep.subr.mxu0 0.0
    %2230 = vmatpush2.msra.mxu0 0.0
    %2231 = vmatprep.subr.mxu0 0.0
    %2232 = vmatpush2.msra.mxu0 0.0
    %2233 = vmatprep.subr.mxu0 0.0
    %2234 = vmatpush2.msra.mxu0 0.0
    %2235 = vmatprep.subr.mxu0 0.0
    %2236 = vmatpush2.msra.mxu0 0.0
    %2237 = vmatprep.subr.mxu0 0.0
    %2238 = vmatpush2.msra.mxu0 0.0
    %2239 = vmatprep.subr.mxu0 0.0
    %2240 = vmatpush2.msra.mxu0 0.0
    %2241 = vmatprep.subr.mxu0 0.0
    %2242 = vmatpush2.msra.mxu0 0.0
    %2243 = vmatprep.subr.mxu0 0.0
    %2244 = vmatpush2.msra.mxu0 0.0
    %2245 = vmatprep.subr.mxu0 0.0
    %2246 = vmatpush2.msra.mxu0 0.0
    %2247 = vmatprep.mubr.f32.mxu0 0.0
    %2248 = vmatmul.mubr.f32.gmra.mxu0 %v2181
    %v2249 = vpop.f32.mrf.mxu0
    %v2250 = vadd.f32 %v500, %v2249
    %v2251 = vpop.f32.mrf.mxu0
    %2252 = vdwg.mxu0
    %s2253 = scalar_lea.vmem %s11, 8
    %2254 = vst.msk [vmem:[%s2253] sm:$0x3] %vm577, %v2250
    %s2255 = scalar_lea.vmem %s0, 10
    %v2256 = vld [vmem:[%s2255] sm:$0x3]
    %v2258 = vsel %vm129, %v2256, 0
    %2260 = vmatprep.subr.mxu0 0.0
    %2261 = vmatpush1.msra.mxu0 0.0
    %2262 = vmatprep.subr.mxu0 0.0
    %2263 = vmatpush1.msra.mxu0 0.0
    %2264 = vmatprep.subr.mxu0 0.0
    %2265 = vmatpush1.msra.mxu0 0.0
    %2266 = vmatprep.subr.mxu0 0.0
    %2267 = vmatpush1.msra.mxu0 0.0
    %2268 = vmatprep.subr.mxu0 0.0
    %2269 = vmatpush1.msra.mxu0 0.0
    %2270 = vmatprep.subr.mxu0 0.0
    %2271 = vmatpush1.msra.mxu0 0.0
    %2272 = vmatprep.subr.mxu0 0.0
    %2273 = vmatpush1.msra.mxu0 0.0
    %2274 = vmatprep.subr.mxu0 0.0
    %2275 = vmatpush1.msra.mxu0 0.0
    %2276 = vmatprep.subr.mxu0 0.0
    %2277 = vmatpush1.msra.mxu0 0.0
    %2278 = vmatprep.subr.mxu0 0.0
    %2279 = vmatpush1.msra.mxu0 0.0
    %2280 = vmatprep.subr.mxu0 0.0
    %2281 = vmatpush1.msra.mxu0 0.0
    %2282 = vmatprep.subr.mxu0 0.0
    %2283 = vmatpush1.msra.mxu0 0.0
    %2284 = vmatprep.subr.mxu0 0.0
    %2285 = vmatpush1.msra.mxu0 0.0
    %2286 = vmatprep.subr.mxu0 0.0
    %2287 = vmatpush1.msra.mxu0 0.0
    %2288 = vmatprep.subr.mxu0 0.0
    %2289 = vmatpush1.msra.mxu0 0.0
    %2290 = vmatprep.subr.mxu0 0.0
    %2291 = vmatpush1.msra.mxu0 %v135
    %2292 = vmatprep.subr.mxu0 0.0
    %2293 = vmatpush2.msra.mxu0 0.0
    %2294 = vmatprep.subr.mxu0 0.0
    %2295 = vmatpush2.msra.mxu0 0.0
    %2296 = vmatprep.subr.mxu0 0.0
    %2297 = vmatpush2.msra.mxu0 0.0
    %2298 = vmatprep.subr.mxu0 0.0
    %2299 = vmatpush2.msra.mxu0 0.0
    %2300 = vmatprep.subr.mxu0 0.0
    %2301 = vmatpush2.msra.mxu0 0.0
    %2302 = vmatprep.subr.mxu0 0.0
    %2303 = vmatpush2.msra.mxu0 0.0
    %2304 = vmatprep.subr.mxu0 0.0
    %2305 = vmatpush2.msra.mxu0 0.0
    %2306 = vmatprep.subr.mxu0 0.0
    %2307 = vmatpush2.msra.mxu0 0.0
    %2308 = vmatprep.subr.mxu0 0.0
    %2309 = vmatpush2.msra.mxu0 0.0
    %2310 = vmatprep.subr.mxu0 0.0
    %2311 = vmatpush2.msra.mxu0 0.0
    %2312 = vmatprep.subr.mxu0 0.0
    %2313 = vmatpush2.msra.mxu0 0.0
    %2314 = vmatprep.subr.mxu0 0.0
    %2315 = vmatpush2.msra.mxu0 0.0
    %2316 = vmatprep.subr.mxu0 0.0
    %2317 = vmatpush2.msra.mxu0 0.0
    %2318 = vmatprep.subr.mxu0 0.0
    %2319 = vmatpush2.msra.mxu0 0.0
    %2320 = vmatprep.subr.mxu0 0.0
    %2321 = vmatpush2.msra.mxu0 0.0
    %2322 = vmatprep.subr.mxu0 0.0
    %2323 = vmatpush2.msra.mxu0 0.0
    %2324 = vmatprep.mubr.f32.mxu0 0.0
    %2325 = vmatmul.mubr.f32.gmra.mxu0 %v2258
    %v2326 = vpop.f32.mrf.mxu0
    %v2327 = vadd.f32 %v127, %v2326
    %v2328 = vpop.f32.mrf.mxu0
    %2329 = vdwg.mxu0
    %2330 = vmatprep.subr.mxu0 0.0
    %2331 = vmatpush1.msra.mxu0 0.0
    %2332 = vmatprep.subr.mxu0 0.0
    %2333 = vmatpush1.msra.mxu0 0.0
    %2334 = vmatprep.subr.mxu0 0.0
    %2335 = vmatpush1.msra.mxu0 0.0
    %2336 = vmatprep.subr.mxu0 0.0
    %2337 = vmatpush1.msra.mxu0 0.0
    %2338 = vmatprep.subr.mxu0 0.0
    %2339 = vmatpush1.msra.mxu0 0.0
    %2340 = vmatprep.subr.mxu0 0.0
    %2341 = vmatpush1.msra.mxu0 0.0
    %2342 = vmatprep.subr.mxu0 0.0
    %2343 = vmatpush1.msra.mxu0 0.0
    %2344 = vmatprep.subr.mxu0 0.0
    %2345 = vmatpush1.msra.mxu0 0.0
    %2346 = vmatprep.subr.mxu0 0.0
    %2347 = vmatpush1.msra.mxu0 0.0
    %2348 = vmatprep.subr.mxu0 0.0
    %2349 = vmatpush1.msra.mxu0 0.0
    %2350 = vmatprep.subr.mxu0 0.0
    %2351 = vmatpush1.msra.mxu0 0.0
    %2352 = vmatprep.subr.mxu0 0.0
    %2353 = vmatpush1.msra.mxu0 0.0
    %2354 = vmatprep.subr.mxu0 0.0
    %2355 = vmatpush1.msra.mxu0 %v104
    %2356 = vmatprep.subr.mxu0 0.0
    %2357 = vmatpush1.msra.mxu0 %v103
    %2358 = vmatprep.subr.mxu0 0.0
    %2359 = vmatpush1.msra.mxu0 %v102
    %2360 = vmatprep.subr.mxu0 0.0
    %2361 = vmatpush1.msra.mxu0 %v101
    %2362 = vmatprep.subr.mxu0 0.0
    %2363 = vmatpush2.msra.mxu0 0.0
    %2364 = vmatprep.subr.mxu0 0.0
    %2365 = vmatpush2.msra.mxu0 0.0
    %2366 = vmatprep.subr.mxu0 0.0
    %2367 = vmatpush2.msra.mxu0 0.0
    %2368 = vmatprep.subr.mxu0 0.0
    %2369 = vmatpush2.msra.mxu0 0.0
    %2370 = vmatprep.subr.mxu0 0.0
    %2371 = vmatpush2.msra.mxu0 0.0
    %2372 = vmatprep.subr.mxu0 0.0
    %2373 = vmatpush2.msra.mxu0 0.0
    %2374 = vmatprep.subr.mxu0 0.0
    %2375 = vmatpush2.msra.mxu0 0.0
    %2376 = vmatprep.subr.mxu0 0.0
    %2377 = vmatpush2.msra.mxu0 0.0
    %2378 = vmatprep.subr.mxu0 0.0
    %2379 = vmatpush2.msra.mxu0 0.0
    %2380 = vmatprep.subr.mxu0 0.0
    %2381 = vmatpush2.msra.mxu0 0.0
    %2382 = vmatprep.subr.mxu0 0.0
    %2383 = vmatpush2.msra.mxu0 0.0
    %2384 = vmatprep.subr.mxu0 0.0
    %2385 = vmatpush2.msra.mxu0 0.0
    %2386 = vmatprep.subr.mxu0 0.0
    %2387 = vmatpush2.msra.mxu0 0.0
    %2388 = vmatprep.subr.mxu0 0.0
    %2389 = vmatpush2.msra.mxu0 0.0
    %2390 = vmatprep.subr.mxu0 0.0
    %2391 = vmatpush2.msra.mxu0 0.0
    %2392 = vmatprep.subr.mxu0 0.0
    %2393 = vmatpush2.msra.mxu0 0.0
    %2394 = vmatprep.mubr.f32.mxu0 0.0
    %2395 = vmatmul.mubr.f32.gmra.mxu0 %v2010
    %v2396 = vpop.f32.mrf.mxu0
    %v2397 = vadd.f32 %v211, %v2396
    %v2398 = vpop.f32.mrf.mxu0
    %2399 = vdwg.mxu0
    %v2400 = vadd.f32 %v2327, %v2397
    %v2401 = vsub.f32 0.0, %v2400
    %v2402 = vmul.f32 %v2401, 1.442695
    %v2403 = vpow.pop %v2402
    %v2404 = vadd.f32 %v2403, 1.0
    %v2405 = vrcp.pop %v2404
    %v2406 = vmul.f32 1.0, %v2405
    %2408 = vrot.lane.b32.xlu0 %v2397, 64
    %v2409 = vpop.permute.xlu0 %2408
    %v2411 = vmul.f32 %v2406, %v2409
    %2413 = vrot.lane.b32.xlu0 %v2411, 64
    %v2414 = vpop.permute.xlu0 %2413
    %v2416 = vadd.f32 %v2327, %v2414
    %v2417 = vtanh.pop %v2416
    %v2418 = vsub.f32 1.0, %v2406
    %2420 = vrot.lane.b32.xlu0 %v2417, 96
    %v2421 = vpop.permute.xlu0 %2420
    %v2423 = vmul.f32 %v2418, %v2421
    %v2424 = vmul.f32 %v2406, %v2006
    %v2425 = vadd.f32 %v2423, %v2424
    %2427 = vrot.lane.b32.xlu0 %v2425, 96
    %v2428 = vpop.permute.xlu0 %2427
    %v2429 = vsel %vm213, %v2428, 0
    %2431 = vmatprep.subr.mxu0 0.0
    %2432 = vmatpush1.msra.mxu0 0.0
    %2433 = vmatprep.subr.mxu0 0.0
    %2434 = vmatpush1.msra.mxu0 0.0
    %2435 = vmatprep.subr.mxu0 0.0
    %2436 = vmatpush1.msra.mxu0 0.0
    %2437 = vmatprep.subr.mxu0 0.0
    %2438 = vmatpush1.msra.mxu0 0.0
    %2439 = vmatprep.subr.mxu0 0.0
    %2440 = vmatpush1.msra.mxu0 0.0
    %2441 = vmatprep.subr.mxu0 0.0
    %2442 = vmatpush1.msra.mxu0 0.0
    %2443 = vmatprep.subr.mxu0 0.0
    %2444 = vmatpush1.msra.mxu0 0.0
    %2445 = vmatprep.subr.mxu0 0.0
    %2446 = vmatpush1.msra.mxu0 0.0
    %2447 = vmatprep.subr.mxu0 0.0
    %2448 = vmatpush1.msra.mxu0 0.0
    %2449 = vmatprep.subr.mxu0 0.0
    %2450 = vmatpush1.msra.mxu0 0.0
    %2451 = vmatprep.subr.mxu0 0.0
    %2452 = vmatpush1.msra.mxu0 0.0
    %2453 = vmatprep.subr.mxu0 0.0
    %2454 = vmatpush1.msra.mxu0 0.0
    %2455 = vmatprep.subr.mxu0 0.0
    %2456 = vmatpush1.msra.mxu0 %v110
    %2457 = vmatprep.subr.mxu0 0.0
    %2458 = vmatpush1.msra.mxu0 %v109
    %2459 = vmatprep.subr.mxu0 0.0
    %2460 = vmatpush1.msra.mxu0 %v108
    %2461 = vmatprep.subr.mxu0 0.0
    %2462 = vmatpush1.msra.mxu0 %v107
    %2463 = vmatprep.subr.mxu0 0.0
    %2464 = vmatpush2.msra.mxu0 0.0
    %2465 = vmatprep.subr.mxu0 0.0
    %2466 = vmatpush2.msra.mxu0 0.0
    %2467 = vmatprep.subr.mxu0 0.0
    %2468 = vmatpush2.msra.mxu0 0.0
    %2469 = vmatprep.subr.mxu0 0.0
    %2470 = vmatpush2.msra.mxu0 0.0
    %2471 = vmatprep.subr.mxu0 0.0
    %2472 = vmatpush2.msra.mxu0 0.0
    %2473 = vmatprep.subr.mxu0 0.0
    %2474 = vmatpush2.msra.mxu0 0.0
    %2475 = vmatprep.subr.mxu0 0.0
    %2476 = vmatpush2.msra.mxu0 0.0
    %2477 = vmatprep.subr.mxu0 0.0
    %2478 = vmatpush2.msra.mxu0 0.0
    %2479 = vmatprep.subr.mxu0 0.0
    %2480 = vmatpush2.msra.mxu0 0.0
    %2481 = vmatprep.subr.mxu0 0.0
    %2482 = vmatpush2.msra.mxu0 0.0
    %2483 = vmatprep.subr.mxu0 0.0
    %2484 = vmatpush2.msra.mxu0 0.0
    %2485 = vmatprep.subr.mxu0 0.0
    %2486 = vmatpush2.msra.mxu0 0.0
    %2487 = vmatprep.subr.mxu0 0.0
    %2488 = vmatpush2.msra.mxu0 0.0
    %2489 = vmatprep.subr.mxu0 0.0
    %2490 = vmatpush2.msra.mxu0 0.0
    %2491 = vmatprep.subr.mxu0 0.0
    %2492 = vmatpush2.msra.mxu0 0.0
    %2493 = vmatprep.subr.mxu0 0.0
    %2494 = vmatpush2.msra.mxu0 0.0
    %2495 = vmatprep.mubr.f32.mxu0 0.0
    %2496 = vmatmul.mubr.f32.gmra.mxu0 %v2429
    %v2497 = vpop.f32.mrf.mxu0
    %v2498 = vadd.f32 %v317, %v2497
    %v2499 = vpop.f32.mrf.mxu0
    %2500 = vdwg.mxu0
    %2501 = vmatprep.subr.mxu0 0.0
    %2502 = vmatpush1.msra.mxu0 0.0
    %2503 = vmatprep.subr.mxu0 0.0
    %2504 = vmatpush1.msra.mxu0 0.0
    %2505 = vmatprep.subr.mxu0 0.0
    %2506 = vmatpush1.msra.mxu0 0.0
    %2507 = vmatprep.subr.mxu0 0.0
    %2508 = vmatpush1.msra.mxu0 0.0
    %2509 = vmatprep.subr.mxu0 0.0
    %2510 = vmatpush1.msra.mxu0 0.0
    %2511 = vmatprep.subr.mxu0 0.0
    %2512 = vmatpush1.msra.mxu0 0.0
    %2513 = vmatprep.subr.mxu0 0.0
    %2514 = vmatpush1.msra.mxu0 0.0
    %2515 = vmatprep.subr.mxu0 0.0
    %2516 = vmatpush1.msra.mxu0 0.0
    %2517 = vmatprep.subr.mxu0 0.0
    %2518 = vmatpush1.msra.mxu0 0.0
    %2519 = vmatprep.subr.mxu0 0.0
    %2520 = vmatpush1.msra.mxu0 0.0
    %2521 = vmatprep.subr.mxu0 0.0
    %2522 = vmatpush1.msra.mxu0 0.0
    %2523 = vmatprep.subr.mxu0 0.0
    %2524 = vmatpush1.msra.mxu0 0.0
    %2525 = vmatprep.subr.mxu0 0.0
    %2526 = vmatpush1.msra.mxu0 %v114
    %2527 = vmatprep.subr.mxu0 0.0
    %2528 = vmatpush1.msra.mxu0 %v113
    %2529 = vmatprep.subr.mxu0 0.0
    %2530 = vmatpush1.msra.mxu0 %v112
    %2531 = vmatprep.subr.mxu0 0.0
    %2532 = vmatpush1.msra.mxu0 %v111
    %2533 = vmatprep.subr.mxu0 0.0
    %2534 = vmatpush2.msra.mxu0 0.0
    %2535 = vmatprep.subr.mxu0 0.0
    %2536 = vmatpush2.msra.mxu0 0.0
    %2537 = vmatprep.subr.mxu0 0.0
    %2538 = vmatpush2.msra.mxu0 0.0
    %2539 = vmatprep.subr.mxu0 0.0
    %2540 = vmatpush2.msra.mxu0 0.0
    %2541 = vmatprep.subr.mxu0 0.0
    %2542 = vmatpush2.msra.mxu0 0.0
    %2543 = vmatprep.subr.mxu0 0.0
    %2544 = vmatpush2.msra.mxu0 0.0
    %2545 = vmatprep.subr.mxu0 0.0
    %2546 = vmatpush2.msra.mxu0 0.0
    %2547 = vmatprep.subr.mxu0 0.0
    %2548 = vmatpush2.msra.mxu0 0.0
    %2549 = vmatprep.subr.mxu0 0.0
    %2550 = vmatpush2.msra.mxu0 0.0
    %2551 = vmatprep.subr.mxu0 0.0
    %2552 = vmatpush2.msra.mxu0 0.0
    %2553 = vmatprep.subr.mxu0 0.0
    %2554 = vmatpush2.msra.mxu0 0.0
    %2555 = vmatprep.subr.mxu0 0.0
    %2556 = vmatpush2.msra.mxu0 0.0
    %2557 = vmatprep.subr.mxu0 0.0
    %2558 = vmatpush2.msra.mxu0 0.0
    %2559 = vmatprep.subr.mxu0 0.0
    %2560 = vmatpush2.msra.mxu0 0.0
    %2561 = vmatprep.subr.mxu0 0.0
    %2562 = vmatpush2.msra.mxu0 0.0
    %2563 = vmatprep.subr.mxu0 0.0
    %2564 = vmatpush2.msra.mxu0 0.0
    %2565 = vmatprep.mubr.f32.mxu0 0.0
    %2566 = vmatmul.mubr.f32.gmra.mxu0 %v2181
    %v2567 = vpop.f32.mrf.mxu0
    %v2568 = vadd.f32 %v398, %v2567
    %v2569 = vpop.f32.mrf.mxu0
    %2570 = vdwg.mxu0
    %v2571 = vadd.f32 %v2498, %v2568
    %v2572 = vsub.f32 0.0, %v2571
    %v2573 = vmul.f32 %v2572, 1.442695
    %v2574 = vpow.pop %v2573
    %v2575 = vadd.f32 %v2574, 1.0
    %v2576 = vrcp.pop %v2575
    %v2577 = vmul.f32 1.0, %v2576
    %2579 = vrot.lane.b32.xlu0 %v2568, 64
    %v2580 = vpop.permute.xlu0 %2579
    %v2582 = vmul.f32 %v2577, %v2580
    %2584 = vrot.lane.b32.xlu0 %v2582, 64
    %v2585 = vpop.permute.xlu0 %2584
    %v2587 = vadd.f32 %v2498, %v2585
    %v2588 = vtanh.pop %v2587
    %v2589 = vsub.f32 1.0, %v2577
    %2591 = vrot.lane.b32.xlu0 %v2588, 96
    %v2592 = vpop.permute.xlu0 %2591
    %v2594 = vmul.f32 %v2589, %v2592
    %v2595 = vmul.f32 %v2577, %v2177
    %v2596 = vadd.f32 %v2594, %v2595
    %2598 = vrot.lane.b32.xlu0 %v2596, 96
    %v2599 = vpop.permute.xlu0 %2598
    %v2600 = vsel %vm213, %v2599, 0
    %2602 = vmatprep.subr.mxu0 0.0
    %2603 = vmatpush1.msra.mxu0 0.0
    %2604 = vmatprep.subr.mxu0 0.0
    %2605 = vmatpush1.msra.mxu0 0.0
    %2606 = vmatprep.subr.mxu0 0.0
    %2607 = vmatpush1.msra.mxu0 0.0
    %2608 = vmatprep.subr.mxu0 0.0
    %2609 = vmatpush1.msra.mxu0 0.0
    %2610 = vmatprep.subr.mxu0 0.0
    %2611 = vmatpush1.msra.mxu0 0.0
    %2612 = vmatprep.subr.mxu0 0.0
    %2613 = vmatpush1.msra.mxu0 0.0
    %2614 = vmatprep.subr.mxu0 0.0
    %2615 = vmatpush1.msra.mxu0 0.0
    %2616 = vmatprep.subr.mxu0 0.0
    %2617 = vmatpush1.msra.mxu0 0.0
    %2618 = vmatprep.subr.mxu0 0.0
    %2619 = vmatpush1.msra.mxu0 0.0
    %2620 = vmatprep.subr.mxu0 0.0
    %2621 = vmatpush1.msra.mxu0 0.0
    %2622 = vmatprep.subr.mxu0 0.0
    %2623 = vmatpush1.msra.mxu0 0.0
    %2624 = vmatprep.subr.mxu0 0.0
    %2625 = vmatpush1.msra.mxu0 0.0
    %2626 = vmatprep.subr.mxu0 0.0
    %2627 = vmatpush1.msra.mxu0 %v120
    %2628 = vmatprep.subr.mxu0 0.0
    %2629 = vmatpush1.msra.mxu0 %v119
    %2630 = vmatprep.subr.mxu0 0.0
    %2631 = vmatpush1.msra.mxu0 %v118
    %2632 = vmatprep.subr.mxu0 0.0
    %2633 = vmatpush1.msra.mxu0 %v117
    %2634 = vmatprep.subr.mxu0 0.0
    %2635 = vmatpush2.msra.mxu0 0.0
    %2636 = vmatprep.subr.mxu0 0.0
    %2637 = vmatpush2.msra.mxu0 0.0
    %2638 = vmatprep.subr.mxu0 0.0
    %2639 = vmatpush2.msra.mxu0 0.0
    %2640 = vmatprep.subr.mxu0 0.0
    %2641 = vmatpush2.msra.mxu0 0.0
    %2642 = vmatprep.subr.mxu0 0.0
    %2643 = vmatpush2.msra.mxu0 0.0
    %2644 = vmatprep.subr.mxu0 0.0
    %2645 = vmatpush2.msra.mxu0 0.0
    %2646 = vmatprep.subr.mxu0 0.0
    %2647 = vmatpush2.msra.mxu0 0.0
    %2648 = vmatprep.subr.mxu0 0.0
    %2649 = vmatpush2.msra.mxu0 0.0
    %2650 = vmatprep.subr.mxu0 0.0
    %2651 = vmatpush2.msra.mxu0 0.0
    %2652 = vmatprep.subr.mxu0 0.0
    %2653 = vmatpush2.msra.mxu0 0.0
    %2654 = vmatprep.subr.mxu0 0.0
    %2655 = vmatpush2.msra.mxu0 0.0
    %2656 = vmatprep.subr.mxu0 0.0
    %2657 = vmatpush2.msra.mxu0 0.0
    %2658 = vmatprep.subr.mxu0 0.0
    %2659 = vmatpush2.msra.mxu0 0.0
    %2660 = vmatprep.subr.mxu0 0.0
    %2661 = vmatpush2.msra.mxu0 0.0
    %2662 = vmatprep.subr.mxu0 0.0
    %2663 = vmatpush2.msra.mxu0 0.0
    %2664 = vmatprep.subr.mxu0 0.0
    %2665 = vmatpush2.msra.mxu0 0.0
    %2666 = vmatprep.mubr.f32.mxu0 0.0
    %2667 = vmatmul.mubr.f32.gmra.mxu0 %v2600
    %v2668 = vpop.f32.mrf.mxu0
    %v2669 = vadd.f32 %v500, %v2668
    %v2670 = vpop.f32.mrf.mxu0
    %2671 = vdwg.mxu0
    %s2672 = scalar_lea.vmem %s11, 10
    %2673 = vst.msk [vmem:[%s2672] sm:$0x3] %vm577, %v2669
    %s2674 = scalar_lea.vmem %s0, 12
    %v2675 = vld [vmem:[%s2674] sm:$0x3]
    %v2677 = vsel %vm129, %v2675, 0
    %2679 = vmatprep.subr.mxu0 0.0
    %2680 = vmatpush1.msra.mxu0 0.0
    %2681 = vmatprep.subr.mxu0 0.0
    %2682 = vmatpush1.msra.mxu0 0.0
    %2683 = vmatprep.subr.mxu0 0.0
    %2684 = vmatpush1.msra.mxu0 0.0
    %2685 = vmatprep.subr.mxu0 0.0
    %2686 = vmatpush1.msra.mxu0 0.0
    %2687 = vmatprep.subr.mxu0 0.0
    %2688 = vmatpush1.msra.mxu0 0.0
    %2689 = vmatprep.subr.mxu0 0.0
    %2690 = vmatpush1.msra.mxu0 0.0
    %2691 = vmatprep.subr.mxu0 0.0
    %2692 = vmatpush1.msra.mxu0 0.0
    %2693 = vmatprep.subr.mxu0 0.0
    %2694 = vmatpush1.msra.mxu0 0.0
    %2695 = vmatprep.subr.mxu0 0.0
    %2696 = vmatpush1.msra.mxu0 0.0
    %2697 = vmatprep.subr.mxu0 0.0
    %2698 = vmatpush1.msra.mxu0 0.0
    %2699 = vmatprep.subr.mxu0 0.0
    %2700 = vmatpush1.msra.mxu0 0.0
    %2701 = vmatprep.subr.mxu0 0.0
    %2702 = vmatpush1.msra.mxu0 0.0
    %2703 = vmatprep.subr.mxu0 0.0
    %2704 = vmatpush1.msra.mxu0 0.0
    %2705 = vmatprep.subr.mxu0 0.0
    %2706 = vmatpush1.msra.mxu0 0.0
    %2707 = vmatprep.subr.mxu0 0.0
    %2708 = vmatpush1.msra.mxu0 0.0
    %2709 = vmatprep.subr.mxu0 0.0
    %2710 = vmatpush1.msra.mxu0 %v135
    %2711 = vmatprep.subr.mxu0 0.0
    %2712 = vmatpush2.msra.mxu0 0.0
    %2713 = vmatprep.subr.mxu0 0.0
    %2714 = vmatpush2.msra.mxu0 0.0
    %2715 = vmatprep.subr.mxu0 0.0
    %2716 = vmatpush2.msra.mxu0 0.0
    %2717 = vmatprep.subr.mxu0 0.0
    %2718 = vmatpush2.msra.mxu0 0.0
    %2719 = vmatprep.subr.mxu0 0.0
    %2720 = vmatpush2.msra.mxu0 0.0
    %2721 = vmatprep.subr.mxu0 0.0
    %2722 = vmatpush2.msra.mxu0 0.0
    %2723 = vmatprep.subr.mxu0 0.0
    %2724 = vmatpush2.msra.mxu0 0.0
    %2725 = vmatprep.subr.mxu0 0.0
    %2726 = vmatpush2.msra.mxu0 0.0
    %2727 = vmatprep.subr.mxu0 0.0
    %2728 = vmatpush2.msra.mxu0 0.0
    %2729 = vmatprep.subr.mxu0 0.0
    %2730 = vmatpush2.msra.mxu0 0.0
    %2731 = vmatprep.subr.mxu0 0.0
    %2732 = vmatpush2.msra.mxu0 0.0
    %2733 = vmatprep.subr.mxu0 0.0
    %2734 = vmatpush2.msra.mxu0 0.0
    %2735 = vmatprep.subr.mxu0 0.0
    %2736 = vmatpush2.msra.mxu0 0.0
    %2737 = vmatprep.subr.mxu0 0.0
    %2738 = vmatpush2.msra.mxu0 0.0
    %2739 = vmatprep.subr.mxu0 0.0
    %2740 = vmatpush2.msra.mxu0 0.0
    %2741 = vmatprep.subr.mxu0 0.0
    %2742 = vmatpush2.msra.mxu0 0.0
    %2743 = vmatprep.mubr.f32.mxu0 0.0
    %2744 = vmatmul.mubr.f32.gmra.mxu0 %v2677
    %v2745 = vpop.f32.mrf.mxu0
    %v2746 = vadd.f32 %v127, %v2745
    %v2747 = vpop.f32.mrf.mxu0
    %2748 = vdwg.mxu0
    %2749 = vmatprep.subr.mxu0 0.0
    %2750 = vmatpush1.msra.mxu0 0.0
    %2751 = vmatprep.subr.mxu0 0.0
    %2752 = vmatpush1.msra.mxu0 0.0
    %2753 = vmatprep.subr.mxu0 0.0
    %2754 = vmatpush1.msra.mxu0 0.0
    %2755 = vmatprep.subr.mxu0 0.0
    %2756 = vmatpush1.msra.mxu0 0.0
    %2757 = vmatprep.subr.mxu0 0.0
    %2758 = vmatpush1.msra.mxu0 0.0
    %2759 = vmatprep.subr.mxu0 0.0
    %2760 = vmatpush1.msra.mxu0 0.0
    %2761 = vmatprep.subr.mxu0 0.0
    %2762 = vmatpush1.msra.mxu0 0.0
    %2763 = vmatprep.subr.mxu0 0.0
    %2764 = vmatpush1.msra.mxu0 0.0
    %2765 = vmatprep.subr.mxu0 0.0
    %2766 = vmatpush1.msra.mxu0 0.0
    %2767 = vmatprep.subr.mxu0 0.0
    %2768 = vmatpush1.msra.mxu0 0.0
    %2769 = vmatprep.subr.mxu0 0.0
    %2770 = vmatpush1.msra.mxu0 0.0
    %2771 = vmatprep.subr.mxu0 0.0
    %2772 = vmatpush1.msra.mxu0 0.0
    %2773 = vmatprep.subr.mxu0 0.0
    %2774 = vmatpush1.msra.mxu0 %v104
    %2775 = vmatprep.subr.mxu0 0.0
    %2776 = vmatpush1.msra.mxu0 %v103
    %2777 = vmatprep.subr.mxu0 0.0
    %2778 = vmatpush1.msra.mxu0 %v102
    %2779 = vmatprep.subr.mxu0 0.0
    %2780 = vmatpush1.msra.mxu0 %v101
    %2781 = vmatprep.subr.mxu0 0.0
    %2782 = vmatpush2.msra.mxu0 0.0
    %2783 = vmatprep.subr.mxu0 0.0
    %2784 = vmatpush2.msra.mxu0 0.0
    %2785 = vmatprep.subr.mxu0 0.0
    %2786 = vmatpush2.msra.mxu0 0.0
    %2787 = vmatprep.subr.mxu0 0.0
    %2788 = vmatpush2.msra.mxu0 0.0
    %2789 = vmatprep.subr.mxu0 0.0
    %2790 = vmatpush2.msra.mxu0 0.0
    %2791 = vmatprep.subr.mxu0 0.0
    %2792 = vmatpush2.msra.mxu0 0.0
    %2793 = vmatprep.subr.mxu0 0.0
    %2794 = vmatpush2.msra.mxu0 0.0
    %2795 = vmatprep.subr.mxu0 0.0
    %2796 = vmatpush2.msra.mxu0 0.0
    %2797 = vmatprep.subr.mxu0 0.0
    %2798 = vmatpush2.msra.mxu0 0.0
    %2799 = vmatprep.subr.mxu0 0.0
    %2800 = vmatpush2.msra.mxu0 0.0
    %2801 = vmatprep.subr.mxu0 0.0
    %2802 = vmatpush2.msra.mxu0 0.0
    %2803 = vmatprep.subr.mxu0 0.0
    %2804 = vmatpush2.msra.mxu0 0.0
    %2805 = vmatprep.subr.mxu0 0.0
    %2806 = vmatpush2.msra.mxu0 0.0
    %2807 = vmatprep.subr.mxu0 0.0
    %2808 = vmatpush2.msra.mxu0 0.0
    %2809 = vmatprep.subr.mxu0 0.0
    %2810 = vmatpush2.msra.mxu0 0.0
    %2811 = vmatprep.subr.mxu0 0.0
    %2812 = vmatpush2.msra.mxu0 0.0
    %2813 = vmatprep.mubr.f32.mxu0 0.0
    %2814 = vmatmul.mubr.f32.gmra.mxu0 %v2429
    %v2815 = vpop.f32.mrf.mxu0
    %v2816 = vadd.f32 %v211, %v2815
    %v2817 = vpop.f32.mrf.mxu0
    %2818 = vdwg.mxu0
    %v2819 = vadd.f32 %v2746, %v2816
    %v2820 = vsub.f32 0.0, %v2819
    %v2821 = vmul.f32 %v2820, 1.442695
    %v2822 = vpow.pop %v2821
    %v2823 = vadd.f32 %v2822, 1.0
    %v2824 = vrcp.pop %v2823
    %v2825 = vmul.f32 1.0, %v2824
    %2827 = vrot.lane.b32.xlu0 %v2816, 64
    %v2828 = vpop.permute.xlu0 %2827
    %v2830 = vmul.f32 %v2825, %v2828
    %2832 = vrot.lane.b32.xlu0 %v2830, 64
    %v2833 = vpop.permute.xlu0 %2832
    %v2835 = vadd.f32 %v2746, %v2833
    %v2836 = vtanh.pop %v2835
    %v2837 = vsub.f32 1.0, %v2825
    %2839 = vrot.lane.b32.xlu0 %v2836, 96
    %v2840 = vpop.permute.xlu0 %2839
    %v2842 = vmul.f32 %v2837, %v2840
    %v2843 = vmul.f32 %v2825, %v2425
    %v2844 = vadd.f32 %v2842, %v2843
    %2846 = vrot.lane.b32.xlu0 %v2844, 96
    %v2847 = vpop.permute.xlu0 %2846
    %v2848 = vsel %vm213, %v2847, 0
    %2850 = vmatprep.subr.mxu0 0.0
    %2851 = vmatpush1.msra.mxu0 0.0
    %2852 = vmatprep.subr.mxu0 0.0
    %2853 = vmatpush1.msra.mxu0 0.0
    %2854 = vmatprep.subr.mxu0 0.0
    %2855 = vmatpush1.msra.mxu0 0.0
    %2856 = vmatprep.subr.mxu0 0.0
    %2857 = vmatpush1.msra.mxu0 0.0
    %2858 = vmatprep.subr.mxu0 0.0
    %2859 = vmatpush1.msra.mxu0 0.0
    %2860 = vmatprep.subr.mxu0 0.0
    %2861 = vmatpush1.msra.mxu0 0.0
    %2862 = vmatprep.subr.mxu0 0.0
    %2863 = vmatpush1.msra.mxu0 0.0
    %2864 = vmatprep.subr.mxu0 0.0
    %2865 = vmatpush1.msra.mxu0 0.0
    %2866 = vmatprep.subr.mxu0 0.0
    %2867 = vmatpush1.msra.mxu0 0.0
    %2868 = vmatprep.subr.mxu0 0.0
    %2869 = vmatpush1.msra.mxu0 0.0
    %2870 = vmatprep.subr.mxu0 0.0
    %2871 = vmatpush1.msra.mxu0 0.0
    %2872 = vmatprep.subr.mxu0 0.0
    %2873 = vmatpush1.msra.mxu0 0.0
    %2874 = vmatprep.subr.mxu0 0.0
    %2875 = vmatpush1.msra.mxu0 %v110
    %2876 = vmatprep.subr.mxu0 0.0
    %2877 = vmatpush1.msra.mxu0 %v109
    %2878 = vmatprep.subr.mxu0 0.0
    %2879 = vmatpush1.msra.mxu0 %v108
    %2880 = vmatprep.subr.mxu0 0.0
    %2881 = vmatpush1.msra.mxu0 %v107
    %2882 = vmatprep.subr.mxu0 0.0
    %2883 = vmatpush2.msra.mxu0 0.0
    %2884 = vmatprep.subr.mxu0 0.0
    %2885 = vmatpush2.msra.mxu0 0.0
    %2886 = vmatprep.subr.mxu0 0.0
    %2887 = vmatpush2.msra.mxu0 0.0
    %2888 = vmatprep.subr.mxu0 0.0
    %2889 = vmatpush2.msra.mxu0 0.0
    %2890 = vmatprep.subr.mxu0 0.0
    %2891 = vmatpush2.msra.mxu0 0.0
    %2892 = vmatprep.subr.mxu0 0.0
    %2893 = vmatpush2.msra.mxu0 0.0
    %2894 = vmatprep.subr.mxu0 0.0
    %2895 = vmatpush2.msra.mxu0 0.0
    %2896 = vmatprep.subr.mxu0 0.0
    %2897 = vmatpush2.msra.mxu0 0.0
    %2898 = vmatprep.subr.mxu0 0.0
    %2899 = vmatpush2.msra.mxu0 0.0
    %2900 = vmatprep.subr.mxu0 0.0
    %2901 = vmatpush2.msra.mxu0 0.0
    %2902 = vmatprep.subr.mxu0 0.0
    %2903 = vmatpush2.msra.mxu0 0.0
    %2904 = vmatprep.subr.mxu0 0.0
    %2905 = vmatpush2.msra.mxu0 0.0
    %2906 = vmatprep.subr.mxu0 0.0
    %2907 = vmatpush2.msra.mxu0 0.0
    %2908 = vmatprep.subr.mxu0 0.0
    %2909 = vmatpush2.msra.mxu0 0.0
    %2910 = vmatprep.subr.mxu0 0.0
    %2911 = vmatpush2.msra.mxu0 0.0
    %2912 = vmatprep.subr.mxu0 0.0
    %2913 = vmatpush2.msra.mxu0 0.0
    %2914 = vmatprep.mubr.f32.mxu0 0.0
    %2915 = vmatmul.mubr.f32.gmra.mxu0 %v2848
    %v2916 = vpop.f32.mrf.mxu0
    %v2917 = vadd.f32 %v317, %v2916
    %v2918 = vpop.f32.mrf.mxu0
    %2919 = vdwg.mxu0
    %2920 = vmatprep.subr.mxu0 0.0
    %2921 = vmatpush1.msra.mxu0 0.0
    %2922 = vmatprep.subr.mxu0 0.0
    %2923 = vmatpush1.msra.mxu0 0.0
    %2924 = vmatprep.subr.mxu0 0.0
    %2925 = vmatpush1.msra.mxu0 0.0
    %2926 = vmatprep.subr.mxu0 0.0
    %2927 = vmatpush1.msra.mxu0 0.0
    %2928 = vmatprep.subr.mxu0 0.0
    %2929 = vmatpush1.msra.mxu0 0.0
    %2930 = vmatprep.subr.mxu0 0.0
    %2931 = vmatpush1.msra.mxu0 0.0
    %2932 = vmatprep.subr.mxu0 0.0
    %2933 = vmatpush1.msra.mxu0 0.0
    %2934 = vmatprep.subr.mxu0 0.0
    %2935 = vmatpush1.msra.mxu0 0.0
    %2936 = vmatprep.subr.mxu0 0.0
    %2937 = vmatpush1.msra.mxu0 0.0
    %2938 = vmatprep.subr.mxu0 0.0
    %2939 = vmatpush1.msra.mxu0 0.0
    %2940 = vmatprep.subr.mxu0 0.0
    %2941 = vmatpush1.msra.mxu0 0.0
    %2942 = vmatprep.subr.mxu0 0.0
    %2943 = vmatpush1.msra.mxu0 0.0
    %2944 = vmatprep.subr.mxu0 0.0
    %2945 = vmatpush1.msra.mxu0 %v114
    %2946 = vmatprep.subr.mxu0 0.0
    %2947 = vmatpush1.msra.mxu0 %v113
    %2948 = vmatprep.subr.mxu0 0.0
    %2949 = vmatpush1.msra.mxu0 %v112
    %2950 = vmatprep.subr.mxu0 0.0
    %2951 = vmatpush1.msra.mxu0 %v111
    %2952 = vmatprep.subr.mxu0 0.0
    %2953 = vmatpush2.msra.mxu0 0.0
    %2954 = vmatprep.subr.mxu0 0.0
    %2955 = vmatpush2.msra.mxu0 0.0
    %2956 = vmatprep.subr.mxu0 0.0
    %2957 = vmatpush2.msra.mxu0 0.0
    %2958 = vmatprep.subr.mxu0 0.0
    %2959 = vmatpush2.msra.mxu0 0.0
    %2960 = vmatprep.subr.mxu0 0.0
    %2961 = vmatpush2.msra.mxu0 0.0
    %2962 = vmatprep.subr.mxu0 0.0
    %2963 = vmatpush2.msra.mxu0 0.0
    %2964 = vmatprep.subr.mxu0 0.0
    %2965 = vmatpush2.msra.mxu0 0.0
    %2966 = vmatprep.subr.mxu0 0.0
    %2967 = vmatpush2.msra.mxu0 0.0
    %2968 = vmatprep.subr.mxu0 0.0
    %2969 = vmatpush2.msra.mxu0 0.0
    %2970 = vmatprep.subr.mxu0 0.0
    %2971 = vmatpush2.msra.mxu0 0.0
    %2972 = vmatprep.subr.mxu0 0.0
    %2973 = vmatpush2.msra.mxu0 0.0
    %2974 = vmatprep.subr.mxu0 0.0
    %2975 = vmatpush2.msra.mxu0 0.0
    %2976 = vmatprep.subr.mxu0 0.0
    %2977 = vmatpush2.msra.mxu0 0.0
    %2978 = vmatprep.subr.mxu0 0.0
    %2979 = vmatpush2.msra.mxu0 0.0
    %2980 = vmatprep.subr.mxu0 0.0
    %2981 = vmatpush2.msra.mxu0 0.0
    %2982 = vmatprep.subr.mxu0 0.0
    %2983 = vmatpush2.msra.mxu0 0.0
    %2984 = vmatprep.mubr.f32.mxu0 0.0
    %2985 = vmatmul.mubr.f32.gmra.mxu0 %v2600
    %v2986 = vpop.f32.mrf.mxu0
    %v2987 = vadd.f32 %v398, %v2986
    %v2988 = vpop.f32.mrf.mxu0
    %2989 = vdwg.mxu0
    %v2990 = vadd.f32 %v2917, %v2987
    %v2991 = vsub.f32 0.0, %v2990
    %v2992 = vmul.f32 %v2991, 1.442695
    %v2993 = vpow.pop %v2992
    %v2994 = vadd.f32 %v2993, 1.0
    %v2995 = vrcp.pop %v2994
    %v2996 = vmul.f32 1.0, %v2995
    %2998 = vrot.lane.b32.xlu0 %v2987, 64
    %v2999 = vpop.permute.xlu0 %2998
    %v3001 = vmul.f32 %v2996, %v2999
    %3003 = vrot.lane.b32.xlu0 %v3001, 64
    %v3004 = vpop.permute.xlu0 %3003
    %v3006 = vadd.f32 %v2917, %v3004
    %v3007 = vtanh.pop %v3006
    %v3008 = vsub.f32 1.0, %v2996
    %3010 = vrot.lane.b32.xlu0 %v3007, 96
    %v3011 = vpop.permute.xlu0 %3010
    %v3013 = vmul.f32 %v3008, %v3011
    %v3014 = vmul.f32 %v2996, %v2596
    %v3015 = vadd.f32 %v3013, %v3014
    %3017 = vrot.lane.b32.xlu0 %v3015, 96
    %v3018 = vpop.permute.xlu0 %3017
    %v3019 = vsel %vm213, %v3018, 0
    %3021 = vmatprep.subr.mxu0 0.0
    %3022 = vmatpush1.msra.mxu0 0.0
    %3023 = vmatprep.subr.mxu0 0.0
    %3024 = vmatpush1.msra.mxu0 0.0
    %3025 = vmatprep.subr.mxu0 0.0
    %3026 = vmatpush1.msra.mxu0 0.0
    %3027 = vmatprep.subr.mxu0 0.0
    %3028 = vmatpush1.msra.mxu0 0.0
    %3029 = vmatprep.subr.mxu0 0.0
    %3030 = vmatpush1.msra.mxu0 0.0
    %3031 = vmatprep.subr.mxu0 0.0
    %3032 = vmatpush1.msra.mxu0 0.0
    %3033 = vmatprep.subr.mxu0 0.0
    %3034 = vmatpush1.msra.mxu0 0.0
    %3035 = vmatprep.subr.mxu0 0.0
    %3036 = vmatpush1.msra.mxu0 0.0
    %3037 = vmatprep.subr.mxu0 0.0
    %3038 = vmatpush1.msra.mxu0 0.0
    %3039 = vmatprep.subr.mxu0 0.0
    %3040 = vmatpush1.msra.mxu0 0.0
    %3041 = vmatprep.subr.mxu0 0.0
    %3042 = vmatpush1.msra.mxu0 0.0
    %3043 = vmatprep.subr.mxu0 0.0
    %3044 = vmatpush1.msra.mxu0 0.0
    %3045 = vmatprep.subr.mxu0 0.0
    %3046 = vmatpush1.msra.mxu0 %v120
    %3047 = vmatprep.subr.mxu0 0.0
    %3048 = vmatpush1.msra.mxu0 %v119
    %3049 = vmatprep.subr.mxu0 0.0
    %3050 = vmatpush1.msra.mxu0 %v118
    %3051 = vmatprep.subr.mxu0 0.0
    %3052 = vmatpush1.msra.mxu0 %v117
    %3053 = vmatprep.subr.mxu0 0.0
    %3054 = vmatpush2.msra.mxu0 0.0
    %3055 = vmatprep.subr.mxu0 0.0
    %3056 = vmatpush2.msra.mxu0 0.0
    %3057 = vmatprep.subr.mxu0 0.0
    %3058 = vmatpush2.msra.mxu0 0.0
    %3059 = vmatprep.subr.mxu0 0.0
    %3060 = vmatpush2.msra.mxu0 0.0
    %3061 = vmatprep.subr.mxu0 0.0
    %3062 = vmatpush2.msra.mxu0 0.0
    %3063 = vmatprep.subr.mxu0 0.0
    %3064 = vmatpush2.msra.mxu0 0.0
    %3065 = vmatprep.subr.mxu0 0.0
    %3066 = vmatpush2.msra.mxu0 0.0
    %3067 = vmatprep.subr.mxu0 0.0
    %3068 = vmatpush2.msra.mxu0 0.0
    %3069 = vmatprep.subr.mxu0 0.0
    %3070 = vmatpush2.msra.mxu0 0.0
    %3071 = vmatprep.subr.mxu0 0.0
    %3072 = vmatpush2.msra.mxu0 0.0
    %3073 = vmatprep.subr.mxu0 0.0
    %3074 = vmatpush2.msra.mxu0 0.0
    %3075 = vmatprep.subr.mxu0 0.0
    %3076 = vmatpush2.msra.mxu0 0.0
    %3077 = vmatprep.subr.mxu0 0.0
    %3078 = vmatpush2.msra.mxu0 0.0
    %3079 = vmatprep.subr.mxu0 0.0
    %3080 = vmatpush2.msra.mxu0 0.0
    %3081 = vmatprep.subr.mxu0 0.0
    %3082 = vmatpush2.msra.mxu0 0.0
    %3083 = vmatprep.subr.mxu0 0.0
    %3084 = vmatpush2.msra.mxu0 0.0
    %3085 = vmatprep.mubr.f32.mxu0 0.0
    %3086 = vmatmul.mubr.f32.gmra.mxu0 %v3019
    %v3087 = vpop.f32.mrf.mxu0
    %v3088 = vadd.f32 %v500, %v3087
    %v3089 = vpop.f32.mrf.mxu0
    %3090 = vdwg.mxu0
    %s3091 = scalar_lea.vmem %s11, 12
    %3092 = vst.msk [vmem:[%s3091] sm:$0x3] %vm577, %v3088
    %s3093 = scalar_lea.vmem %s0, 14
    %v3094 = vld [vmem:[%s3093] sm:$0x3]
    %v3096 = vsel %vm129, %v3094, 0
    %3098 = vmatprep.subr.mxu0 0.0
    %3099 = vmatpush1.msra.mxu0 0.0
    %3100 = vmatprep.subr.mxu0 0.0
    %3101 = vmatpush1.msra.mxu0 0.0
    %3102 = vmatprep.subr.mxu0 0.0
    %3103 = vmatpush1.msra.mxu0 0.0
    %3104 = vmatprep.subr.mxu0 0.0
    %3105 = vmatpush1.msra.mxu0 0.0
    %3106 = vmatprep.subr.mxu0 0.0
    %3107 = vmatpush1.msra.mxu0 0.0
    %3108 = vmatprep.subr.mxu0 0.0
    %3109 = vmatpush1.msra.mxu0 0.0
    %3110 = vmatprep.subr.mxu0 0.0
    %3111 = vmatpush1.msra.mxu0 0.0
    %3112 = vmatprep.subr.mxu0 0.0
    %3113 = vmatpush1.msra.mxu0 0.0
    %3114 = vmatprep.subr.mxu0 0.0
    %3115 = vmatpush1.msra.mxu0 0.0
    %3116 = vmatprep.subr.mxu0 0.0
    %3117 = vmatpush1.msra.mxu0 0.0
    %3118 = vmatprep.subr.mxu0 0.0
    %3119 = vmatpush1.msra.mxu0 0.0
    %3120 = vmatprep.subr.mxu0 0.0
    %3121 = vmatpush1.msra.mxu0 0.0
    %3122 = vmatprep.subr.mxu0 0.0
    %3123 = vmatpush1.msra.mxu0 0.0
    %3124 = vmatprep.subr.mxu0 0.0
    %3125 = vmatpush1.msra.mxu0 0.0
    %3126 = vmatprep.subr.mxu0 0.0
    %3127 = vmatpush1.msra.mxu0 0.0
    %3128 = vmatprep.subr.mxu0 0.0
    %3129 = vmatpush1.msra.mxu0 %v135
    %3130 = vmatprep.subr.mxu0 0.0
    %3131 = vmatpush2.msra.mxu0 0.0
    %3132 = vmatprep.subr.mxu0 0.0
    %3133 = vmatpush2.msra.mxu0 0.0
    %3134 = vmatprep.subr.mxu0 0.0
    %3135 = vmatpush2.msra.mxu0 0.0
    %3136 = vmatprep.subr.mxu0 0.0
    %3137 = vmatpush2.msra.mxu0 0.0
    %3138 = vmatprep.subr.mxu0 0.0
    %3139 = vmatpush2.msra.mxu0 0.0
    %3140 = vmatprep.subr.mxu0 0.0
    %3141 = vmatpush2.msra.mxu0 0.0
    %3142 = vmatprep.subr.mxu0 0.0
    %3143 = vmatpush2.msra.mxu0 0.0
    %3144 = vmatprep.subr.mxu0 0.0
    %3145 = vmatpush2.msra.mxu0 0.0
    %3146 = vmatprep.subr.mxu0 0.0
    %3147 = vmatpush2.msra.mxu0 0.0
    %3148 = vmatprep.subr.mxu0 0.0
    %3149 = vmatpush2.msra.mxu0 0.0
    %3150 = vmatprep.subr.mxu0 0.0
    %3151 = vmatpush2.msra.mxu0 0.0
    %3152 = vmatprep.subr.mxu0 0.0
    %3153 = vmatpush2.msra.mxu0 0.0
    %3154 = vmatprep.subr.mxu0 0.0
    %3155 = vmatpush2.msra.mxu0 0.0
    %3156 = vmatprep.subr.mxu0 0.0
    %3157 = vmatpush2.msra.mxu0 0.0
    %3158 = vmatprep.subr.mxu0 0.0
    %3159 = vmatpush2.msra.mxu0 0.0
    %3160 = vmatprep.subr.mxu0 0.0
    %3161 = vmatpush2.msra.mxu0 0.0
    %3162 = vmatprep.mubr.f32.mxu0 0.0
    %3163 = vmatmul.mubr.f32.gmra.mxu0 %v3096
    %v3164 = vpop.f32.mrf.mxu0
    %v3165 = vadd.f32 %v127, %v3164
    %v3166 = vpop.f32.mrf.mxu0
    %3167 = vdwg.mxu0
    %3168 = vmatprep.subr.mxu0 0.0
    %3169 = vmatpush1.msra.mxu0 0.0
    %3170 = vmatprep.subr.mxu0 0.0
    %3171 = vmatpush1.msra.mxu0 0.0
    %3172 = vmatprep.subr.mxu0 0.0
    %3173 = vmatpush1.msra.mxu0 0.0
    %3174 = vmatprep.subr.mxu0 0.0
    %3175 = vmatpush1.msra.mxu0 0.0
    %3176 = vmatprep.subr.mxu0 0.0
    %3177 = vmatpush1.msra.mxu0 0.0
    %3178 = vmatprep.subr.mxu0 0.0
    %3179 = vmatpush1.msra.mxu0 0.0
    %3180 = vmatprep.subr.mxu0 0.0
    %3181 = vmatpush1.msra.mxu0 0.0
    %3182 = vmatprep.subr.mxu0 0.0
    %3183 = vmatpush1.msra.mxu0 0.0
    %3184 = vmatprep.subr.mxu0 0.0
    %3185 = vmatpush1.msra.mxu0 0.0
    %3186 = vmatprep.subr.mxu0 0.0
    %3187 = vmatpush1.msra.mxu0 0.0
    %3188 = vmatprep.subr.mxu0 0.0
    %3189 = vmatpush1.msra.mxu0 0.0
    %3190 = vmatprep.subr.mxu0 0.0
    %3191 = vmatpush1.msra.mxu0 0.0
    %3192 = vmatprep.subr.mxu0 0.0
    %3193 = vmatpush1.msra.mxu0 %v104
    %3194 = vmatprep.subr.mxu0 0.0
    %3195 = vmatpush1.msra.mxu0 %v103
    %3196 = vmatprep.subr.mxu0 0.0
    %3197 = vmatpush1.msra.mxu0 %v102
    %3198 = vmatprep.subr.mxu0 0.0
    %3199 = vmatpush1.msra.mxu0 %v101
    %3200 = vmatprep.subr.mxu0 0.0
    %3201 = vmatpush2.msra.mxu0 0.0
    %3202 = vmatprep.subr.mxu0 0.0
    %3203 = vmatpush2.msra.mxu0 0.0
    %3204 = vmatprep.subr.mxu0 0.0
    %3205 = vmatpush2.msra.mxu0 0.0
    %3206 = vmatprep.subr.mxu0 0.0
    %3207 = vmatpush2.msra.mxu0 0.0
    %3208 = vmatprep.subr.mxu0 0.0
    %3209 = vmatpush2.msra.mxu0 0.0
    %3210 = vmatprep.subr.mxu0 0.0
    %3211 = vmatpush2.msra.mxu0 0.0
    %3212 = vmatprep.subr.mxu0 0.0
    %3213 = vmatpush2.msra.mxu0 0.0
    %3214 = vmatprep.subr.mxu0 0.0
    %3215 = vmatpush2.msra.mxu0 0.0
    %3216 = vmatprep.subr.mxu0 0.0
    %3217 = vmatpush2.msra.mxu0 0.0
    %3218 = vmatprep.subr.mxu0 0.0
    %3219 = vmatpush2.msra.mxu0 0.0
    %3220 = vmatprep.subr.mxu0 0.0
    %3221 = vmatpush2.msra.mxu0 0.0
    %3222 = vmatprep.subr.mxu0 0.0
    %3223 = vmatpush2.msra.mxu0 0.0
    %3224 = vmatprep.subr.mxu0 0.0
    %3225 = vmatpush2.msra.mxu0 0.0
    %3226 = vmatprep.subr.mxu0 0.0
    %3227 = vmatpush2.msra.mxu0 0.0
    %3228 = vmatprep.subr.mxu0 0.0
    %3229 = vmatpush2.msra.mxu0 0.0
    %3230 = vmatprep.subr.mxu0 0.0
    %3231 = vmatpush2.msra.mxu0 0.0
    %3232 = vmatprep.mubr.f32.mxu0 0.0
    %3233 = vmatmul.mubr.f32.gmra.mxu0 %v2848
    %v3234 = vpop.f32.mrf.mxu0
    %v3235 = vadd.f32 %v211, %v3234
    %v3236 = vpop.f32.mrf.mxu0
    %3237 = vdwg.mxu0
    %v3238 = vadd.f32 %v3165, %v3235
    %v3239 = vsub.f32 0.0, %v3238
    %v3240 = vmul.f32 %v3239, 1.442695
    %v3241 = vpow.pop %v3240
    %v3242 = vadd.f32 %v3241, 1.0
    %v3243 = vrcp.pop %v3242
    %v3244 = vmul.f32 1.0, %v3243
    %3246 = vrot.lane.b32.xlu0 %v3235, 64
    %v3247 = vpop.permute.xlu0 %3246
    %v3249 = vmul.f32 %v3244, %v3247
    %3251 = vrot.lane.b32.xlu0 %v3249, 64
    %v3252 = vpop.permute.xlu0 %3251
    %v3254 = vadd.f32 %v3165, %v3252
    %v3255 = vtanh.pop %v3254
    %v3256 = vsub.f32 1.0, %v3244
    %3258 = vrot.lane.b32.xlu0 %v3255, 96
    %v3259 = vpop.permute.xlu0 %3258
    %v3261 = vmul.f32 %v3256, %v3259
    %v3262 = vmul.f32 %v3244, %v2844
    %v3263 = vadd.f32 %v3261, %v3262
    %3265 = vrot.lane.b32.xlu0 %v3263, 96
    %v3266 = vpop.permute.xlu0 %3265
    %v3267 = vsel %vm213, %v3266, 0
    %3269 = vmatprep.subr.mxu0 0.0
    %3270 = vmatpush1.msra.mxu0 0.0
    %3271 = vmatprep.subr.mxu0 0.0
    %3272 = vmatpush1.msra.mxu0 0.0
    %3273 = vmatprep.subr.mxu0 0.0
    %3274 = vmatpush1.msra.mxu0 0.0
    %3275 = vmatprep.subr.mxu0 0.0
    %3276 = vmatpush1.msra.mxu0 0.0
    %3277 = vmatprep.subr.mxu0 0.0
    %3278 = vmatpush1.msra.mxu0 0.0
    %3279 = vmatprep.subr.mxu0 0.0
    %3280 = vmatpush1.msra.mxu0 0.0
    %3281 = vmatprep.subr.mxu0 0.0
    %3282 = vmatpush1.msra.mxu0 0.0
    %3283 = vmatprep.subr.mxu0 0.0
    %3284 = vmatpush1.msra.mxu0 0.0
    %3285 = vmatprep.subr.mxu0 0.0
    %3286 = vmatpush1.msra.mxu0 0.0
    %3287 = vmatprep.subr.mxu0 0.0
    %3288 = vmatpush1.msra.mxu0 0.0
    %3289 = vmatprep.subr.mxu0 0.0
    %3290 = vmatpush1.msra.mxu0 0.0
    %3291 = vmatprep.subr.mxu0 0.0
    %3292 = vmatpush1.msra.mxu0 0.0
    %3293 = vmatprep.subr.mxu0 0.0
    %3294 = vmatpush1.msra.mxu0 %v110
    %3295 = vmatprep.subr.mxu0 0.0
    %3296 = vmatpush1.msra.mxu0 %v109
    %3297 = vmatprep.subr.mxu0 0.0
    %3298 = vmatpush1.msra.mxu0 %v108
    %3299 = vmatprep.subr.mxu0 0.0
    %3300 = vmatpush1.msra.mxu0 %v107
    %3301 = vmatprep.subr.mxu0 0.0
    %3302 = vmatpush2.msra.mxu0 0.0
    %3303 = vmatprep.subr.mxu0 0.0
    %3304 = vmatpush2.msra.mxu0 0.0
    %3305 = vmatprep.subr.mxu0 0.0
    %3306 = vmatpush2.msra.mxu0 0.0
    %3307 = vmatprep.subr.mxu0 0.0
    %3308 = vmatpush2.msra.mxu0 0.0
    %3309 = vmatprep.subr.mxu0 0.0
    %3310 = vmatpush2.msra.mxu0 0.0
    %3311 = vmatprep.subr.mxu0 0.0
    %3312 = vmatpush2.msra.mxu0 0.0
    %3313 = vmatprep.subr.mxu0 0.0
    %3314 = vmatpush2.msra.mxu0 0.0
    %3315 = vmatprep.subr.mxu0 0.0
    %3316 = vmatpush2.msra.mxu0 0.0
    %3317 = vmatprep.subr.mxu0 0.0
    %3318 = vmatpush2.msra.mxu0 0.0
    %3319 = vmatprep.subr.mxu0 0.0
    %3320 = vmatpush2.msra.mxu0 0.0
    %3321 = vmatprep.subr.mxu0 0.0
    %3322 = vmatpush2.msra.mxu0 0.0
    %3323 = vmatprep.subr.mxu0 0.0
    %3324 = vmatpush2.msra.mxu0 0.0
    %3325 = vmatprep.subr.mxu0 0.0
    %3326 = vmatpush2.msra.mxu0 0.0
    %3327 = vmatprep.subr.mxu0 0.0
    %3328 = vmatpush2.msra.mxu0 0.0
    %3329 = vmatprep.subr.mxu0 0.0
    %3330 = vmatpush2.msra.mxu0 0.0
    %3331 = vmatprep.subr.mxu0 0.0
    %3332 = vmatpush2.msra.mxu0 0.0
    %3333 = vmatprep.mubr.f32.mxu0 0.0
    %3334 = vmatmul.mubr.f32.gmra.mxu0 %v3267
    %v3335 = vpop.f32.mrf.mxu0
    %v3336 = vadd.f32 %v317, %v3335
    %v3337 = vpop.f32.mrf.mxu0
    %3338 = vdwg.mxu0
    %3339 = vmatprep.subr.mxu0 0.0
    %3340 = vmatpush1.msra.mxu0 0.0
    %3341 = vmatprep.subr.mxu0 0.0
    %3342 = vmatpush1.msra.mxu0 0.0
    %3343 = vmatprep.subr.mxu0 0.0
    %3344 = vmatpush1.msra.mxu0 0.0
    %3345 = vmatprep.subr.mxu0 0.0
    %3346 = vmatpush1.msra.mxu0 0.0
    %3347 = vmatprep.subr.mxu0 0.0
    %3348 = vmatpush1.msra.mxu0 0.0
    %3349 = vmatprep.subr.mxu0 0.0
    %3350 = vmatpush1.msra.mxu0 0.0
    %3351 = vmatprep.subr.mxu0 0.0
    %3352 = vmatpush1.msra.mxu0 0.0
    %3353 = vmatprep.subr.mxu0 0.0
    %3354 = vmatpush1.msra.mxu0 0.0
    %3355 = vmatprep.subr.mxu0 0.0
    %3356 = vmatpush1.msra.mxu0 0.0
    %3357 = vmatprep.subr.mxu0 0.0
    %3358 = vmatpush1.msra.mxu0 0.0
    %3359 = vmatprep.subr.mxu0 0.0
    %3360 = vmatpush1.msra.mxu0 0.0
    %3361 = vmatprep.subr.mxu0 0.0
    %3362 = vmatpush1.msra.mxu0 0.0
    %3363 = vmatprep.subr.mxu0 0.0
    %3364 = vmatpush1.msra.mxu0 %v114
    %3365 = vmatprep.subr.mxu0 0.0
    %3366 = vmatpush1.msra.mxu0 %v113
    %3367 = vmatprep.subr.mxu0 0.0
    %3368 = vmatpush1.msra.mxu0 %v112
    %3369 = vmatprep.subr.mxu0 0.0
    %3370 = vmatpush1.msra.mxu0 %v111
    %3371 = vmatprep.subr.mxu0 0.0
    %3372 = vmatpush2.msra.mxu0 0.0
    %3373 = vmatprep.subr.mxu0 0.0
    %3374 = vmatpush2.msra.mxu0 0.0
    %3375 = vmatprep.subr.mxu0 0.0
    %3376 = vmatpush2.msra.mxu0 0.0
    %3377 = vmatprep.subr.mxu0 0.0
    %3378 = vmatpush2.msra.mxu0 0.0
    %3379 = vmatprep.subr.mxu0 0.0
    %3380 = vmatpush2.msra.mxu0 0.0
    %3381 = vmatprep.subr.mxu0 0.0
    %3382 = vmatpush2.msra.mxu0 0.0
    %3383 = vmatprep.subr.mxu0 0.0
    %3384 = vmatpush2.msra.mxu0 0.0
    %3385 = vmatprep.subr.mxu0 0.0
    %3386 = vmatpush2.msra.mxu0 0.0
    %3387 = vmatprep.subr.mxu0 0.0
    %3388 = vmatpush2.msra.mxu0 0.0
    %3389 = vmatprep.subr.mxu0 0.0
    %3390 = vmatpush2.msra.mxu0 0.0
    %3391 = vmatprep.subr.mxu0 0.0
    %3392 = vmatpush2.msra.mxu0 0.0
    %3393 = vmatprep.subr.mxu0 0.0
    %3394 = vmatpush2.msra.mxu0 0.0
    %3395 = vmatprep.subr.mxu0 0.0
    %3396 = vmatpush2.msra.mxu0 0.0
    %3397 = vmatprep.subr.mxu0 0.0
    %3398 = vmatpush2.msra.mxu0 0.0
    %3399 = vmatprep.subr.mxu0 0.0
    %3400 = vmatpush2.msra.mxu0 0.0
    %3401 = vmatprep.subr.mxu0 0.0
    %3402 = vmatpush2.msra.mxu0 0.0
    %3403 = vmatprep.mubr.f32.mxu0 0.0
    %3404 = vmatmul.mubr.f32.gmra.mxu0 %v3019
    %v3405 = vpop.f32.mrf.mxu0
    %v3406 = vadd.f32 %v398, %v3405
    %v3407 = vpop.f32.mrf.mxu0
    %3408 = vdwg.mxu0
    %v3409 = vadd.f32 %v3336, %v3406
    %v3410 = vsub.f32 0.0, %v3409
    %v3411 = vmul.f32 %v3410, 1.442695
    %v3412 = vpow.pop %v3411
    %v3413 = vadd.f32 %v3412, 1.0
    %v3414 = vrcp.pop %v3413
    %v3415 = vmul.f32 1.0, %v3414
    %3417 = vrot.lane.b32.xlu0 %v3406, 64
    %v3418 = vpop.permute.xlu0 %3417
    %v3420 = vmul.f32 %v3415, %v3418
    %3422 = vrot.lane.b32.xlu0 %v3420, 64
    %v3423 = vpop.permute.xlu0 %3422
    %v3425 = vadd.f32 %v3336, %v3423
    %v3426 = vtanh.pop %v3425
    %v3427 = vsub.f32 1.0, %v3415
    %3429 = vrot.lane.b32.xlu0 %v3426, 96
    %v3430 = vpop.permute.xlu0 %3429
    %v3432 = vmul.f32 %v3427, %v3430
    %v3433 = vmul.f32 %v3415, %v3015
    %v3434 = vadd.f32 %v3432, %v3433
    %3436 = vrot.lane.b32.xlu0 %v3434, 96
    %v3437 = vpop.permute.xlu0 %3436
    %v3438 = vsel %vm213, %v3437, 0
    %3440 = vmatprep.subr.mxu0 0.0
    %3441 = vmatpush1.msra.mxu0 0.0
    %3442 = vmatprep.subr.mxu0 0.0
    %3443 = vmatpush1.msra.mxu0 0.0
    %3444 = vmatprep.subr.mxu0 0.0
    %3445 = vmatpush1.msra.mxu0 0.0
    %3446 = vmatprep.subr.mxu0 0.0
    %3447 = vmatpush1.msra.mxu0 0.0
    %3448 = vmatprep.subr.mxu0 0.0
    %3449 = vmatpush1.msra.mxu0 0.0
    %3450 = vmatprep.subr.mxu0 0.0
    %3451 = vmatpush1.msra.mxu0 0.0
    %3452 = vmatprep.subr.mxu0 0.0
    %3453 = vmatpush1.msra.mxu0 0.0
    %3454 = vmatprep.subr.mxu0 0.0
    %3455 = vmatpush1.msra.mxu0 0.0
    %3456 = vmatprep.subr.mxu0 0.0
    %3457 = vmatpush1.msra.mxu0 0.0
    %3458 = vmatprep.subr.mxu0 0.0
    %3459 = vmatpush1.msra.mxu0 0.0
    %3460 = vmatprep.subr.mxu0 0.0
    %3461 = vmatpush1.msra.mxu0 0.0
    %3462 = vmatprep.subr.mxu0 0.0
    %3463 = vmatpush1.msra.mxu0 0.0
    %3464 = vmatprep.subr.mxu0 0.0
    %3465 = vmatpush1.msra.mxu0 %v120
    %3466 = vmatprep.subr.mxu0 0.0
    %3467 = vmatpush1.msra.mxu0 %v119
    %3468 = vmatprep.subr.mxu0 0.0
    %3469 = vmatpush1.msra.mxu0 %v118
    %3470 = vmatprep.subr.mxu0 0.0
    %3471 = vmatpush1.msra.mxu0 %v117
    %3472 = vmatprep.subr.mxu0 0.0
    %3473 = vmatpush2.msra.mxu0 0.0
    %3474 = vmatprep.subr.mxu0 0.0
    %3475 = vmatpush2.msra.mxu0 0.0
    %3476 = vmatprep.subr.mxu0 0.0
    %3477 = vmatpush2.msra.mxu0 0.0
    %3478 = vmatprep.subr.mxu0 0.0
    %3479 = vmatpush2.msra.mxu0 0.0
    %3480 = vmatprep.subr.mxu0 0.0
    %3481 = vmatpush2.msra.mxu0 0.0
    %3482 = vmatprep.subr.mxu0 0.0
    %3483 = vmatpush2.msra.mxu0 0.0
    %3484 = vmatprep.subr.mxu0 0.0
    %3485 = vmatpush2.msra.mxu0 0.0
    %3486 = vmatprep.subr.mxu0 0.0
    %3487 = vmatpush2.msra.mxu0 0.0
    %3488 = vmatprep.subr.mxu0 0.0
    %3489 = vmatpush2.msra.mxu0 0.0
    %3490 = vmatprep.subr.mxu0 0.0
    %3491 = vmatpush2.msra.mxu0 0.0
    %3492 = vmatprep.subr.mxu0 0.0
    %3493 = vmatpush2.msra.mxu0 0.0
    %3494 = vmatprep.subr.mxu0 0.0
    %3495 = vmatpush2.msra.mxu0 0.0
    %3496 = vmatprep.subr.mxu0 0.0
    %3497 = vmatpush2.msra.mxu0 0.0
    %3498 = vmatprep.subr.mxu0 0.0
    %3499 = vmatpush2.msra.mxu0 0.0
    %3500 = vmatprep.subr.mxu0 0.0
    %3501 = vmatpush2.msra.mxu0 0.0
    %3502 = vmatprep.subr.mxu0 0.0
    %3503 = vmatpush2.msra.mxu0 0.0
    %3504 = vmatprep.mubr.f32.mxu0 0.0
    %3505 = vmatmul.mubr.f32.gmra.mxu0 %v3438
    %v3506 = vpop.f32.mrf.mxu0
    %v3507 = vadd.f32 %v500, %v3506
    %v3508 = vpop.f32.mrf.mxu0
    %3509 = vdwg.mxu0
    %s3510 = scalar_lea.vmem %s11, 14
    %3511 = vst.msk [vmem:[%s3510] sm:$0x3] %vm577, %v3507
    // Predicated region
    $region66: #{regression_gru_forward.1} parent=1 // pred_check
      _
    $region67: #{regression_gru_forward.1} parent=1 // pred_check_branch
      %3513 = sbr.rel (0) target = $region69
    $region68: #{regression_gru_forward.1} parent=1 // pred_region
      _
    $region69: #{regression_gru_forward.1} parent=1 // pred_fallthru
      _
    // Predicated region
    $region70: #{regression_gru_forward.1} parent=1 // pred_check
      _
    $region71: #{regression_gru_forward.1} parent=1 // pred_check_branch
      %3515 = sbr.rel (0) target = $region73
    $region72: #{regression_gru_forward.1} parent=1 // pred_region
      _
    $region73: #{regression_gru_forward.1} parent=1 // pred_fallthru
      _
    %3516 = vsyncpa [#allocation4], 1
    %3517 = vsyncpa [#allocation6], 1
    %3518 = vsyncpa [#allocation9], 1

</llo_original>
